<compile_context>
chip_gen: v6e
topology: v6e:2x2x1
jax: 0.10.0
libtpu: 0.0.40
codegen_flags: <defaults>
</compile_context>

<pallas_src>
import functools

import jax
import jax.numpy as jnp
from jax import lax
from jax.experimental import pallas as pl
from jax.experimental.pallas import tpu as pltpu


# ----------------------------- kernel helpers -----------------------------

def _layernorm(x, w, b, eps=1e-5):
    mu = jnp.mean(x, axis=-1, keepdims=True)
    var = jnp.mean((x - mu) ** 2, axis=-1, keepdims=True)
    return (x - mu) * lax.rsqrt(var + eps) * w + b


def _gelu_exact(x):
    # matches torch.nn.GELU() (erf-based, non-approximate)
    return 0.5 * x * (1.0 + lax.erf(x / jnp.sqrt(jnp.float32(2.0))))


# ------------------------------ fused kernel -------------------------------

def fused_block_kernel(x_ref,
                       ln1_w_ref, ln1_b_ref, wq_ref, wk_ref, wv_ref,
                       wp_ref, bp_ref, ln2_w_ref, ln2_b_ref,
                       w1_ref, b1_ref, w2_ref, b2_ref, ones_bd_ref,
                       o_ref,
                       xr_scr, x2_scr, acc_scr, stack_scr, y2d_scr,
                       *, num_heads, scale, approx_recip):
    c_idx = pl.program_id(1)                 # MLP hidden-chunk index
    f32 = jnp.float32
    cd = wq_ref.dtype                        # matmul compute dtype (f32 or bf16)

    def mm(a_cd, b_cd):                      # a @ b with f32 MXU accumulation
        return jnp.dot(a_cd, b_cd, preferred_element_type=f32)

    def inv_mul(num, den):                   # num / den, optionally via EUP recip
        if approx_recip:
            return num * pl.reciprocal(den, approx=True)
        return num / den

    # -------- chunk 0 of each batch element: LN1 + attention + proj + LN2 ----
    @pl.when(c_idx == 0)
    def _attention():
        x = x_ref[0].astype(f32)             # (N, C) residual stream
        N, C = x.shape
        hd = C // num_heads

        x1 = _layernorm(x, ln1_w_ref[...].astype(f32), ln1_b_ref[...].astype(f32))
        x1c = x1.astype(cd)                  # cast once, reused for q/k/v
        q = mm(x1c, wq_ref[...])             # (N, C)
        k = mm(x1c, wk_ref[...])             # (N, C)
        v = mm(x1c, wv_ref[...])             # (N, C)

        # (k^T * scale).softmax(-1) in torch == column softmax of k*scale over
        # the token axis; head structure is irrelevant to this softmax.
        ks = k * scale
        ks = jnp.exp(ks - jnp.max(ks, axis=0, keepdims=True))
        ks = inv_mul(ks, jnp.sum(ks, axis=0, keepdims=True))   # (N, C)

        # Full (C, C) k^T @ v in one lane-dense MXU contraction; only the
        # diagonal head blocks are the per-head attn matrices, masked with the
        # precomputed block-diagonal 0/1 input (no iota rebuild per step).
        # Note (v5e): per-head (hd, hd) matmuls can be cheaper there since the
        # 128x128 MXU is more likely the binding unit; full-width kept here.
        ones_cd = ones_bd_ref[...]                               # (C, C) 0/1
        attn_full = lax.dot_general(ks.astype(cd), v.astype(cd),
                                    (((0,), (0,)), ((), ())),
                                    preferred_element_type=f32)  # ks^T @ v
        attn_bd = attn_full.astype(cd) * ones_cd                 # block-diag (C, C)

        # Per-head softmax of q over head_dim, kept lane-dense on (N, C).
        # The whole-row max is constant across each head's columns, so the
        # softmax value equals the per-head-max version (exp underflow only if
        # a head sits ~80+ below the row max, not the case post-LayerNorm).
        e = jnp.exp(q - jnp.max(q, axis=-1, keepdims=True))
        denom = mm(e.astype(cd), ones_cd)     # per-head sums broadcast to (N, C)
        q_sm = inv_mul(e, denom)

        # y in natural head-minor layout: y_nat[n, h*hd+d] = (softmax(q_h)@attn_h)[n, d]
        y_nat = mm(q_sm.astype(cd), attn_bd)                     # (N, C)

        # Reproduce torch's head-major flatten (B,H,N,hd).reshape(B,N,C) in
        # VMEM: stack heads along rows, re-read with stride-H sublane slices.
        # (Slices are hd lanes wide -> masked stores when hd < 128; this is
        #  pure data movement paying for the torch reshape quirk.)
        for h in range(num_heads):
            stack_scr[h * N:(h + 1) * N, :] = y_nat[:, h * hd:(h + 1) * hd]
        for j in range(num_heads):
            y2d_scr[:, j * hd:(j + 1) * hd] = stack_scr[pl.ds(j, N, stride=num_heads), :]

        attn_out = mm(y2d_scr[...].astype(cd), wp_ref[...]) + bp_ref[...].astype(f32)
        xr = x + attn_out                     # proj_drop / drop_path are Identity
        xr_scr[...] = xr
        x2_scr[...] = _layernorm(xr, ln2_w_ref[...].astype(f32),
                                 ln2_b_ref[...].astype(f32)).astype(cd)
        acc_scr[...] = jnp.zeros_like(acc_scr)

    # -------- every chunk: one hidden-dim slab of the MLP --------------------
    hdn = _gelu_exact(mm(x2_scr[...], w1_ref[...]) + b1_ref[...].astype(f32))
    acc_scr[...] += mm(hdn.astype(cd), w2_ref[...])

    @pl.when(c_idx == pl.num_programs(1) - 1)
    def _finalize():
        o_ref[0] = (xr_scr[...] + acc_scr[...]
                    + b2_ref[...].astype(jnp.float32)).astype(o_ref.dtype)


# -------------------------------- wrapper ----------------------------------

def _default_vmem_limit():
    # ~3/4 of physical VMEM: ~96 MiB on v5e/v6e (128 MiB), ~48 MiB on v7x
    # (64 MiB).  Conservative 48 MiB fallback if the query is unavailable.
    try:
        cap = int(pltpu.get_tpu_info().vmem_capacity_bytes)
        return min(3 * cap // 4, 100 * 1024 * 1024)
    except Exception:
        return 48 * 1024 * 1024


def linear_block(x, p, *, num_heads, scale, mlp_chunk=None,
                 approx_recip=True, vmem_limit_bytes=None,
                 single_buffer_weights=True):
    B, N, C = x.shape
    assert C % num_heads == 0, "dim must be divisible by num_heads"
    head_dim = C // num_heads
    mlp_hidden = p["w1"].shape[1]
    if mlp_chunk is None:
        mlp_chunk = min(mlp_hidden, 1024)
    assert mlp_hidden % mlp_chunk == 0, "mlp_hidden must be divisible by mlp_chunk"
    n_chunks = mlp_hidden // mlp_chunk

    # Matmul weights are used in whatever dtype the caller stored them in
    # (pre-cast ONCE outside this call, e.g. bf16 for half weight DMA bytes
    # and bf16 MXU rate on v6e/v7x).  LayerNorm / softmax / GELU stay in f32.
    compute_dtype = p["wq"].dtype

    # Precomputed block-diagonal head mask / ones matrix (grid-invariant input).
    head_of = jnp.arange(C, dtype=jnp.int32) // head_dim
    ones_bd = (head_of[:, None] == head_of[None, :]).astype(compute_dtype)

    if vmem_limit_bytes is None:
        vmem_limit_bytes = _default_vmem_limit()

    kernel = functools.partial(fused_block_kernel, num_heads=num_heads,
                               scale=scale, approx_recip=approx_recip)

    def build(buffered_weights):
        def wspec(shape):
            nd = len(shape)
            if buffered_weights:
                # grid-invariant: a single VMEM buffer is enough (halves the
                # weight footprint vs the default double buffering).
                return pl.BlockSpec(shape, lambda b, c: (0,) * nd,
                                    pipeline_mode=pl.Buffered(buffer_count=1))
            return pl.BlockSpec(shape, lambda b, c: (0,) * nd)

        in_specs = [
            pl.BlockSpec((1, N, C), lambda b, c: (b, 0, 0)),        # x
            wspec((1, C)), wspec((1, C)),                           # ln1 w, b
            wspec((C, C)), wspec((C, C)), wspec((C, C)),            # wq, wk, wv
            wspec((C, C)), wspec((1, C)),                           # wp, bp
            wspec((1, C)), wspec((1, C)),                           # ln2 w, b
            pl.BlockSpec((C, mlp_chunk), lambda b, c: (0, c)),      # w1 (hidden-tiled)
            pl.BlockSpec((1, mlp_chunk), lambda b, c: (0, c)),      # b1 (hidden-tiled)
            pl.BlockSpec((mlp_chunk, C), lambda b, c: (c, 0)),      # w2 (hidden-tiled)
            wspec((1, C)),                                          # b2
            wspec((C, C)),                                          # ones_bd mask
        ]
        return pl.pallas_call(
            kernel,
            out_shape=jax.ShapeDtypeStruct((B, N, C), x.dtype),
            grid=(B, n_chunks),
            in_specs=in_specs,
            out_specs=pl.BlockSpec((1, N, C), lambda b, c: (b, 0, 0)),
            scratch_shapes=[
                pltpu.VMEM((N, C), jnp.float32),                     # xr residual
                pltpu.VMEM((N, C), compute_dtype),                   # LN2 out (pre-cast)
                pltpu.VMEM((N, C), jnp.float32),                     # MLP accumulator
                pltpu.VMEM((num_heads * N, head_dim), jnp.float32),  # head-major stack
                pltpu.VMEM((N, C), jnp.float32),                     # torch-quirk restack
            ],
            compiler_params=pltpu.CompilerParams(
                dimension_semantics=("parallel", "arbitrary"),
                vmem_limit_bytes=vmem_limit_bytes,
            ),
        )

    args = (x,
            p["ln1_w"], p["ln1_b"], p["wq"], p["wk"], p["wv"],
            p["wp"], p["bp"], p["ln2_w"], p["ln2_b"],
            p["w1"], p["b1"], p["w2"], p["b2"], ones_bd)

    if single_buffer_weights:
        try:
            return build(True)(*args)
        except Exception:
            # pl.Buffered(1) not supported by this jax build: fall back to the
            # default double-buffered specs (costs VMEM, not correctness).
            pass
    return build(False)(*args)


# ---------------------------- pure-JAX reference ----------------------------

def ref_linear_block(x, p, *, num_heads, scale, eps=1e-5):
    def ln(z, w, b):
        mu = jnp.mean(z, axis=-1, keepdims=True)
        var = jnp.mean((z - mu) ** 2, axis=-1, keepdims=True)
        return (z - mu) / jnp.sqrt(var + eps) * w + b

    B, N, C = x.shape
    hd = C // num_heads
    x1 = ln(x, p["ln1_w"], p["ln1_b"])
    q = (x1 @ p["wq"]).reshape(B, N, num_heads, hd).transpose(0, 2, 1, 3)
    k = (x1 @ p["wk"]).reshape(B, N, num_heads, hd).transpose(0, 2, 1, 3)
    v = (x1 @ p["wv"]).reshape(B, N, num_heads, hd).transpose(0, 2, 1, 3)
    attn = jax.nn.softmax(jnp.swapaxes(k, -2, -1) * scale, axis=-1) @ v
    y = (jax.nn.softmax(q, axis=-1) @ attn).reshape(B, N, C)   # torch flatten quirk
    xr = x + (y @ p["wp"] + p["bp"])
    x2 = ln(xr, p["ln2_w"], p["ln2_b"])
    h = jax.nn.gelu(x2 @ p["w1"] + p["b1"], approximate=False)
    return xr + (h @ p["w2"] + p["b2"])


# ----------------------------------- main -----------------------------------

if __name__ == "__main__":
    B, N, C = 2, 8, 64
    num_heads = 4
    mlp_ratio = 4.0
    mlp_hidden = int(C * mlp_ratio)      # 256
    head_dim = C // num_heads
    scale = head_dim ** -0.5             # qk_scale=None default

    key = jax.random.PRNGKey(0)
    keys = jax.random.split(key, 13)
    f32 = jnp.float32

    params = dict(
        ln1_w=1.0 + 0.1 * jax.random.normal(keys[0], (1, C), f32),
        ln1_b=0.05 * jax.random.normal(keys[1], (1, C), f32),
        wq=0.05 * jax.random.normal(keys[2], (C, C), f32),       # qkv_bias=False
        wk=0.05 * jax.random.normal(keys[3], (C, C), f32),
        wv=0.05 * jax.random.normal(keys[4], (C, C), f32),
        wp=0.05 * jax.random.normal(keys[5], (C, C), f32),
        bp=0.02 * jax.random.normal(keys[6], (1, C), f32),
        ln2_w=1.0 + 0.1 * jax.random.normal(keys[7], (1, C), f32),
        ln2_b=0.05 * jax.random.normal(keys[8], (1, C), f32),
        w1=0.05 * jax.random.normal(keys[9], (C, mlp_hidden), f32),
        b1=0.02 * jax.random.normal(keys[10], (1, mlp_hidden), f32),
        w2=0.05 * jax.random.normal(keys[11], (mlp_hidden, C), f32),
        b2=0.02 * jax.random.normal(keys[12], (1, C), f32),
    )
    x = jax.random.normal(jax.random.PRNGKey(1), (B, N, C), f32)

    ref = ref_linear_block(x, params, num_heads=num_heads, scale=scale)

    # Strict f32 check: exact reciprocal; mlp_chunk=128 exercises the
    # hidden-tiled accumulation path (2 chunks per batch element).
    out = linear_block(x, params, num_heads=num_heads, scale=scale,
                       mlp_chunk=128, approx_recip=False)
    out = jax.block_until_ready(out)
    assert out.shape == (B, N, C)
    assert bool(jnp.all(jnp.isfinite(out)))
    err = float(jnp.max(jnp.abs(out - ref)))
    assert bool(jnp.allclose(out, ref, atol=2e-4, rtol=2e-4)), err

    # bf16 matmul path: weights pre-cast ONCE outside the call (no per-call
    # astype), EUP approx reciprocal for the softmax denominators.
    mat_names = ("wq", "wk", "wv", "wp", "w1", "w2")
    params_bf16 = {k: (v.astype(jnp.bfloat16) if k in mat_names else v)
                   for k, v in params.items()}
    out_bf16 = linear_block(x, params_bf16, num_heads=num_heads, scale=scale,
                            mlp_chunk=128, approx_recip=True)
    out_bf16 = jax.block_until_ready(out_bf16)
    assert bool(jnp.all(jnp.isfinite(out_bf16)))
    err_bf16 = float(jnp.max(jnp.abs(out_bf16 - ref)))
    assert bool(jnp.allclose(out_bf16, ref, atol=3e-2, rtol=3e-2)), err_bf16

    print("KERNEL_OK")
</pallas_src>

<mosaic_0001>
module attributes {stable_mosaic.version = 11 : i64} {
  func.func @fused_block_kernel(%arg0: i32, %arg1: i32, %arg2: memref<1x8x64xf32, #tpu.memory_space<vmem>>, %arg3: memref<1x64xf32, #tpu.memory_space<vmem>>, %arg4: memref<1x64xf32, #tpu.memory_space<vmem>>, %arg5: memref<64x64xf32, #tpu.memory_space<vmem>>, %arg6: memref<64x64xf32, #tpu.memory_space<vmem>>, %arg7: memref<64x64xf32, #tpu.memory_space<vmem>>, %arg8: memref<64x64xf32, #tpu.memory_space<vmem>>, %arg9: memref<1x64xf32, #tpu.memory_space<vmem>>, %arg10: memref<1x64xf32, #tpu.memory_space<vmem>>, %arg11: memref<1x64xf32, #tpu.memory_space<vmem>>, %arg12: memref<64x128xf32, #tpu.memory_space<vmem>>, %arg13: memref<1x128xf32, #tpu.memory_space<vmem>>, %arg14: memref<128x64xf32, #tpu.memory_space<vmem>>, %arg15: memref<1x64xf32, #tpu.memory_space<vmem>>, %arg16: memref<64x64xf32, #tpu.memory_space<vmem>>, %arg17: memref<1x8x64xf32, #tpu.memory_space<vmem>>, %arg18: memref<8x64xf32, #tpu.memory_space<vmem>>, %arg19: memref<8x64xf32, #tpu.memory_space<vmem>>, %arg20: memref<8x64xf32, #tpu.memory_space<vmem>>, %arg21: memref<32x16xf32, #tpu.memory_space<vmem>>, %arg22: memref<8x64xf32, #tpu.memory_space<vmem>>) attributes {dimension_semantics = [#tpu.dimension_semantics<parallel>, #tpu.dimension_semantics<arbitrary>], iteration_bounds = array<i64: 2, 2>, scalar_prefetch = 0 : i64, scratch_operands = 5 : i64, tpu.core_type = #tpu.core_type<tc>, window_params = [{transform_indices = @transform_0, window_bounds = array<i64: 1, 8, 64>}, {pipeline_mode = #tpu.pipeline_mode<synchronous>, transform_indices = @transform_1, window_bounds = array<i64: 1, 64>}, {pipeline_mode = #tpu.pipeline_mode<synchronous>, transform_indices = @transform_2, window_bounds = array<i64: 1, 64>}, {pipeline_mode = #tpu.pipeline_mode<synchronous>, transform_indices = @transform_3, window_bounds = array<i64: 64, 64>}, {pipeline_mode = #tpu.pipeline_mode<synchronous>, transform_indices = @transform_4, window_bounds = array<i64: 64, 64>}, {pipeline_mode = #tpu.pipeline_mode<synchronous>, transform_indices = @transform_5, window_bounds = array<i64: 64, 64>}, {pipeline_mode = #tpu.pipeline_mode<synchronous>, transform_indices = @transform_6, window_bounds = array<i64: 64, 64>}, {pipeline_mode = #tpu.pipeline_mode<synchronous>, transform_indices = @transform_7, window_bounds = array<i64: 1, 64>}, {pipeline_mode = #tpu.pipeline_mode<synchronous>, transform_indices = @transform_8, window_bounds = array<i64: 1, 64>}, {pipeline_mode = #tpu.pipeline_mode<synchronous>, transform_indices = @transform_9, window_bounds = array<i64: 1, 64>}, {transform_indices = @transform_10, window_bounds = array<i64: 64, 128>}, {transform_indices = @transform_11, window_bounds = array<i64: 1, 128>}, {transform_indices = @transform_12, window_bounds = array<i64: 128, 64>}, {pipeline_mode = #tpu.pipeline_mode<synchronous>, transform_indices = @transform_13, window_bounds = array<i64: 1, 64>}, {pipeline_mode = #tpu.pipeline_mode<synchronous>, transform_indices = @transform_14, window_bounds = array<i64: 64, 64>}, {transform_indices = @transform_15, window_bounds = array<i64: 1, 8, 64>}]} {
    %c0_i32 = arith.constant 0 : i32
    %0 = arith.cmpi eq, %arg1, %c0_i32 : i32
    %1 = arith.extui %0 : i1 to i32
    %c0_i32_0 = arith.constant 0 : i32
    %2 = arith.cmpi ne, %1, %c0_i32_0 : i32
    scf.if %2 {
      %c0_17 = arith.constant 0 : index
      %c0_18 = arith.constant 0 : index
      %c0_19 = arith.constant 0 : index
      %26 = vector.load %arg2[%c0_17, %c0_18, %c0_19] : memref<1x8x64xf32, #tpu.memory_space<vmem>>, vector<1x8x64xf32>
      %27 = vector.shape_cast %26 : vector<1x8x64xf32> to vector<8x64xf32>
      %c0_20 = arith.constant 0 : index
      %c0_21 = arith.constant 0 : index
      %28 = vector.load %arg3[%c0_20, %c0_21] : memref<1x64xf32, #tpu.memory_space<vmem>>, vector<1x64xf32>
      %c0_22 = arith.constant 0 : index
      %c0_23 = arith.constant 0 : index
      %29 = vector.load %arg4[%c0_22, %c0_23] : memref<1x64xf32, #tpu.memory_space<vmem>>, vector<1x64xf32>
      %cst_24 = arith.constant dense<0.000000e+00> : vector<8xf32>
      %30 = vector.multi_reduction <add>, %27, %cst_24 [1] : vector<8x64xf32> to vector<8xf32>
      %31 = vector.shape_cast %30 : vector<8xf32> to vector<8x1xf32>
      %cst_25 = arith.constant 6.400000e+01 : f32
      %32 = vector.broadcast %cst_25 : f32 to vector<8x1xf32>
      %33 = arith.divf %31, %32 : vector<8x1xf32>
      %34 = vector.broadcast %33 : vector<8x1xf32> to vector<8x64xf32>
      %35 = arith.subf %27, %34 : vector<8x64xf32>
      %36 = arith.mulf %35, %35 : vector<8x64xf32>
      %cst_26 = arith.constant dense<0.000000e+00> : vector<8xf32>
      %37 = vector.multi_reduction <add>, %36, %cst_26 [1] : vector<8x64xf32> to vector<8xf32>
      %38 = vector.shape_cast %37 : vector<8xf32> to vector<8x1xf32>
      %cst_27 = arith.constant 6.400000e+01 : f32
      %39 = vector.broadcast %cst_27 : f32 to vector<8x1xf32>
      %40 = arith.divf %38, %39 : vector<8x1xf32>
      %41 = vector.broadcast %33 : vector<8x1xf32> to vector<8x64xf32>
      %42 = arith.subf %27, %41 : vector<8x64xf32>
      %cst_28 = arith.constant 9.99999974E-6 : f32
      %43 = vector.broadcast %cst_28 : f32 to vector<8x1xf32>
      %44 = arith.addf %40, %43 : vector<8x1xf32>
      %45 = math.rsqrt %44 : vector<8x1xf32>
      %46 = vector.broadcast %45 : vector<8x1xf32> to vector<8x64xf32>
      %47 = arith.mulf %42, %46 : vector<8x64xf32>
      %48 = vector.broadcast %28 : vector<1x64xf32> to vector<8x64xf32>
      %49 = arith.mulf %47, %48 : vector<8x64xf32>
      %50 = vector.broadcast %29 : vector<1x64xf32> to vector<8x64xf32>
      %51 = arith.addf %49, %50 : vector<8x64xf32>
      %c0_29 = arith.constant 0 : index
      %c0_30 = arith.constant 0 : index
      %52 = vector.load %arg5[%c0_29, %c0_30] : memref<64x64xf32, #tpu.memory_space<vmem>>, vector<64x64xf32>
      %cst_31 = arith.constant dense<0.000000e+00> : vector<8x64xf32>
      %53 = tpu.matmul %51, %52, %cst_31 {dimension_numbers = #tpu.dot_dimension_numbers<[1], [0], [0], [1], [0, 0, 1, 1], [], []>} : vector<8x64xf32>, vector<64x64xf32>, vector<8x64xf32> -> vector<8x64xf32>
      %c0_32 = arith.constant 0 : index
      %c0_33 = arith.constant 0 : index
      %54 = vector.load %arg6[%c0_32, %c0_33] : memref<64x64xf32, #tpu.memory_space<vmem>>, vector<64x64xf32>
      %cst_34 = arith.constant dense<0.000000e+00> : vector<8x64xf32>
      %55 = tpu.matmul %51, %54, %cst_34 {dimension_numbers = #tpu.dot_dimension_numbers<[1], [0], [0], [1], [0, 0, 1, 1], [], []>} : vector<8x64xf32>, vector<64x64xf32>, vector<8x64xf32> -> vector<8x64xf32>
      %c0_35 = arith.constant 0 : index
      %c0_36 = arith.constant 0 : index
      %56 = vector.load %arg7[%c0_35, %c0_36] : memref<64x64xf32, #tpu.memory_space<vmem>>, vector<64x64xf32>
      %cst_37 = arith.constant dense<0.000000e+00> : vector<8x64xf32>
      %57 = tpu.matmul %51, %56, %cst_37 {dimension_numbers = #tpu.dot_dimension_numbers<[1], [0], [0], [1], [0, 0, 1, 1], [], []>} : vector<8x64xf32>, vector<64x64xf32>, vector<8x64xf32> -> vector<8x64xf32>
      %cst_38 = arith.constant 2.500000e-01 : f32
      %58 = vector.broadcast %cst_38 : f32 to vector<8x64xf32>
      %59 = arith.mulf %55, %58 : vector<8x64xf32>
      %cst_39 = arith.constant dense<0xFF800000> : vector<64xf32>
      %60 = vector.multi_reduction <maximumf>, %59, %cst_39 [0] : vector<8x64xf32> to vector<64xf32>
      %61 = vector.shape_cast %60 : vector<64xf32> to vector<1x64xf32>
      %62 = vector.broadcast %61 : vector<1x64xf32> to vector<8x64xf32>
      %63 = arith.subf %59, %62 : vector<8x64xf32>
      %64 = math.exp %63 : vector<8x64xf32>
      %cst_40 = arith.constant dense<0.000000e+00> : vector<64xf32>
      %65 = vector.multi_reduction <add>, %64, %cst_40 [0] : vector<8x64xf32> to vector<64xf32>
      %66 = vector.shape_cast %65 : vector<64xf32> to vector<1x64xf32>
      %67 = vector.broadcast %66 : vector<1x64xf32> to vector<8x64xf32>
      %68 = arith.divf %64, %67 : vector<8x64xf32>
      %c0_41 = arith.constant 0 : index
      %c0_42 = arith.constant 0 : index
      %69 = vector.load %arg16[%c0_41, %c0_42] : memref<64x64xf32, #tpu.memory_space<vmem>>, vector<64x64xf32>
      %cst_43 = arith.constant dense<0.000000e+00> : vector<64x64xf32>
      %70 = tpu.matmul %68, %57, %cst_43 {dimension_numbers = #tpu.dot_dimension_numbers<[0], [0], [1], [1], [0, 1, 1, 1], [], []>} : vector<8x64xf32>, vector<8x64xf32>, vector<64x64xf32> -> vector<64x64xf32>
      %71 = arith.mulf %70, %69 : vector<64x64xf32>
      %cst_44 = arith.constant dense<0xFF800000> : vector<8xf32>
      %72 = vector.multi_reduction <maximumf>, %53, %cst_44 [1] : vector<8x64xf32> to vector<8xf32>
      %73 = vector.shape_cast %72 : vector<8xf32> to vector<8x1xf32>
      %74 = vector.broadcast %73 : vector<8x1xf32> to vector<8x64xf32>
      %75 = arith.subf %53, %74 : vector<8x64xf32>
      %76 = math.exp %75 : vector<8x64xf32>
      %cst_45 = arith.constant dense<0.000000e+00> : vector<8x64xf32>
      %77 = tpu.matmul %76, %69, %cst_45 {dimension_numbers = #tpu.dot_dimension_numbers<[1], [0], [0], [1], [0, 0, 1, 1], [], []>} : vector<8x64xf32>, vector<64x64xf32>, vector<8x64xf32> -> vector<8x64xf32>
      %78 = arith.divf %76, %77 : vector<8x64xf32>
      %cst_46 = arith.constant dense<0.000000e+00> : vector<8x64xf32>
      %79 = tpu.matmul %78, %71, %cst_46 {dimension_numbers = #tpu.dot_dimension_numbers<[1], [0], [0], [1], [0, 0, 1, 1], [], []>} : vector<8x64xf32>, vector<64x64xf32>, vector<8x64xf32> -> vector<8x64xf32>
      %80 = vector.extract_strided_slice %79 {offsets = [0, 0], sizes = [8, 16], strides = [1, 1]} : vector<8x64xf32> to vector<8x16xf32>
      %c0_47 = arith.constant 0 : index
      %c0_48 = arith.constant 0 : index
      %81 = vector.load %arg21[%c0_47, %c0_48] : memref<32x16xf32, #tpu.memory_space<vmem>>, vector<8x16xf32>
      tpu.vector_store %arg21[%c0_47, %c0_48], %80 {strides = array<i32>} : memref<32x16xf32, #tpu.memory_space<vmem>>, vector<8x16xf32>,
      %82 = vector.extract_strided_slice %79 {offsets = [0, 16], sizes = [8, 16], strides = [1, 1]} : vector<8x64xf32> to vector<8x16xf32>
      %c8 = arith.constant 8 : index
      %c0_49 = arith.constant 0 : index
      %83 = vector.load %arg21[%c8, %c0_49] : memref<32x16xf32, #tpu.memory_space<vmem>>, vector<8x16xf32>
      tpu.vector_store %arg21[%c8, %c0_49], %82 {strides = array<i32>} : memref<32x16xf32, #tpu.memory_space<vmem>>, vector<8x16xf32>,
      %84 = vector.extract_strided_slice %79 {offsets = [0, 32], sizes = [8, 16], strides = [1, 1]} : vector<8x64xf32> to vector<8x16xf32>
      %c16 = arith.constant 16 : index
      %c0_50 = arith.constant 0 : index
      %85 = vector.load %arg21[%c16, %c0_50] : memref<32x16xf32, #tpu.memory_space<vmem>>, vector<8x16xf32>
      tpu.vector_store %arg21[%c16, %c0_50], %84 {strides = array<i32>} : memref<32x16xf32, #tpu.memory_space<vmem>>, vector<8x16xf32>,
      %86 = vector.extract_strided_slice %79 {offsets = [0, 48], sizes = [8, 16], strides = [1, 1]} : vector<8x64xf32> to vector<8x16xf32>
      %c24 = arith.constant 24 : index
      %c0_51 = arith.constant 0 : index
      %87 = vector.load %arg21[%c24, %c0_51] : memref<32x16xf32, #tpu.memory_space<vmem>>, vector<8x16xf32>
      tpu.vector_store %arg21[%c24, %c0_51], %86 {strides = array<i32>} : memref<32x16xf32, #tpu.memory_space<vmem>>, vector<8x16xf32>,
      %c0_52 = arith.constant 0 : index
      %c0_53 = arith.constant 0 : index
      %88 = tpu.strided_load %arg21[%c0_52, %c0_53] {strides = array<i32: 4, 1>} : memref<32x16xf32, #tpu.memory_space<vmem>>, vector<8x16xf32>
      %c0_54 = arith.constant 0 : index
      %c0_55 = arith.constant 0 : index
      %89 = vector.load %arg22[%c0_54, %c0_55] : memref<8x64xf32, #tpu.memory_space<vmem>>, vector<8x16xf32>
      tpu.vector_store %arg22[%c0_54, %c0_55], %88 {strides = array<i32>} : memref<8x64xf32, #tpu.memory_space<vmem>>, vector<8x16xf32>,
      %c1 = arith.constant 1 : index
      %c0_56 = arith.constant 0 : index
      %90 = tpu.strided_load %arg21[%c1, %c0_56] {strides = array<i32: 4, 1>} : memref<32x16xf32, #tpu.memory_space<vmem>>, vector<8x16xf32>
      %c0_57 = arith.constant 0 : index
      %c16_58 = arith.constant 16 : index
      %91 = vector.load %arg22[%c0_57, %c16_58] : memref<8x64xf32, #tpu.memory_space<vmem>>, vector<8x16xf32>
      tpu.vector_store %arg22[%c0_57, %c16_58], %90 {strides = array<i32>} : memref<8x64xf32, #tpu.memory_space<vmem>>, vector<8x16xf32>,
      %c2 = arith.constant 2 : index
      %c0_59 = arith.constant 0 : index
      %92 = tpu.strided_load %arg21[%c2, %c0_59] {strides = array<i32: 4, 1>} : memref<32x16xf32, #tpu.memory_space<vmem>>, vector<8x16xf32>
      %c0_60 = arith.constant 0 : index
      %c32 = arith.constant 32 : index
      %93 = vector.load %arg22[%c0_60, %c32] : memref<8x64xf32, #tpu.memory_space<vmem>>, vector<8x16xf32>
      tpu.vector_store %arg22[%c0_60, %c32], %92 {strides = array<i32>} : memref<8x64xf32, #tpu.memory_space<vmem>>, vector<8x16xf32>,
      %c3 = arith.constant 3 : index
      %c0_61 = arith.constant 0 : index
      %94 = tpu.strided_load %arg21[%c3, %c0_61] {strides = array<i32: 4, 1>} : memref<32x16xf32, #tpu.memory_space<vmem>>, vector<8x16xf32>
      %c0_62 = arith.constant 0 : index
      %c48 = arith.constant 48 : index
      %95 = vector.load %arg22[%c0_62, %c48] : memref<8x64xf32, #tpu.memory_space<vmem>>, vector<8x16xf32>
      tpu.vector_store %arg22[%c0_62, %c48], %94 {strides = array<i32>} : memref<8x64xf32, #tpu.memory_space<vmem>>, vector<8x16xf32>,
      %c0_63 = arith.constant 0 : index
      %c0_64 = arith.constant 0 : index
      %96 = vector.load %arg22[%c0_63, %c0_64] : memref<8x64xf32, #tpu.memory_space<vmem>>, vector<8x64xf32>
      %c0_65 = arith.constant 0 : index
      %c0_66 = arith.constant 0 : index
      %97 = vector.load %arg8[%c0_65, %c0_66] : memref<64x64xf32, #tpu.memory_space<vmem>>, vector<64x64xf32>
      %cst_67 = arith.constant dense<0.000000e+00> : vector<8x64xf32>
      %98 = tpu.matmul %96, %97, %cst_67 {dimension_numbers = #tpu.dot_dimension_numbers<[1], [0], [0], [1], [0, 0, 1, 1], [], []>} : vector<8x64xf32>, vector<64x64xf32>, vector<8x64xf32> -> vector<8x64xf32>
      %c0_68 = arith.constant 0 : index
      %c0_69 = arith.constant 0 : index
      %99 = vector.load %arg9[%c0_68, %c0_69] : memref<1x64xf32, #tpu.memory_space<vmem>>, vector<1x64xf32>
      %100 = vector.broadcast %99 : vector<1x64xf32> to vector<8x64xf32>
      %101 = arith.addf %98, %100 : vector<8x64xf32>
      %102 = arith.addf %27, %101 : vector<8x64xf32>
      %c0_70 = arith.constant 0 : index
      %c0_71 = arith.constant 0 : index
      %103 = vector.load %arg18[%c0_70, %c0_71] : memref<8x64xf32, #tpu.memory_space<vmem>>, vector<8x64xf32>
      tpu.vector_store %arg18[%c0_70, %c0_71], %102 {strides = array<i32>} : memref<8x64xf32, #tpu.memory_space<vmem>>, vector<8x64xf32>,
      %c0_72 = arith.constant 0 : index
      %c0_73 = arith.constant 0 : index
      %104 = vector.load %arg10[%c0_72, %c0_73] : memref<1x64xf32, #tpu.memory_space<vmem>>, vector<1x64xf32>
      %c0_74 = arith.constant 0 : index
      %c0_75 = arith.constant 0 : index
      %105 = vector.load %arg11[%c0_74, %c0_75] : memref<1x64xf32, #tpu.memory_space<vmem>>, vector<1x64xf32>
      %cst_76 = arith.constant dense<0.000000e+00> : vector<8xf32>
      %106 = vector.multi_reduction <add>, %102, %cst_76 [1] : vector<8x64xf32> to vector<8xf32>
      %107 = vector.shape_cast %106 : vector<8xf32> to vector<8x1xf32>
      %cst_77 = arith.constant 6.400000e+01 : f32
      %108 = vector.broadcast %cst_77 : f32 to vector<8x1xf32>
      %109 = arith.divf %107, %108 : vector<8x1xf32>
      %110 = vector.broadcast %109 : vector<8x1xf32> to vector<8x64xf32>
      %111 = arith.subf %102, %110 : vector<8x64xf32>
      %112 = arith.mulf %111, %111 : vector<8x64xf32>
      %cst_78 = arith.constant dense<0.000000e+00> : vector<8xf32>
      %113 = vector.multi_reduction <add>, %112, %cst_78 [1] : vector<8x64xf32> to vector<8xf32>
      %114 = vector.shape_cast %113 : vector<8xf32> to vector<8x1xf32>
      %cst_79 = arith.constant 6.400000e+01 : f32
      %115 = vector.broadcast %cst_79 : f32 to vector<8x1xf32>
      %116 = arith.divf %114, %115 : vector<8x1xf32>
      %117 = vector.broadcast %109 : vector<8x1xf32> to vector<8x64xf32>
      %118 = arith.subf %102, %117 : vector<8x64xf32>
      %cst_80 = arith.constant 9.99999974E-6 : f32
      %119 = vector.broadcast %cst_80 : f32 to vector<8x1xf32>
      %120 = arith.addf %116, %119 : vector<8x1xf32>
      %121 = math.rsqrt %120 : vector<8x1xf32>
      %122 = vector.broadcast %121 : vector<8x1xf32> to vector<8x64xf32>
      %123 = arith.mulf %118, %122 : vector<8x64xf32>
      %124 = vector.broadcast %104 : vector<1x64xf32> to vector<8x64xf32>
      %125 = arith.mulf %123, %124 : vector<8x64xf32>
      %126 = vector.broadcast %105 : vector<1x64xf32> to vector<8x64xf32>
      %127 = arith.addf %125, %126 : vector<8x64xf32>
      %c0_81 = arith.constant 0 : index
      %c0_82 = arith.constant 0 : index
      %128 = vector.load %arg19[%c0_81, %c0_82] : memref<8x64xf32, #tpu.memory_space<vmem>>, vector<8x64xf32>
      tpu.vector_store %arg19[%c0_81, %c0_82], %127 {strides = array<i32>} : memref<8x64xf32, #tpu.memory_space<vmem>>, vector<8x64xf32>,
      %cst_83 = arith.constant 0.000000e+00 : f32
      %129 = vector.broadcast %cst_83 : f32 to vector<8x64xf32>
      %c0_84 = arith.constant 0 : index
      %c0_85 = arith.constant 0 : index
      %130 = vector.load %arg20[%c0_84, %c0_85] : memref<8x64xf32, #tpu.memory_space<vmem>>, vector<8x64xf32>
      tpu.vector_store %arg20[%c0_84, %c0_85], %129 {strides = array<i32>} : memref<8x64xf32, #tpu.memory_space<vmem>>, vector<8x64xf32>,
    } else {
    }
    %c0 = arith.constant 0 : index
    %c0_1 = arith.constant 0 : index
    %3 = vector.load %arg19[%c0, %c0_1] : memref<8x64xf32, #tpu.memory_space<vmem>>, vector<8x64xf32>
    %c0_2 = arith.constant 0 : index
    %c0_3 = arith.constant 0 : index
    %4 = vector.load %arg12[%c0_2, %c0_3] : memref<64x128xf32, #tpu.memory_space<vmem>>, vector<64x128xf32>
    %cst = arith.constant dense<0.000000e+00> : vector<8x128xf32>
    %5 = tpu.matmul %3, %4, %cst {dimension_numbers = #tpu.dot_dimension_numbers<[1], [0], [0], [1], [0, 0, 1, 1], [], []>} : vector<8x64xf32>, vector<64x128xf32>, vector<8x128xf32> -> vector<8x128xf32>
    %c0_4 = arith.constant 0 : index
    %c0_5 = arith.constant 0 : index
    %6 = vector.load %arg13[%c0_4, %c0_5] : memref<1x128xf32, #tpu.memory_space<vmem>>, vector<1x128xf32>
    %7 = vector.broadcast %6 : vector<1x128xf32> to vector<8x128xf32>
    %8 = arith.addf %5, %7 : vector<8x128xf32>
    %cst_6 = arith.constant 5.000000e-01 : f32
    %9 = vector.broadcast %cst_6 : f32 to vector<8x128xf32>
    %10 = arith.mulf %9, %8 : vector<8x128xf32>
    %cst_7 = arith.constant 2.000000e+00 : f32
    %11 = math.sqrt %cst_7 : f32
    %12 = vector.broadcast %11 : f32 to vector<8x128xf32>
    %13 = arith.divf %8, %12 : vector<8x128xf32>
    %14 = math.erf %13 : vector<8x128xf32>
    %cst_8 = arith.constant 1.000000e+00 : f32
    %15 = vector.broadcast %cst_8 : f32 to vector<8x128xf32>
    %16 = arith.addf %15, %14 : vector<8x128xf32>
    %17 = arith.mulf %10, %16 : vector<8x128xf32>
    %c0_9 = arith.constant 0 : index
    %c0_10 = arith.constant 0 : index
    %18 = vector.load %arg20[%c0_9, %c0_10] : memref<8x64xf32, #tpu.memory_space<vmem>>, vector<8x64xf32>
    %c0_11 = arith.constant 0 : index
    %c0_12 = arith.constant 0 : index
    %19 = vector.load %arg14[%c0_11, %c0_12] : memref<128x64xf32, #tpu.memory_space<vmem>>, vector<128x64xf32>
    %cst_13 = arith.constant dense<0.000000e+00> : vector<8x64xf32>
    %20 = tpu.matmul %17, %19, %cst_13 {dimension_numbers = #tpu.dot_dimension_numbers<[1], [0], [0], [1], [0, 0, 1, 1], [], []>} : vector<8x128xf32>, vector<128x64xf32>, vector<8x64xf32> -> vector<8x64xf32>
    %21 = arith.addf %18, %20 : vector<8x64xf32>
    %c0_14 = arith.constant 0 : index
    %c0_15 = arith.constant 0 : index
    %22 = vector.load %arg20[%c0_14, %c0_15] : memref<8x64xf32, #tpu.memory_space<vmem>>, vector<8x64xf32>
    tpu.vector_store %arg20[%c0_14, %c0_15], %21 {strides = array<i32>} : memref<8x64xf32, #tpu.memory_space<vmem>>, vector<8x64xf32>,
    %c1_i32 = arith.constant 1 : i32
    %23 = arith.cmpi eq, %arg1, %c1_i32 : i32
    %24 = arith.extui %23 : i1 to i32
    %c0_i32_16 = arith.constant 0 : i32
    %25 = arith.cmpi ne, %24, %c0_i32_16 : i32
    scf.if %25 {
      %c0_17 = arith.constant 0 : index
      %c0_18 = arith.constant 0 : index
      %26 = vector.load %arg18[%c0_17, %c0_18] : memref<8x64xf32, #tpu.memory_space<vmem>>, vector<8x64xf32>
      %c0_19 = arith.constant 0 : index
      %c0_20 = arith.constant 0 : index
      %27 = vector.load %arg20[%c0_19, %c0_20] : memref<8x64xf32, #tpu.memory_space<vmem>>, vector<8x64xf32>
      %28 = arith.addf %26, %27 : vector<8x64xf32>
      %c0_21 = arith.constant 0 : index
      %c0_22 = arith.constant 0 : index
      %29 = vector.load %arg15[%c0_21, %c0_22] : memref<1x64xf32, #tpu.memory_space<vmem>>, vector<1x64xf32>
      %30 = vector.broadcast %29 : vector<1x64xf32> to vector<8x64xf32>
      %31 = arith.addf %28, %30 : vector<8x64xf32>
      %c0_23 = arith.constant 0 : index
      %c0_24 = arith.constant 0 : index
      %c0_25 = arith.constant 0 : index
      %32 = vector.load %arg17[%c0_23, %c0_24, %c0_25] : memref<1x8x64xf32, #tpu.memory_space<vmem>>, vector<1x8x64xf32>
      %33 = vector.shape_cast %32 : vector<1x8x64xf32> to vector<8x64xf32>
      %34 = vector.shape_cast %31 : vector<8x64xf32> to vector<1x8x64xf32>
      tpu.vector_store %arg17[%c0_23, %c0_24, %c0_25], %34 {strides = array<i32>} : memref<1x8x64xf32, #tpu.memory_space<vmem>>, vector<1x8x64xf32>,
    } else {
    }
    return
  }
  func.func @transform_0(%arg0: i32, %arg1: i32) -> (i32, i32, i32) {
    %c0_i32 = arith.constant 0 : i32
    %c0_i32_0 = arith.constant 0 : i32
    %c0_i32_1 = arith.constant 0 : i32
    return %arg0, %c0_i32, %c0_i32_0 : i32, i32, i32
  }
  func.func @transform_1(%arg0: i32, %arg1: i32) -> (i32, i32) {
    %c0_i32 = arith.constant 0 : i32
    %c0_i32_0 = arith.constant 0 : i32
    %c0_i32_1 = arith.constant 0 : i32
    return %c0_i32, %c0_i32_0 : i32, i32
  }
  func.func @transform_2(%arg0: i32, %arg1: i32) -> (i32, i32) {
    %c0_i32 = arith.constant 0 : i32
    %c0_i32_0 = arith.constant 0 : i32
    %c0_i32_1 = arith.constant 0 : i32
    return %c0_i32, %c0_i32_0 : i32, i32
  }
  func.func @transform_3(%arg0: i32, %arg1: i32) -> (i32, i32) {
    %c0_i32 = arith.constant 0 : i32
    %c0_i32_0 = arith.constant 0 : i32
    %c0_i32_1 = arith.constant 0 : i32
    return %c0_i32, %c0_i32_0 : i32, i32
  }
  func.func @transform_4(%arg0: i32, %arg1: i32) -> (i32, i32) {
    %c0_i32 = arith.constant 0 : i32
    %c0_i32_0 = arith.constant 0 : i32
    %c0_i32_1 = arith.constant 0 : i32
    return %c0_i32, %c0_i32_0 : i32, i32
  }
  func.func @transform_5(%arg0: i32, %arg1: i32) -> (i32, i32) {
    %c0_i32 = arith.constant 0 : i32
    %c0_i32_0 = arith.constant 0 : i32
    %c0_i32_1 = arith.constant 0 : i32
    return %c0_i32, %c0_i32_0 : i32, i32
  }
  func.func @transform_6(%arg0: i32, %arg1: i32) -> (i32, i32) {
    %c0_i32 = arith.constant 0 : i32
    %c0_i32_0 = arith.constant 0 : i32
    %c0_i32_1 = arith.constant 0 : i32
    return %c0_i32, %c0_i32_0 : i32, i32
  }
  func.func @transform_7(%arg0: i32, %arg1: i32) -> (i32, i32) {
    %c0_i32 = arith.constant 0 : i32
    %c0_i32_0 = arith.constant 0 : i32
    %c0_i32_1 = arith.constant 0 : i32
    return %c0_i32, %c0_i32_0 : i32, i32
  }
  func.func @transform_8(%arg0: i32, %arg1: i32) -> (i32, i32) {
    %c0_i32 = arith.constant 0 : i32
    %c0_i32_0 = arith.constant 0 : i32
    %c0_i32_1 = arith.constant 0 : i32
    return %c0_i32, %c0_i32_0 : i32, i32
  }
  func.func @transform_9(%arg0: i32, %arg1: i32) -> (i32, i32) {
    %c0_i32 = arith.constant 0 : i32
    %c0_i32_0 = arith.constant 0 : i32
    %c0_i32_1 = arith.constant 0 : i32
    return %c0_i32, %c0_i32_0 : i32, i32
  }
  func.func @transform_10(%arg0: i32, %arg1: i32) -> (i32, i32) {
    %c0_i32 = arith.constant 0 : i32
    %c0_i32_0 = arith.constant 0 : i32
    return %c0_i32, %arg1 : i32, i32
  }
  func.func @transform_11(%arg0: i32, %arg1: i32) -> (i32, i32) {
    %c0_i32 = arith.constant 0 : i32
    %c0_i32_0 = arith.constant 0 : i32
    return %c0_i32, %arg1 : i32, i32
  }
  func.func @transform_12(%arg0: i32, %arg1: i32) -> (i32, i32) {
    %c0_i32 = arith.constant 0 : i32
    %c0_i32_0 = arith.constant 0 : i32
    return %arg1, %c0_i32 : i32, i32
  }
  func.func @transform_13(%arg0: i32, %arg1: i32) -> (i32, i32) {
    %c0_i32 = arith.constant 0 : i32
    %c0_i32_0 = arith.constant 0 : i32
    %c0_i32_1 = arith.constant 0 : i32
    return %c0_i32, %c0_i32_0 : i32, i32
  }
  func.func @transform_14(%arg0: i32, %arg1: i32) -> (i32, i32) {
    %c0_i32 = arith.constant 0 : i32
    %c0_i32_0 = arith.constant 0 : i32
    %c0_i32_1 = arith.constant 0 : i32
    return %c0_i32, %c0_i32_0 : i32, i32
  }
  func.func @transform_15(%arg0: i32, %arg1: i32) -> (i32, i32, i32) {
    %c0_i32 = arith.constant 0 : i32
    %c0_i32_0 = arith.constant 0 : i32
    %c0_i32_1 = arith.constant 0 : i32
    return %arg0, %c0_i32, %c0_i32_0 : i32, i32, i32
  }
}

module attributes {stable_mosaic.version = 11 : i64} {
  func.func @fused_block_kernel(%arg0: i32, %arg1: i32, %arg2: memref<1x8x64xf32, #tpu.memory_space<vmem>>, %arg3: memref<1x64xf32, #tpu.memory_space<vmem>>, %arg4: memref<1x64xf32, #tpu.memory_space<vmem>>, %arg5: memref<64x64xf32, #tpu.memory_space<vmem>>, %arg6: memref<64x64xf32, #tpu.memory_space<vmem>>, %arg7: memref<64x64xf32, #tpu.memory_space<vmem>>, %arg8: memref<64x64xf32, #tpu.memory_space<vmem>>, %arg9: memref<1x64xf32, #tpu.memory_space<vmem>>, %arg10: memref<1x64xf32, #tpu.memory_space<vmem>>, %arg11: memref<1x64xf32, #tpu.memory_space<vmem>>, %arg12: memref<64x128xf32, #tpu.memory_space<vmem>>, %arg13: memref<1x128xf32, #tpu.memory_space<vmem>>, %arg14: memref<128x64xf32, #tpu.memory_space<vmem>>, %arg15: memref<1x64xf32, #tpu.memory_space<vmem>>, %arg16: memref<64x64xf32, #tpu.memory_space<vmem>>, %arg17: memref<1x8x64xf32, #tpu.memory_space<vmem>>, %arg18: memref<8x64xf32, #tpu.memory_space<vmem>>, %arg19: memref<8x64xf32, #tpu.memory_space<vmem>>, %arg20: memref<8x64xf32, #tpu.memory_space<vmem>>, %arg21: memref<32x16xf32, #tpu.memory_space<vmem>>, %arg22: memref<8x64xf32, #tpu.memory_space<vmem>>) attributes {dimension_semantics = [#tpu.dimension_semantics<parallel>, #tpu.dimension_semantics<arbitrary>], iteration_bounds = array<i64: 2, 2>, scalar_prefetch = 0 : i64, scratch_operands = 5 : i64, tpu.core_type = #tpu.core_type<tc>, window_params = [{transform_indices = @transform_0, window_bounds = array<i64: 1, 8, 64>}, {pipeline_mode = #tpu.pipeline_mode<synchronous>, transform_indices = @transform_1, window_bounds = array<i64: 1, 64>}, {pipeline_mode = #tpu.pipeline_mode<synchronous>, transform_indices = @transform_2, window_bounds = array<i64: 1, 64>}, {pipeline_mode = #tpu.pipeline_mode<synchronous>, transform_indices = @transform_3, window_bounds = array<i64: 64, 64>}, {pipeline_mode = #tpu.pipeline_mode<synchronous>, transform_indices = @transform_4, window_bounds = array<i64: 64, 64>}, {pipeline_mode = #tpu.pipeline_mode<synchronous>, transform_indices = @transform_5, window_bounds = array<i64: 64, 64>}, {pipeline_mode = #tpu.pipeline_mode<synchronous>, transform_indices = @transform_6, window_bounds = array<i64: 64, 64>}, {pipeline_mode = #tpu.pipeline_mode<synchronous>, transform_indices = @transform_7, window_bounds = array<i64: 1, 64>}, {pipeline_mode = #tpu.pipeline_mode<synchronous>, transform_indices = @transform_8, window_bounds = array<i64: 1, 64>}, {pipeline_mode = #tpu.pipeline_mode<synchronous>, transform_indices = @transform_9, window_bounds = array<i64: 1, 64>}, {transform_indices = @transform_10, window_bounds = array<i64: 64, 128>}, {transform_indices = @transform_11, window_bounds = array<i64: 1, 128>}, {transform_indices = @transform_12, window_bounds = array<i64: 128, 64>}, {pipeline_mode = #tpu.pipeline_mode<synchronous>, transform_indices = @transform_13, window_bounds = array<i64: 1, 64>}, {pipeline_mode = #tpu.pipeline_mode<synchronous>, transform_indices = @transform_14, window_bounds = array<i64: 64, 64>}, {transform_indices = @transform_15, window_bounds = array<i64: 1, 8, 64>}]} {
    %c0_i32 = arith.constant 0 : i32
    %0 = arith.cmpi eq, %arg1, %c0_i32 : i32
    %1 = arith.extui %0 : i1 to i32
    %c0_i32_0 = arith.constant 0 : i32
    %2 = arith.cmpi ne, %1, %c0_i32_0 : i32
    scf.if %2 {
      %c0_17 = arith.constant 0 : index
      %c0_18 = arith.constant 0 : index
      %c0_19 = arith.constant 0 : index
      %26 = vector.load %arg2[%c0_17, %c0_18, %c0_19] : memref<1x8x64xf32, #tpu.memory_space<vmem>>, vector<1x8x64xf32>
      %27 = vector.shape_cast %26 : vector<1x8x64xf32> to vector<8x64xf32>
      %c0_20 = arith.constant 0 : index
      %c0_21 = arith.constant 0 : index
      %28 = vector.load %arg3[%c0_20, %c0_21] : memref<1x64xf32, #tpu.memory_space<vmem>>, vector<1x64xf32>
      %c0_22 = arith.constant 0 : index
      %c0_23 = arith.constant 0 : index
      %29 = vector.load %arg4[%c0_22, %c0_23] : memref<1x64xf32, #tpu.memory_space<vmem>>, vector<1x64xf32>
      %cst_24 = arith.constant dense<0.000000e+00> : vector<8xf32>
      %30 = vector.multi_reduction <add>, %27, %cst_24 [1] : vector<8x64xf32> to vector<8xf32>
      %31 = vector.shape_cast %30 : vector<8xf32> to vector<8x1xf32>
      %cst_25 = arith.constant 6.400000e+01 : f32
      %32 = vector.broadcast %cst_25 : f32 to vector<8x1xf32>
      %33 = arith.divf %31, %32 : vector<8x1xf32>
      %34 = vector.broadcast %33 : vector<8x1xf32> to vector<8x64xf32>
      %35 = arith.subf %27, %34 : vector<8x64xf32>
      %36 = arith.mulf %35, %35 : vector<8x64xf32>
      %cst_26 = arith.constant dense<0.000000e+00> : vector<8xf32>
      %37 = vector.multi_reduction <add>, %36, %cst_26 [1] : vector<8x64xf32> to vector<8xf32>
      %38 = vector.shape_cast %37 : vector<8xf32> to vector<8x1xf32>
      %cst_27 = arith.constant 6.400000e+01 : f32
      %39 = vector.broadcast %cst_27 : f32 to vector<8x1xf32>
      %40 = arith.divf %38, %39 : vector<8x1xf32>
      %41 = vector.broadcast %33 : vector<8x1xf32> to vector<8x64xf32>
      %42 = arith.subf %27, %41 : vector<8x64xf32>
      %cst_28 = arith.constant 9.99999974E-6 : f32
      %43 = vector.broadcast %cst_28 : f32 to vector<8x1xf32>
      %44 = arith.addf %40, %43 : vector<8x1xf32>
      %45 = math.rsqrt %44 : vector<8x1xf32>
      %46 = vector.broadcast %45 : vector<8x1xf32> to vector<8x64xf32>
      %47 = arith.mulf %42, %46 : vector<8x64xf32>
      %48 = vector.broadcast %28 : vector<1x64xf32> to vector<8x64xf32>
      %49 = arith.mulf %47, %48 : vector<8x64xf32>
      %50 = vector.broadcast %29 : vector<1x64xf32> to vector<8x64xf32>
      %51 = arith.addf %49, %50 : vector<8x64xf32>
      %c0_29 = arith.constant 0 : index
      %c0_30 = arith.constant 0 : index
      %52 = vector.load %arg5[%c0_29, %c0_30] : memref<64x64xf32, #tpu.memory_space<vmem>>, vector<64x64xf32>
      %cst_31 = arith.constant dense<0.000000e+00> : vector<8x64xf32>
      %53 = tpu.matmul %51, %52, %cst_31 {dimension_numbers = #tpu.dot_dimension_numbers<[1], [0], [0], [1], [0, 0, 1, 1], [], []>} : vector<8x64xf32>, vector<64x64xf32>, vector<8x64xf32> -> vector<8x64xf32>
      %c0_32 = arith.constant 0 : index
      %c0_33 = arith.constant 0 : index
      %54 = vector.load %arg6[%c0_32, %c0_33] : memref<64x64xf32, #tpu.memory_space<vmem>>, vector<64x64xf32>
      %cst_34 = arith.constant dense<0.000000e+00> : vector<8x64xf32>
      %55 = tpu.matmul %51, %54, %cst_34 {dimension_numbers = #tpu.dot_dimension_numbers<[1], [0], [0], [1], [0, 0, 1, 1], [], []>} : vector<8x64xf32>, vector<64x64xf32>, vector<8x64xf32> -> vector<8x64xf32>
      %c0_35 = arith.constant 0 : index
      %c0_36 = arith.constant 0 : index
      %56 = vector.load %arg7[%c0_35, %c0_36] : memref<64x64xf32, #tpu.memory_space<vmem>>, vector<64x64xf32>
      %cst_37 = arith.constant dense<0.000000e+00> : vector<8x64xf32>
      %57 = tpu.matmul %51, %56, %cst_37 {dimension_numbers = #tpu.dot_dimension_numbers<[1], [0], [0], [1], [0, 0, 1, 1], [], []>} : vector<8x64xf32>, vector<64x64xf32>, vector<8x64xf32> -> vector<8x64xf32>
      %cst_38 = arith.constant 2.500000e-01 : f32
      %58 = vector.broadcast %cst_38 : f32 to vector<8x64xf32>
      %59 = arith.mulf %55, %58 : vector<8x64xf32>
      %cst_39 = arith.constant dense<0xFF800000> : vector<64xf32>
      %60 = vector.multi_reduction <maximumf>, %59, %cst_39 [0] : vector<8x64xf32> to vector<64xf32>
      %61 = vector.shape_cast %60 : vector<64xf32> to vector<1x64xf32>
      %62 = vector.broadcast %61 : vector<1x64xf32> to vector<8x64xf32>
      %63 = arith.subf %59, %62 : vector<8x64xf32>
      %64 = math.exp %63 : vector<8x64xf32>
      %cst_40 = arith.constant dense<0.000000e+00> : vector<64xf32>
      %65 = vector.multi_reduction <add>, %64, %cst_40 [0] : vector<8x64xf32> to vector<64xf32>
      %66 = vector.shape_cast %65 : vector<64xf32> to vector<1x64xf32>
      %67 = vector.broadcast %66 : vector<1x64xf32> to vector<8x64xf32>
      %68 = arith.divf %64, %67 : vector<8x64xf32>
      %c0_41 = arith.constant 0 : index
      %c0_42 = arith.constant 0 : index
      %69 = vector.load %arg16[%c0_41, %c0_42] : memref<64x64xf32, #tpu.memory_space<vmem>>, vector<64x64xf32>
      %cst_43 = arith.constant dense<0.000000e+00> : vector<64x64xf32>
      %70 = tpu.matmul %68, %57, %cst_43 {dimension_numbers = #tpu.dot_dimension_numbers<[0], [0], [1], [1], [0, 1, 1, 1], [], []>} : vector<8x64xf32>, vector<8x64xf32>, vector<64x64xf32> -> vector<64x64xf32>
      %71 = arith.mulf %70, %69 : vector<64x64xf32>
      %cst_44 = arith.constant dense<0xFF800000> : vector<8xf32>
      %72 = vector.multi_reduction <maximumf>, %53, %cst_44 [1] : vector<8x64xf32> to vector<8xf32>
      %73 = vector.shape_cast %72 : vector<8xf32> to vector<8x1xf32>
      %74 = vector.broadcast %73 : vector<8x1xf32> to vector<8x64xf32>
      %75 = arith.subf %53, %74 : vector<8x64xf32>
      %76 = math.exp %75 : vector<8x64xf32>
      %cst_45 = arith.constant dense<0.000000e+00> : vector<8x64xf32>
      %77 = tpu.matmul %76, %69, %cst_45 {dimension_numbers = #tpu.dot_dimension_numbers<[1], [0], [0], [1], [0, 0, 1, 1], [], []>} : vector<8x64xf32>, vector<64x64xf32>, vector<8x64xf32> -> vector<8x64xf32>
      %78 = arith.divf %76, %77 : vector<8x64xf32>
      %cst_46 = arith.constant dense<0.000000e+00> : vector<8x64xf32>
      %79 = tpu.matmul %78, %71, %cst_46 {dimension_numbers = #tpu.dot_dimension_numbers<[1], [0], [0], [1], [0, 0, 1, 1], [], []>} : vector<8x64xf32>, vector<64x64xf32>, vector<8x64xf32> -> vector<8x64xf32>
      %80 = vector.extract_strided_slice %79 {offsets = [0, 0], sizes = [8, 16], strides = [1, 1]} : vector<8x64xf32> to vector<8x16xf32>
      %c0_47 = arith.constant 0 : index
      %c0_48 = arith.constant 0 : index
      %81 = vector.load %arg21[%c0_47, %c0_48] : memref<32x16xf32, #tpu.memory_space<vmem>>, vector<8x16xf32>
      tpu.vector_store %arg21[%c0_47, %c0_48], %80 {strides = array<i32>} : memref<32x16xf32, #tpu.memory_space<vmem>>, vector<8x16xf32>,
      %82 = vector.extract_strided_slice %79 {offsets = [0, 16], sizes = [8, 16], strides = [1, 1]} : vector<8x64xf32> to vector<8x16xf32>
      %c8 = arith.constant 8 : index
      %c0_49 = arith.constant 0 : index
      %83 = vector.load %arg21[%c8, %c0_49] : memref<32x16xf32, #tpu.memory_space<vmem>>, vector<8x16xf32>
      tpu.vector_store %arg21[%c8, %c0_49], %82 {strides = array<i32>} : memref<32x16xf32, #tpu.memory_space<vmem>>, vector<8x16xf32>,
      %84 = vector.extract_strided_slice %79 {offsets = [0, 32], sizes = [8, 16], strides = [1, 1]} : vector<8x64xf32> to vector<8x16xf32>
      %c16 = arith.constant 16 : index
      %c0_50 = arith.constant 0 : index
      %85 = vector.load %arg21[%c16, %c0_50] : memref<32x16xf32, #tpu.memory_space<vmem>>, vector<8x16xf32>
      tpu.vector_store %arg21[%c16, %c0_50], %84 {strides = array<i32>} : memref<32x16xf32, #tpu.memory_space<vmem>>, vector<8x16xf32>,
      %86 = vector.extract_strided_slice %79 {offsets = [0, 48], sizes = [8, 16], strides = [1, 1]} : vector<8x64xf32> to vector<8x16xf32>
      %c24 = arith.constant 24 : index
      %c0_51 = arith.constant 0 : index
      %87 = vector.load %arg21[%c24, %c0_51] : memref<32x16xf32, #tpu.memory_space<vmem>>, vector<8x16xf32>
      tpu.vector_store %arg21[%c24, %c0_51], %86 {strides = array<i32>} : memref<32x16xf32, #tpu.memory_space<vmem>>, vector<8x16xf32>,
      %c0_52 = arith.constant 0 : index
      %c0_53 = arith.constant 0 : index
      %88 = tpu.strided_load %arg21[%c0_52, %c0_53] {strides = array<i32: 4, 1>} : memref<32x16xf32, #tpu.memory_space<vmem>>, vector<8x16xf32>
      %c0_54 = arith.constant 0 : index
      %c0_55 = arith.constant 0 : index
      %89 = vector.load %arg22[%c0_54, %c0_55] : memref<8x64xf32, #tpu.memory_space<vmem>>, vector<8x16xf32>
      tpu.vector_store %arg22[%c0_54, %c0_55], %88 {strides = array<i32>} : memref<8x64xf32, #tpu.memory_space<vmem>>, vector<8x16xf32>,
      %c1 = arith.constant 1 : index
      %c0_56 = arith.constant 0 : index
      %90 = tpu.strided_load %arg21[%c1, %c0_56] {strides = array<i32: 4, 1>} : memref<32x16xf32, #tpu.memory_space<vmem>>, vector<8x16xf32>
      %c0_57 = arith.constant 0 : index
      %c16_58 = arith.constant 16 : index
      %91 = vector.load %arg22[%c0_57, %c16_58] : memref<8x64xf32, #tpu.memory_space<vmem>>, vector<8x16xf32>
      tpu.vector_store %arg22[%c0_57, %c16_58], %90 {strides = array<i32>} : memref<8x64xf32, #tpu.memory_space<vmem>>, vector<8x16xf32>,
      %c2 = arith.constant 2 : index
      %c0_59 = arith.constant 0 : index
      %92 = tpu.strided_load %arg21[%c2, %c0_59] {strides = array<i32: 4, 1>} : memref<32x16xf32, #tpu.memory_space<vmem>>, vector<8x16xf32>
      %c0_60 = arith.constant 0 : index
      %c32 = arith.constant 32 : index
      %93 = vector.load %arg22[%c0_60, %c32] : memref<8x64xf32, #tpu.memory_space<vmem>>, vector<8x16xf32>
      tpu.vector_store %arg22[%c0_60, %c32], %92 {strides = array<i32>} : memref<8x64xf32, #tpu.memory_space<vmem>>, vector<8x16xf32>,
      %c3 = arith.constant 3 : index
      %c0_61 = arith.constant 0 : index
      %94 = tpu.strided_load %arg21[%c3, %c0_61] {strides = array<i32: 4, 1>} : memref<32x16xf32, #tpu.memory_space<vmem>>, vector<8x16xf32>
      %c0_62 = arith.constant 0 : index
      %c48 = arith.constant 48 : index
      %95 = vector.load %arg22[%c0_62, %c48] : memref<8x64xf32, #tpu.memory_space<vmem>>, vector<8x16xf32>
      tpu.vector_store %arg22[%c0_62, %c48], %94 {strides = array<i32>} : memref<8x64xf32, #tpu.memory_space<vmem>>, vector<8x16xf32>,
      %c0_63 = arith.constant 0 : index
      %c0_64 = arith.constant 0 : index
      %96 = vector.load %arg22[%c0_63, %c0_64] : memref<8x64xf32, #tpu.memory_space<vmem>>, vector<8x64xf32>
      %c0_65 = arith.constant 0 : index
      %c0_66 = arith.constant 0 : index
      %97 = vector.load %arg8[%c0_65, %c0_66] : memref<64x64xf32, #tpu.memory_space<vmem>>, vector<64x64xf32>
      %cst_67 = arith.constant dense<0.000000e+00> : vector<8x64xf32>
      %98 = tpu.matmul %96, %97, %cst_67 {dimension_numbers = #tpu.dot_dimension_numbers<[1], [0], [0], [1], [0, 0, 1, 1], [], []>} : vector<8x64xf32>, vector<64x64xf32>, vector<8x64xf32> -> vector<8x64xf32>
      %c0_68 = arith.constant 0 : index
      %c0_69 = arith.constant 0 : index
      %99 = vector.load %arg9[%c0_68, %c0_69] : memref<1x64xf32, #tpu.memory_space<vmem>>, vector<1x64xf32>
      %100 = vector.broadcast %99 : vector<1x64xf32> to vector<8x64xf32>
      %101 = arith.addf %98, %100 : vector<8x64xf32>
      %102 = arith.addf %27, %101 : vector<8x64xf32>
      %c0_70 = arith.constant 0 : index
      %c0_71 = arith.constant 0 : index
      %103 = vector.load %arg18[%c0_70, %c0_71] : memref<8x64xf32, #tpu.memory_space<vmem>>, vector<8x64xf32>
      tpu.vector_store %arg18[%c0_70, %c0_71], %102 {strides = array<i32>} : memref<8x64xf32, #tpu.memory_space<vmem>>, vector<8x64xf32>,
      %c0_72 = arith.constant 0 : index
      %c0_73 = arith.constant 0 : index
      %104 = vector.load %arg10[%c0_72, %c0_73] : memref<1x64xf32, #tpu.memory_space<vmem>>, vector<1x64xf32>
      %c0_74 = arith.constant 0 : index
      %c0_75 = arith.constant 0 : index
      %105 = vector.load %arg11[%c0_74, %c0_75] : memref<1x64xf32, #tpu.memory_space<vmem>>, vector<1x64xf32>
      %cst_76 = arith.constant dense<0.000000e+00> : vector<8xf32>
      %106 = vector.multi_reduction <add>, %102, %cst_76 [1] : vector<8x64xf32> to vector<8xf32>
      %107 = vector.shape_cast %106 : vector<8xf32> to vector<8x1xf32>
      %cst_77 = arith.constant 6.400000e+01 : f32
      %108 = vector.broadcast %cst_77 : f32 to vector<8x1xf32>
      %109 = arith.divf %107, %108 : vector<8x1xf32>
      %110 = vector.broadcast %109 : vector<8x1xf32> to vector<8x64xf32>
      %111 = arith.subf %102, %110 : vector<8x64xf32>
      %112 = arith.mulf %111, %111 : vector<8x64xf32>
      %cst_78 = arith.constant dense<0.000000e+00> : vector<8xf32>
      %113 = vector.multi_reduction <add>, %112, %cst_78 [1] : vector<8x64xf32> to vector<8xf32>
      %114 = vector.shape_cast %113 : vector<8xf32> to vector<8x1xf32>
      %cst_79 = arith.constant 6.400000e+01 : f32
      %115 = vector.broadcast %cst_79 : f32 to vector<8x1xf32>
      %116 = arith.divf %114, %115 : vector<8x1xf32>
      %117 = vector.broadcast %109 : vector<8x1xf32> to vector<8x64xf32>
      %118 = arith.subf %102, %117 : vector<8x64xf32>
      %cst_80 = arith.constant 9.99999974E-6 : f32
      %119 = vector.broadcast %cst_80 : f32 to vector<8x1xf32>
      %120 = arith.addf %116, %119 : vector<8x1xf32>
      %121 = math.rsqrt %120 : vector<8x1xf32>
      %122 = vector.broadcast %121 : vector<8x1xf32> to vector<8x64xf32>
      %123 = arith.mulf %118, %122 : vector<8x64xf32>
      %124 = vector.broadcast %104 : vector<1x64xf32> to vector<8x64xf32>
      %125 = arith.mulf %123, %124 : vector<8x64xf32>
      %126 = vector.broadcast %105 : vector<1x64xf32> to vector<8x64xf32>
      %127 = arith.addf %125, %126 : vector<8x64xf32>
      %c0_81 = arith.constant 0 : index
      %c0_82 = arith.constant 0 : index
      %128 = vector.load %arg19[%c0_81, %c0_82] : memref<8x64xf32, #tpu.memory_space<vmem>>, vector<8x64xf32>
      tpu.vector_store %arg19[%c0_81, %c0_82], %127 {strides = array<i32>} : memref<8x64xf32, #tpu.memory_space<vmem>>, vector<8x64xf32>,
      %cst_83 = arith.constant 0.000000e+00 : f32
      %129 = vector.broadcast %cst_83 : f32 to vector<8x64xf32>
      %c0_84 = arith.constant 0 : index
      %c0_85 = arith.constant 0 : index
      %130 = vector.load %arg20[%c0_84, %c0_85] : memref<8x64xf32, #tpu.memory_space<vmem>>, vector<8x64xf32>
      tpu.vector_store %arg20[%c0_84, %c0_85], %129 {strides = array<i32>} : memref<8x64xf32, #tpu.memory_space<vmem>>, vector<8x64xf32>,
    } else {
    }
    %c0 = arith.constant 0 : index
    %c0_1 = arith.constant 0 : index
    %3 = vector.load %arg19[%c0, %c0_1] : memref<8x64xf32, #tpu.memory_space<vmem>>, vector<8x64xf32>
    %c0_2 = arith.constant 0 : index
    %c0_3 = arith.constant 0 : index
    %4 = vector.load %arg12[%c0_2, %c0_3] : memref<64x128xf32, #tpu.memory_space<vmem>>, vector<64x128xf32>
    %cst = arith.constant dense<0.000000e+00> : vector<8x128xf32>
    %5 = tpu.matmul %3, %4, %cst {dimension_numbers = #tpu.dot_dimension_numbers<[1], [0], [0], [1], [0, 0, 1, 1], [], []>} : vector<8x64xf32>, vector<64x128xf32>, vector<8x128xf32> -> vector<8x128xf32>
    %c0_4 = arith.constant 0 : index
    %c0_5 = arith.constant 0 : index
    %6 = vector.load %arg13[%c0_4, %c0_5] : memref<1x128xf32, #tpu.memory_space<vmem>>, vector<1x128xf32>
    %7 = vector.broadcast %6 : vector<1x128xf32> to vector<8x128xf32>
    %8 = arith.addf %5, %7 : vector<8x128xf32>
    %cst_6 = arith.constant 5.000000e-01 : f32
    %9 = vector.broadcast %cst_6 : f32 to vector<8x128xf32>
    %10 = arith.mulf %9, %8 : vector<8x128xf32>
    %cst_7 = arith.constant 2.000000e+00 : f32
    %11 = math.sqrt %cst_7 : f32
    %12 = vector.broadcast %11 : f32 to vector<8x128xf32>
    %13 = arith.divf %8, %12 : vector<8x128xf32>
    %14 = math.erf %13 : vector<8x128xf32>
    %cst_8 = arith.constant 1.000000e+00 : f32
    %15 = vector.broadcast %cst_8 : f32 to vector<8x128xf32>
    %16 = arith.addf %15, %14 : vector<8x128xf32>
    %17 = arith.mulf %10, %16 : vector<8x128xf32>
    %c0_9 = arith.constant 0 : index
    %c0_10 = arith.constant 0 : index
    %18 = vector.load %arg20[%c0_9, %c0_10] : memref<8x64xf32, #tpu.memory_space<vmem>>, vector<8x64xf32>
    %c0_11 = arith.constant 0 : index
    %c0_12 = arith.constant 0 : index
    %19 = vector.load %arg14[%c0_11, %c0_12] : memref<128x64xf32, #tpu.memory_space<vmem>>, vector<128x64xf32>
    %cst_13 = arith.constant dense<0.000000e+00> : vector<8x64xf32>
    %20 = tpu.matmul %17, %19, %cst_13 {dimension_numbers = #tpu.dot_dimension_numbers<[1], [0], [0], [1], [0, 0, 1, 1], [], []>} : vector<8x128xf32>, vector<128x64xf32>, vector<8x64xf32> -> vector<8x64xf32>
    %21 = arith.addf %18, %20 : vector<8x64xf32>
    %c0_14 = arith.constant 0 : index
    %c0_15 = arith.constant 0 : index
    %22 = vector.load %arg20[%c0_14, %c0_15] : memref<8x64xf32, #tpu.memory_space<vmem>>, vector<8x64xf32>
    tpu.vector_store %arg20[%c0_14, %c0_15], %21 {strides = array<i32>} : memref<8x64xf32, #tpu.memory_space<vmem>>, vector<8x64xf32>,
    %c1_i32 = arith.constant 1 : i32
    %23 = arith.cmpi eq, %arg1, %c1_i32 : i32
    %24 = arith.extui %23 : i1 to i32
    %c0_i32_16 = arith.constant 0 : i32
    %25 = arith.cmpi ne, %24, %c0_i32_16 : i32
    scf.if %25 {
      %c0_17 = arith.constant 0 : index
      %c0_18 = arith.constant 0 : index
      %26 = vector.load %arg18[%c0_17, %c0_18] : memref<8x64xf32, #tpu.memory_space<vmem>>, vector<8x64xf32>
      %c0_19 = arith.constant 0 : index
      %c0_20 = arith.constant 0 : index
      %27 = vector.load %arg20[%c0_19, %c0_20] : memref<8x64xf32, #tpu.memory_space<vmem>>, vector<8x64xf32>
      %28 = arith.addf %26, %27 : vector<8x64xf32>
      %c0_21 = arith.constant 0 : index
      %c0_22 = arith.constant 0 : index
      %29 = vector.load %arg15[%c0_21, %c0_22] : memref<1x64xf32, #tpu.memory_space<vmem>>, vector<1x64xf32>
      %30 = vector.broadcast %29 : vector<1x64xf32> to vector<8x64xf32>
      %31 = arith.addf %28, %30 : vector<8x64xf32>
      %c0_23 = arith.constant 0 : index
      %c0_24 = arith.constant 0 : index
      %c0_25 = arith.constant 0 : index
      %32 = vector.load %arg17[%c0_23, %c0_24, %c0_25] : memref<1x8x64xf32, #tpu.memory_space<vmem>>, vector<1x8x64xf32>
      %33 = vector.shape_cast %32 : vector<1x8x64xf32> to vector<8x64xf32>
      %34 = vector.shape_cast %31 : vector<8x64xf32> to vector<1x8x64xf32>
      tpu.vector_store %arg17[%c0_23, %c0_24, %c0_25], %34 {strides = array<i32>} : memref<1x8x64xf32, #tpu.memory_space<vmem>>, vector<1x8x64xf32>,
    } else {
    }
    return
  }
  func.func @transform_0(%arg0: i32, %arg1: i32) -> (i32, i32, i32) {
    %c0_i32 = arith.constant 0 : i32
    %c0_i32_0 = arith.constant 0 : i32
    %c0_i32_1 = arith.constant 0 : i32
    return %arg0, %c0_i32, %c0_i32_0 : i32, i32, i32
  }
  func.func @transform_1(%arg0: i32, %arg1: i32) -> (i32, i32) {
    %c0_i32 = arith.constant 0 : i32
    %c0_i32_0 = arith.constant 0 : i32
    %c0_i32_1 = arith.constant 0 : i32
    return %c0_i32, %c0_i32_0 : i32, i32
  }
  func.func @transform_2(%arg0: i32, %arg1: i32) -> (i32, i32) {
    %c0_i32 = arith.constant 0 : i32
    %c0_i32_0 = arith.constant 0 : i32
    %c0_i32_1 = arith.constant 0 : i32
    return %c0_i32, %c0_i32_0 : i32, i32
  }
  func.func @transform_3(%arg0: i32, %arg1: i32) -> (i32, i32) {
    %c0_i32 = arith.constant 0 : i32
    %c0_i32_0 = arith.constant 0 : i32
    %c0_i32_1 = arith.constant 0 : i32
    return %c0_i32, %c0_i32_0 : i32, i32
  }
  func.func @transform_4(%arg0: i32, %arg1: i32) -> (i32, i32) {
    %c0_i32 = arith.constant 0 : i32
    %c0_i32_0 = arith.constant 0 : i32
    %c0_i32_1 = arith.constant 0 : i32
    return %c0_i32, %c0_i32_0 : i32, i32
  }
  func.func @transform_5(%arg0: i32, %arg1: i32) -> (i32, i32) {
    %c0_i32 = arith.constant 0 : i32
    %c0_i32_0 = arith.constant 0 : i32
    %c0_i32_1 = arith.constant 0 : i32
    return %c0_i32, %c0_i32_0 : i32, i32
  }
  func.func @transform_6(%arg0: i32, %arg1: i32) -> (i32, i32) {
    %c0_i32 = arith.constant 0 : i32
    %c0_i32_0 = arith.constant 0 : i32
    %c0_i32_1 = arith.constant 0 : i32
    return %c0_i32, %c0_i32_0 : i32, i32
  }
  func.func @transform_7(%arg0: i32, %arg1: i32) -> (i32, i32) {
    %c0_i32 = arith.constant 0 : i32
    %c0_i32_0 = arith.constant 0 : i32
    %c0_i32_1 = arith.constant 0 : i32
    return %c0_i32, %c0_i32_0 : i32, i32
  }
  func.func @transform_8(%arg0: i32, %arg1: i32) -> (i32, i32) {
    %c0_i32 = arith.constant 0 : i32
    %c0_i32_0 = arith.constant 0 : i32
    %c0_i32_1 = arith.constant 0 : i32
    return %c0_i32, %c0_i32_0 : i32, i32
  }
  func.func @transform_9(%arg0: i32, %arg1: i32) -> (i32, i32) {
    %c0_i32 = arith.constant 0 : i32
    %c0_i32_0 = arith.constant 0 : i32
    %c0_i32_1 = arith.constant 0 : i32
    return %c0_i32, %c0_i32_0 : i32, i32
  }
  func.func @transform_10(%arg0: i32, %arg1: i32) -> (i32, i32) {
    %c0_i32 = arith.constant 0 : i32
    %c0_i32_0 = arith.constant 0 : i32
    return %c0_i32, %arg1 : i32, i32
  }
  func.func @transform_11(%arg0: i32, %arg1: i32) -> (i32, i32) {
    %c0_i32 = arith.constant 0 : i32
    %c0_i32_0 = arith.constant 0 : i32
    return %c0_i32, %arg1 : i32, i32
  }
  func.func @transform_12(%arg0: i32, %arg1: i32) -> (i32, i32) {
    %c0_i32 = arith.constant 0 : i32
    %c0_i32_0 = arith.constant 0 : i32
    return %arg1, %c0_i32 : i32, i32
  }
  func.func @transform_13(%arg0: i32, %arg1: i32) -> (i32, i32) {
    %c0_i32 = arith.constant 0 : i32
    %c0_i32_0 = arith.constant 0 : i32
    %c0_i32_1 = arith.constant 0 : i32
    return %c0_i32, %c0_i32_0 : i32, i32
  }
  func.func @transform_14(%arg0: i32, %arg1: i32) -> (i32, i32) {
    %c0_i32 = arith.constant 0 : i32
    %c0_i32_0 = arith.constant 0 : i32
    %c0_i32_1 = arith.constant 0 : i32
    return %c0_i32, %c0_i32_0 : i32, i32
  }
  func.func @transform_15(%arg0: i32, %arg1: i32) -> (i32, i32, i32) {
    %c0_i32 = arith.constant 0 : i32
    %c0_i32_0 = arith.constant 0 : i32
    %c0_i32_1 = arith.constant 0 : i32
    return %arg0, %c0_i32, %c0_i32_0 : i32, i32, i32
  }
}

</mosaic_0001>

<llo_original>
// kernel: tpu_custom_call.1
$region0: #{tpu_custom_call.1}
  #allocation0 [shape = 'u32[]', space=smem, size = 0x4, offset = 0x4, fixed_abs, tag = 'smem constant byte address 0x4 - core index']
  #allocation1 [shape = 'u32[144,128]{1,0:T(1,128)}', space=vmem, size = 0x12000, scoped, tag = 'internal scratch']
  #allocation2 [shape = 'f32[8,64]{1,0:T(8,128)}', space=vmem, size = 0x1000, scoped, tag = 'scratch operand']
  #allocation3 [shape = 'f32[8,64]{1,0:T(8,128)}', space=vmem, size = 0x1000, scoped, tag = 'scratch operand']
  #allocation4 [shape = 'f32[8,64]{1,0:T(8,128)}', space=vmem, size = 0x1000, scoped, tag = 'scratch operand']
  #allocation5 [shape = 'f32[32,16]{1,0:T(8,128)}', space=vmem, size = 0x4000, scoped, tag = 'scratch operand']
  #allocation6 [shape = 'f32[8,64]{1,0:T(8,128)}', space=vmem, size = 0x1000, scoped, tag = 'scratch operand']
  %s0 = inlined_call_operand.hbm [shape: f32[2,8,64], index: 0, kind: input, shape index: {}]
  %s1 = inlined_call_operand.hbm [shape: f32[1,64], index: 1, kind: input, shape index: {}]
  %s2 = inlined_call_operand.hbm [shape: f32[1,64], index: 2, kind: input, shape index: {}]
  %s3 = inlined_call_operand.vmem [shape: f32[64,64], index: 3, kind: input, shape index: {}]
  %s4 = inlined_call_operand.vmem [shape: f32[64,64], index: 4, kind: input, shape index: {}]
  %s5 = inlined_call_operand.vmem [shape: f32[64,64], index: 5, kind: input, shape index: {}]
  %s6 = inlined_call_operand.vmem [shape: f32[64,64], index: 6, kind: input, shape index: {}]
  %s7 = inlined_call_operand.vmem [shape: f32[1,64], index: 7, kind: input, shape index: {}]
  %s8 = inlined_call_operand.vmem [shape: f32[1,64], index: 8, kind: input, shape index: {}]
  %s9 = inlined_call_operand.vmem [shape: f32[1,64], index: 9, kind: input, shape index: {}]
  %s10 = inlined_call_operand.vmem [shape: f32[64,256], index: 10, kind: input, shape index: {}]
  %s11 = inlined_call_operand.vmem [shape: f32[1,256], index: 11, kind: input, shape index: {}]
  %s12 = inlined_call_operand.vmem [shape: f32[256,64], index: 12, kind: input, shape index: {}]
  %s13 = inlined_call_operand.vmem [shape: f32[1,64], index: 13, kind: input, shape index: {}]
  %s14 = inlined_call_operand.hbm [shape: f32[64,64], index: 14, kind: input, shape index: {}]
  %s15 = inlined_call_operand.hbm [shape: f32[2,8,64], index: 15, kind: output, shape index: {}]
  %s16 = sld [smem:[#allocation0]]
  $region155: #{tpu_custom_call.1} parent=0
    _
  %s18 = ssub.s32 1, %s16
  %s19 = scalar_select 0, %s18, %s16
  $region1: #{tpu_custom_call.1} parent=0
    #allocation7 [shape = 'u8[8192]{0}', space=vmem, size = 0x2000, scoped, tag = 'input window, operand 0']
    #allocation8 [shape = 's32[2]{0}', space=sflag, size = 0x8, scoped, tag = 'scoped memory for tpu_custom_call.1']
    #allocation9 [shape = 's32[2]{0}', space=sflag, size = 0x8, scoped, tag = 'scoped memory for tpu_custom_call.1']
    #allocation10 [shape = 'u8[512]{0}', space=vmem, size = 0x400, scoped, tag = 'input window, operand 1, single buffered']
    #allocation11 [shape = 's32[1]{0}', space=sflag, size = 0x4, scoped, tag = 'scoped memory for tpu_custom_call.1']
    #allocation12 [shape = 'u8[512]{0}', space=vmem, size = 0x400, scoped, tag = 'input window, operand 2, single buffered']
    #allocation13 [shape = 'u8[65536]{0}', space=vmem, size = 0x10000, scoped, tag = 'input window, operand 10']
    #allocation14 [shape = 'u8[32768]{0}', space=vmem, size = 0x8000, scoped, tag = 'input window, operand 14, single buffered']
    #allocation15 [shape = 's32[1]{0}', space=sflag, size = 0x4, scoped, tag = 'scoped memory for tpu_custom_call.1']
    #allocation16 [shape = 'u8[8192]{0}', space=vmem, size = 0x2000, scoped, tag = 'output window, operand 0']
    %20 = vsyncpa [#allocation8], 0
    %s21 = scalar_lea.sflag [#allocation8], 1
    %22 = vsyncpa %s21, 0
    %23 = vsyncpa [#allocation11], 0
    %24 = vsyncpa [#allocation15], 0
    %25 = vsyncpa [#allocation9], 0
    %s26 = scalar_lea.sflag [#allocation9], 1
    %27 = vsyncpa %s26, 0
    loop: start=0, step=1, limit=6
    $region2: #{tpu_custom_call.1} parent=1 // loop_pre_header
      _
    $region3: #{tpu_custom_call.1} parent=1 // loop_header
      %s29 = sphi 0, %s33
      %p30 = scmp.ge.s32.totalorder %s29, 6
      %s36 = sphi 0, %s48
      %s37 = sphi 0, %s44
      %s38 = sphi 0, %s36
      %s39 = sphi 0, %s37
      %s40 = sphi 0, %s38
      %s41 = sphi 0, %s39
      %s51 = sphi 0, %s53
      %s54 = sphi 0, %s51
      %s55 = sphi 0, %s54
      %s71 = sphi 0, %s55
      %s75 = sphi 0, %s75
      %s77 = sphi 0, %s75
      %s78 = sphi 0, %s77
      %s92 = sphi 0, %s78
      %s96 = sphi 0, %s96
      %s98 = sphi 0, %s96
      %s99 = sphi 0, %s98
      %s113 = sphi 0, %s99
      %s117 = sphi 0, %s117
      %s119 = sphi 0, %s117
      %s120 = sphi 0, %s119
      %s134 = sphi 0, %s120
      %s138 = sphi 0, %s138
      %s140 = sphi 0, %s138
      %s141 = sphi 0, %s140
      %s155 = sphi 0, %s141
      %s159 = sphi 0, %s159
      %s161 = sphi 0, %s159
      %s162 = sphi 0, %s161
      %s176 = sphi 0, %s162
      %s180 = sphi 0, %s180
      %s182 = sphi 0, %s180
      %s183 = sphi 0, %s182
      %s197 = sphi 0, %s183
      %s201 = sphi 0, %s201
      %s203 = sphi 0, %s201
      %s204 = sphi 0, %s203
      %s218 = sphi 0, %s204
      %s222 = sphi 0, %s222
      %s224 = sphi 0, %s222
      %s225 = sphi 0, %s224
      %s239 = sphi 0, %s225
      %s243 = sphi 0, %s243
      %s245 = sphi 0, %s243
      %s246 = sphi 0, %s245
      %s260 = sphi 0, %s246
      %s266 = sphi 0, %s268
      %s269 = sphi 0, %s266
      %s270 = sphi 0, %s269
      %s286 = sphi 0, %s270
      %s292 = sphi 0, %s294
      %s295 = sphi 0, %s292
      %s296 = sphi 0, %s295
      %s312 = sphi 0, %s296
      %s318 = sphi 0, %s320
      %s321 = sphi 0, %s318
      %s322 = sphi 0, %s321
      %s338 = sphi 0, %s322
      %s342 = sphi 0, %s342
      %s344 = sphi 0, %s342
      %s345 = sphi 0, %s344
      %s359 = sphi 0, %s345
      %s363 = sphi 0, %s363
      %s365 = sphi 0, %s363
      %s366 = sphi 0, %s365
      %s380 = sphi 0, %s366
      %s386 = sphi 0, %s388
      %s389 = sphi 0, %s386
      %s390 = sphi 0, %s389
      %s406 = sphi 0, %s390
    $region4: #{tpu_custom_call.1} parent=1 // loop_header_branch
      %32 = sbr.rel (%p30) target = $region8
    $region5: #{tpu_custom_call.1} parent=1 // loop_body
      %s34 = ssub.s32 %s29, 1
      %s35 = ssub.s32 %s29, 2
      %s42 = sadd.s32 1, %s37
      %p43 = scmp.ge.s32.totalorder %s42, 2
      %s44 = scalar_select %p43, 0, %s42
      %s45 = sadd.s32 1, %s36
      %s46 = scalar_select %p43, %s45, %s36
      %p47 = scmp.ge.s32.totalorder %s46, 2
      %s48 = scalar_select %p47, 0, %s46
      %s49 = ssub.s32 %s36, %s48
      %p50 = scmp.eq.s32.totalorder %s49, 0
      %s52 = sadd.s32 %s51, 1
      %s53 = scalar_select %p50, %s51, %s52
      %p56 = pneg %p50
      %p57 = scmp.eq.s32.totalorder %s29, 3
      %p58 = por %p56, %p57
      %p59 = scmp.ne.s32.totalorder %s51, %s54
      %p60 = scmp.eq.s32.totalorder %s29, 0
      %p61 = por %p59, %p60
      %p62 = scmp.ne.s32.totalorder %s51, %s54
      %p63 = scmp.eq.s32.totalorder %s34, 3
      %p64 = por %p62, %p63
      %p65 = scmp.ne.s32.totalorder %s54, %s55
      %p66 = scmp.eq.s32.totalorder %s34, 0
      %p67 = por %p65, %p66
      %p68 = scmp.ne.s32.totalorder %s54, %s55
      %p69 = scmp.eq.s32.totalorder %s35, 3
      %p70 = por %p68, %p69
      %p72 = scmp.ne.s32.totalorder %s55, %s71
      %p73 = scmp.eq.s32.totalorder %s35, 0
      %p74 = por %p72, %p73
      %s76 = sadd.s32 %s75, 1
      %p79 = scmp.eq.s32.totalorder %s29, 3
      %p80 = scmp.ne.s32.totalorder %s75, %s77
      %p81 = scmp.eq.s32.totalorder %s29, 0
      %p82 = por %p80, %p81
      %p83 = scmp.ne.s32.totalorder %s75, %s77
      %p84 = scmp.eq.s32.totalorder %s34, 3
      %p85 = por %p83, %p84
      %p86 = scmp.ne.s32.totalorder %s77, %s78
      %p87 = scmp.eq.s32.totalorder %s34, 0
      %p88 = por %p86, %p87
      %p89 = scmp.ne.s32.totalorder %s77, %s78
      %p90 = scmp.eq.s32.totalorder %s35, 3
      %p91 = por %p89, %p90
      %p93 = scmp.ne.s32.totalorder %s78, %s92
      %p94 = scmp.eq.s32.totalorder %s35, 0
      %p95 = por %p93, %p94
      %s97 = sadd.s32 %s96, 1
      %p100 = scmp.eq.s32.totalorder %s29, 3
      %p101 = scmp.ne.s32.totalorder %s96, %s98
      %p102 = scmp.eq.s32.totalorder %s29, 0
      %p103 = por %p101, %p102
      %p104 = scmp.ne.s32.totalorder %s96, %s98
      %p105 = scmp.eq.s32.totalorder %s34, 3
      %p106 = por %p104, %p105
      %p107 = scmp.ne.s32.totalorder %s98, %s99
      %p108 = scmp.eq.s32.totalorder %s34, 0
      %p109 = por %p107, %p108
      %p110 = scmp.ne.s32.totalorder %s98, %s99
      %p111 = scmp.eq.s32.totalorder %s35, 3
      %p112 = por %p110, %p111
      %p114 = scmp.ne.s32.totalorder %s99, %s113
      %p115 = scmp.eq.s32.totalorder %s35, 0
      %p116 = por %p114, %p115
      %s118 = sadd.s32 %s117, 1
      %p121 = scmp.eq.s32.totalorder %s29, 3
      %p122 = scmp.ne.s32.totalorder %s117, %s119
      %p123 = scmp.eq.s32.totalorder %s29, 0
      %p124 = por %p122, %p123
      %p125 = scmp.ne.s32.totalorder %s117, %s119
      %p126 = scmp.eq.s32.totalorder %s34, 3
      %p127 = por %p125, %p126
      %p128 = scmp.ne.s32.totalorder %s119, %s120
      %p129 = scmp.eq.s32.totalorder %s34, 0
      %p130 = por %p128, %p129
      %p131 = scmp.ne.s32.totalorder %s119, %s120
      %p132 = scmp.eq.s32.totalorder %s35, 3
      %p133 = por %p131, %p132
      %p135 = scmp.ne.s32.totalorder %s120, %s134
      %p136 = scmp.eq.s32.totalorder %s35, 0
      %p137 = por %p135, %p136
      %s139 = sadd.s32 %s138, 1
      %p142 = scmp.eq.s32.totalorder %s29, 3
      %p143 = scmp.ne.s32.totalorder %s138, %s140
      %p144 = scmp.eq.s32.totalorder %s29, 0
      %p145 = por %p143, %p144
      %p146 = scmp.ne.s32.totalorder %s138, %s140
      %p147 = scmp.eq.s32.totalorder %s34, 3
      %p148 = por %p146, %p147
      %p149 = scmp.ne.s32.totalorder %s140, %s141
      %p150 = scmp.eq.s32.totalorder %s34, 0
      %p151 = por %p149, %p150
      %p152 = scmp.ne.s32.totalorder %s140, %s141
      %p153 = scmp.eq.s32.totalorder %s35, 3
      %p154 = por %p152, %p153
      %p156 = scmp.ne.s32.totalorder %s141, %s155
      %p157 = scmp.eq.s32.totalorder %s35, 0
      %p158 = por %p156, %p157
      %s160 = sadd.s32 %s159, 1
      %p163 = scmp.eq.s32.totalorder %s29, 3
      %p164 = scmp.ne.s32.totalorder %s159, %s161
      %p165 = scmp.eq.s32.totalorder %s29, 0
      %p166 = por %p164, %p165
      %p167 = scmp.ne.s32.totalorder %s159, %s161
      %p168 = scmp.eq.s32.totalorder %s34, 3
      %p169 = por %p167, %p168
      %p170 = scmp.ne.s32.totalorder %s161, %s162
      %p171 = scmp.eq.s32.totalorder %s34, 0
      %p172 = por %p170, %p171
      %p173 = scmp.ne.s32.totalorder %s161, %s162
      %p174 = scmp.eq.s32.totalorder %s35, 3
      %p175 = por %p173, %p174
      %p177 = scmp.ne.s32.totalorder %s162, %s176
      %p178 = scmp.eq.s32.totalorder %s35, 0
      %p179 = por %p177, %p178
      %s181 = sadd.s32 %s180, 1
      %p184 = scmp.eq.s32.totalorder %s29, 3
      %p185 = scmp.ne.s32.totalorder %s180, %s182
      %p186 = scmp.eq.s32.totalorder %s29, 0
      %p187 = por %p185, %p186
      %p188 = scmp.ne.s32.totalorder %s180, %s182
      %p189 = scmp.eq.s32.totalorder %s34, 3
      %p190 = por %p188, %p189
      %p191 = scmp.ne.s32.totalorder %s182, %s183
      %p192 = scmp.eq.s32.totalorder %s34, 0
      %p193 = por %p191, %p192
      %p194 = scmp.ne.s32.totalorder %s182, %s183
      %p195 = scmp.eq.s32.totalorder %s35, 3
      %p196 = por %p194, %p195
      %p198 = scmp.ne.s32.totalorder %s183, %s197
      %p199 = scmp.eq.s32.totalorder %s35, 0
      %p200 = por %p198, %p199
      %s202 = sadd.s32 %s201, 1
      %p205 = scmp.eq.s32.totalorder %s29, 3
      %p206 = scmp.ne.s32.totalorder %s201, %s203
      %p207 = scmp.eq.s32.totalorder %s29, 0
      %p208 = por %p206, %p207
      %p209 = scmp.ne.s32.totalorder %s201, %s203
      %p210 = scmp.eq.s32.totalorder %s34, 3
      %p211 = por %p209, %p210
      %p212 = scmp.ne.s32.totalorder %s203, %s204
      %p213 = scmp.eq.s32.totalorder %s34, 0
      %p214 = por %p212, %p213
      %p215 = scmp.ne.s32.totalorder %s203, %s204
      %p216 = scmp.eq.s32.totalorder %s35, 3
      %p217 = por %p215, %p216
      %p219 = scmp.ne.s32.totalorder %s204, %s218
      %p220 = scmp.eq.s32.totalorder %s35, 0
      %p221 = por %p219, %p220
      %s223 = sadd.s32 %s222, 1
      %p226 = scmp.eq.s32.totalorder %s29, 3
      %p227 = scmp.ne.s32.totalorder %s222, %s224
      %p228 = scmp.eq.s32.totalorder %s29, 0
      %p229 = por %p227, %p228
      %p230 = scmp.ne.s32.totalorder %s222, %s224
      %p231 = scmp.eq.s32.totalorder %s34, 3
      %p232 = por %p230, %p231
      %p233 = scmp.ne.s32.totalorder %s224, %s225
      %p234 = scmp.eq.s32.totalorder %s34, 0
      %p235 = por %p233, %p234
      %p236 = scmp.ne.s32.totalorder %s224, %s225
      %p237 = scmp.eq.s32.totalorder %s35, 3
      %p238 = por %p236, %p237
      %p240 = scmp.ne.s32.totalorder %s225, %s239
      %p241 = scmp.eq.s32.totalorder %s35, 0
      %p242 = por %p240, %p241
      %s244 = sadd.s32 %s243, 1
      %p247 = scmp.eq.s32.totalorder %s29, 3
      %p248 = scmp.ne.s32.totalorder %s243, %s245
      %p249 = scmp.eq.s32.totalorder %s29, 0
      %p250 = por %p248, %p249
      %p251 = scmp.ne.s32.totalorder %s243, %s245
      %p252 = scmp.eq.s32.totalorder %s34, 3
      %p253 = por %p251, %p252
      %p254 = scmp.ne.s32.totalorder %s245, %s246
      %p255 = scmp.eq.s32.totalorder %s34, 0
      %p256 = por %p254, %p255
      %p257 = scmp.ne.s32.totalorder %s245, %s246
      %p258 = scmp.eq.s32.totalorder %s35, 3
      %p259 = por %p257, %p258
      %p261 = scmp.ne.s32.totalorder %s246, %s260
      %p262 = scmp.eq.s32.totalorder %s35, 0
      %p263 = por %p261, %p262
      %s264 = ssub.s32 %s37, %s44
      %p265 = scmp.eq.s32.totalorder %s264, 0
      %s267 = sadd.s32 %s266, 1
      %s268 = scalar_select %p265, %s266, %s267
      %p271 = pneg %p265
      %p272 = scmp.eq.s32.totalorder %s29, 3
      %p273 = por %p271, %p272
      %p274 = scmp.ne.s32.totalorder %s266, %s269
      %p275 = scmp.eq.s32.totalorder %s29, 0
      %p276 = por %p274, %p275
      %p277 = scmp.ne.s32.totalorder %s266, %s269
      %p278 = scmp.eq.s32.totalorder %s34, 3
      %p279 = por %p277, %p278
      %p280 = scmp.ne.s32.totalorder %s269, %s270
      %p281 = scmp.eq.s32.totalorder %s34, 0
      %p282 = por %p280, %p281
      %p283 = scmp.ne.s32.totalorder %s269, %s270
      %p284 = scmp.eq.s32.totalorder %s35, 3
      %p285 = por %p283, %p284
      %p287 = scmp.ne.s32.totalorder %s270, %s286
      %p288 = scmp.eq.s32.totalorder %s35, 0
      %p289 = por %p287, %p288
      %s290 = ssub.s32 %s37, %s44
      %p291 = scmp.eq.s32.totalorder %s290, 0
      %s293 = sadd.s32 %s292, 1
      %s294 = scalar_select %p291, %s292, %s293
      %p297 = pneg %p291
      %p298 = scmp.eq.s32.totalorder %s29, 3
      %p299 = por %p297, %p298
      %p300 = scmp.ne.s32.totalorder %s292, %s295
      %p301 = scmp.eq.s32.totalorder %s29, 0
      %p302 = por %p300, %p301
      %p303 = scmp.ne.s32.totalorder %s292, %s295
      %p304 = scmp.eq.s32.totalorder %s34, 3
      %p305 = por %p303, %p304
      %p306 = scmp.ne.s32.totalorder %s295, %s296
      %p307 = scmp.eq.s32.totalorder %s34, 0
      %p308 = por %p306, %p307
      %p309 = scmp.ne.s32.totalorder %s295, %s296
      %p310 = scmp.eq.s32.totalorder %s35, 3
      %p311 = por %p309, %p310
      %p313 = scmp.ne.s32.totalorder %s296, %s312
      %p314 = scmp.eq.s32.totalorder %s35, 0
      %p315 = por %p313, %p314
      %s316 = ssub.s32 %s37, %s44
      %p317 = scmp.eq.s32.totalorder %s316, 0
      %s319 = sadd.s32 %s318, 1
      %s320 = scalar_select %p317, %s318, %s319
      %p323 = pneg %p317
      %p324 = scmp.eq.s32.totalorder %s29, 3
      %p325 = por %p323, %p324
      %p326 = scmp.ne.s32.totalorder %s318, %s321
      %p327 = scmp.eq.s32.totalorder %s29, 0
      %p328 = por %p326, %p327
      %p329 = scmp.ne.s32.totalorder %s318, %s321
      %p330 = scmp.eq.s32.totalorder %s34, 3
      %p331 = por %p329, %p330
      %p332 = scmp.ne.s32.totalorder %s321, %s322
      %p333 = scmp.eq.s32.totalorder %s34, 0
      %p334 = por %p332, %p333
      %p335 = scmp.ne.s32.totalorder %s321, %s322
      %p336 = scmp.eq.s32.totalorder %s35, 3
      %p337 = por %p335, %p336
      %p339 = scmp.ne.s32.totalorder %s322, %s338
      %p340 = scmp.eq.s32.totalorder %s35, 0
      %p341 = por %p339, %p340
      %s343 = sadd.s32 %s342, 1
      %p346 = scmp.eq.s32.totalorder %s29, 3
      %p347 = scmp.ne.s32.totalorder %s342, %s344
      %p348 = scmp.eq.s32.totalorder %s29, 0
      %p349 = por %p347, %p348
      %p350 = scmp.ne.s32.totalorder %s342, %s344
      %p351 = scmp.eq.s32.totalorder %s34, 3
      %p352 = por %p350, %p351
      %p353 = scmp.ne.s32.totalorder %s344, %s345
      %p354 = scmp.eq.s32.totalorder %s34, 0
      %p355 = por %p353, %p354
      %p356 = scmp.ne.s32.totalorder %s344, %s345
      %p357 = scmp.eq.s32.totalorder %s35, 3
      %p358 = por %p356, %p357
      %p360 = scmp.ne.s32.totalorder %s345, %s359
      %p361 = scmp.eq.s32.totalorder %s35, 0
      %p362 = por %p360, %p361
      %s364 = sadd.s32 %s363, 1
      %p367 = scmp.eq.s32.totalorder %s29, 3
      %p368 = scmp.ne.s32.totalorder %s363, %s365
      %p369 = scmp.eq.s32.totalorder %s29, 0
      %p370 = por %p368, %p369
      %p371 = scmp.ne.s32.totalorder %s363, %s365
      %p372 = scmp.eq.s32.totalorder %s34, 3
      %p373 = por %p371, %p372
      %p374 = scmp.ne.s32.totalorder %s365, %s366
      %p375 = scmp.eq.s32.totalorder %s34, 0
      %p376 = por %p374, %p375
      %p377 = scmp.ne.s32.totalorder %s365, %s366
      %p378 = scmp.eq.s32.totalorder %s35, 3
      %p379 = por %p377, %p378
      %p381 = scmp.ne.s32.totalorder %s366, %s380
      %p382 = scmp.eq.s32.totalorder %s35, 0
      %p383 = por %p381, %p382
      %s384 = ssub.s32 %s36, %s48
      %p385 = scmp.eq.s32.totalorder %s384, 0
      %s387 = sadd.s32 %s386, 1
      %s388 = scalar_select %p385, %s386, %s387
      %p391 = pneg %p385
      %p392 = scmp.eq.s32.totalorder %s29, 3
      %p393 = por %p391, %p392
      %p394 = scmp.ne.s32.totalorder %s386, %s389
      %p395 = scmp.eq.s32.totalorder %s29, 0
      %p396 = por %p394, %p395
      %p397 = scmp.ne.s32.totalorder %s386, %s389
      %p398 = scmp.eq.s32.totalorder %s34, 3
      %p399 = por %p397, %p398
      %p400 = scmp.ne.s32.totalorder %s389, %s390
      %p401 = scmp.eq.s32.totalorder %s34, 0
      %p402 = por %p400, %p401
      %p403 = scmp.ne.s32.totalorder %s389, %s390
      %p404 = scmp.eq.s32.totalorder %s35, 3
      %p405 = por %p403, %p404
      %p407 = scmp.ne.s32.totalorder %s390, %s406
      %p408 = scmp.eq.s32.totalorder %s35, 0
      %p409 = por %p407, %p408
      %p410 = scmp.le.s32.totalorder 1, %s29
      %p411 = scmp.lt.s32.totalorder %s29, 5
      %p412 = pnand %p410, %p411
      %p413 = pneg %p412
      // Predicated region
      $region9: #{tpu_custom_call.1} parent=5 // pred_check
        _
      $region10: #{tpu_custom_call.1} parent=5 // pred_check_branch
        %415 = sbr.rel (%p412) target = $region12
      $region11: #{tpu_custom_call.1} parent=5 // pred_region
        %s416 = ssub.s32 %s29, 1
        // Predicated region
        $region13: #{tpu_custom_call.1} parent=11 // pred_check
          %p417 = pneg %p88
        $region14: #{tpu_custom_call.1} parent=11 // pred_check_branch
          %419 = sbr.rel (%p417) target = $region16
        $region15: #{tpu_custom_call.1} parent=11 // pred_region
          %s421 = ssub.s32 16, 16
          %422 = vsyncadd [#allocation11], %s421
          %s424 = sshll.u32 [#allocation10], 4
          %s425 = int_to_ptr.vmem [resolvable:$true] %s424
          %427 = dma.hbm_to_vmem [thread:$0]  %s1, 16, %s425, [#allocation11]
        $region16: #{tpu_custom_call.1} parent=11 // pred_fallthru
          _
        // Predicated region
        $region17: #{tpu_custom_call.1} parent=11 // pred_check
          %p428 = pneg %p109
        $region18: #{tpu_custom_call.1} parent=11 // pred_check_branch
          %430 = sbr.rel (%p428) target = $region20
        $region19: #{tpu_custom_call.1} parent=11 // pred_region
          %s432 = ssub.s32 16, 16
          %433 = vsyncadd [#allocation11], %s432
          %s435 = sshll.u32 [#allocation12], 4
          %s436 = int_to_ptr.vmem [resolvable:$true] %s435
          %438 = dma.hbm_to_vmem [thread:$0]  %s2, 16, %s436, [#allocation11]
        $region20: #{tpu_custom_call.1} parent=11 // pred_fallthru
          _
        // Predicated region
        $region21: #{tpu_custom_call.1} parent=11 // pred_check
          %p439 = pneg %p130
        $region22: #{tpu_custom_call.1} parent=11 // pred_check_branch
          %441 = sbr.rel (%p439) target = $region24
        $region23: #{tpu_custom_call.1} parent=11 // pred_region
          _
        $region24: #{tpu_custom_call.1} parent=11 // pred_fallthru
          _
        // Predicated region
        $region25: #{tpu_custom_call.1} parent=11 // pred_check
          %p442 = pneg %p151
        $region26: #{tpu_custom_call.1} parent=11 // pred_check_branch
          %444 = sbr.rel (%p442) target = $region28
        $region27: #{tpu_custom_call.1} parent=11 // pred_region
          _
        $region28: #{tpu_custom_call.1} parent=11 // pred_fallthru
          _
        // Predicated region
        $region29: #{tpu_custom_call.1} parent=11 // pred_check
          %p445 = pneg %p172
        $region30: #{tpu_custom_call.1} parent=11 // pred_check_branch
          %447 = sbr.rel (%p445) target = $region32
        $region31: #{tpu_custom_call.1} parent=11 // pred_region
          _
        $region32: #{tpu_custom_call.1} parent=11 // pred_fallthru
          _
        // Predicated region
        $region33: #{tpu_custom_call.1} parent=11 // pred_check
          %p448 = pneg %p193
        $region34: #{tpu_custom_call.1} parent=11 // pred_check_branch
          %450 = sbr.rel (%p448) target = $region36
        $region35: #{tpu_custom_call.1} parent=11 // pred_region
          _
        $region36: #{tpu_custom_call.1} parent=11 // pred_fallthru
          _
        // Predicated region
        $region37: #{tpu_custom_call.1} parent=11 // pred_check
          %p451 = pneg %p214
        $region38: #{tpu_custom_call.1} parent=11 // pred_check_branch
          %453 = sbr.rel (%p451) target = $region40
        $region39: #{tpu_custom_call.1} parent=11 // pred_region
          _
        $region40: #{tpu_custom_call.1} parent=11 // pred_fallthru
          _
        // Predicated region
        $region41: #{tpu_custom_call.1} parent=11 // pred_check
          %p454 = pneg %p235
        $region42: #{tpu_custom_call.1} parent=11 // pred_check_branch
          %456 = sbr.rel (%p454) target = $region44
        $region43: #{tpu_custom_call.1} parent=11 // pred_region
          _
        $region44: #{tpu_custom_call.1} parent=11 // pred_fallthru
          _
        // Predicated region
        $region45: #{tpu_custom_call.1} parent=11 // pred_check
          %p457 = pneg %p256
        $region46: #{tpu_custom_call.1} parent=11 // pred_check_branch
          %459 = sbr.rel (%p457) target = $region48
        $region47: #{tpu_custom_call.1} parent=11 // pred_region
          _
        $region48: #{tpu_custom_call.1} parent=11 // pred_fallthru
          _
        // Predicated region
        $region49: #{tpu_custom_call.1} parent=11 // pred_check
          %p460 = pneg %p355
        $region50: #{tpu_custom_call.1} parent=11 // pred_check_branch
          %462 = sbr.rel (%p460) target = $region52
        $region51: #{tpu_custom_call.1} parent=11 // pred_region
          _
        $region52: #{tpu_custom_call.1} parent=11 // pred_fallthru
          _
        // Predicated region
        $region53: #{tpu_custom_call.1} parent=11 // pred_check
          %p463 = pneg %p376
        $region54: #{tpu_custom_call.1} parent=11 // pred_check_branch
          %465 = sbr.rel (%p463) target = $region56
        $region55: #{tpu_custom_call.1} parent=11 // pred_region
          %s467 = ssub.s32 1024, 1024
          %468 = vsyncadd [#allocation15], %s467
          %s469 = sshll.u32 [#allocation14], 4
          %s470 = int_to_ptr.vmem [resolvable:$true] %s469
          %475 = dma.hbm_to_vmem [thread:$0]  %s14, 1024, %s470, [#allocation15], 128, 128, 8
        $region56: #{tpu_custom_call.1} parent=11 // pred_fallthru
          _
      $region12: #{tpu_custom_call.1} parent=5 // pred_fallthru
        _
      %p476 = scmp.lt.s32.totalorder %s29, 4
      // Predicated region
      $region57: #{tpu_custom_call.1} parent=5 // pred_check
        %p477 = pneg %p476
      $region58: #{tpu_custom_call.1} parent=5 // pred_check_branch
        %479 = sbr.rel (%p477) target = $region60
      $region59: #{tpu_custom_call.1} parent=5 // pred_region
        // Predicated region
        $region61: #{tpu_custom_call.1} parent=59 // pred_check
          %p480 = pneg %p61
        $region62: #{tpu_custom_call.1} parent=59 // pred_check_branch
          %482 = sbr.rel (%p480) target = $region64
        $region63: #{tpu_custom_call.1} parent=59 // pred_region
          %s483 = sand.u32 %s51, 1
          %s484 = scalar_lea.sflag [#allocation8], %s483
          %s485 = sand.u32 %s51, 1
          %s486 = smul.addr %s485, 8
          %s487 = scalar_lea.vmem [#allocation7], %s486
          %s489 = ssub.s32 128, 128
          %490 = vsyncadd %s484, %s489
          %s491 = smul.addr %s36, 128
          %s492 = scalar_lea.hbm %s0, %s491
          %s494 = sshll.u32 %s487, 4
          %s495 = int_to_ptr.vmem [resolvable:$true] %s494
          %497 = dma.hbm_to_vmem [thread:$0]  %s492, 128, %s495, %s484
        $region64: #{tpu_custom_call.1} parent=59 // pred_fallthru
          _
        // Predicated region
        $region65: #{tpu_custom_call.1} parent=59 // pred_check
          %p498 = pneg %p276
        $region66: #{tpu_custom_call.1} parent=59 // pred_check_branch
          %500 = sbr.rel (%p498) target = $region68
        $region67: #{tpu_custom_call.1} parent=59 // pred_region
          %s501 = sand.u32 %s266, 1
          %s502 = sand.u32 %s266, 1
          %s503 = smul.addr %s502, 64
          %s504 = scalar_lea.vmem [#allocation13], %s503
          %s505 = smul.addr %s37, 8
          %s506 = scalar_lea.vmem %s10, %s505
          // Predicated region
          $region69: #{tpu_custom_call.1} parent=67 // pred_check
            _
          $region70: #{tpu_custom_call.1} parent=67 // pred_check_branch
            %508 = sbr.rel (0) target = $region72
          $region71: #{tpu_custom_call.1} parent=67 // pred_region
            // Predicated region
            $region73: #{tpu_custom_call.1} parent=71 // pred_check
              _
            $region74: #{tpu_custom_call.1} parent=71 // pred_check_branch
              %510 = sbr.rel (0) target = $region76
            $region75: #{tpu_custom_call.1} parent=71 // pred_region
              // Predicated region
              $region88: #{tpu_custom_call.1} parent=75 // pred_check
                _
              $region89: #{tpu_custom_call.1} parent=75 // pred_check_branch
                %540 = sbr.rel (0) target = $region91
              $region90: #{tpu_custom_call.1} parent=75 // pred_region
                loop: start=0, step=1, limit=1
                $region92: #{tpu_custom_call.1} parent=90 // loop_pre_header
                  _
                $region93: #{tpu_custom_call.1} parent=90 // loop_header
                  %s542 = sphi 0, %s546
                  %p543 = scmp.ge.s32.totalorder %s542, 1
                  %s547 = sphi %s506, %s506
                  %s548 = sphi %s504, %s504
                $region94: #{tpu_custom_call.1} parent=90 // loop_header_branch
                  %545 = sbr.rel (%p543) target = $region98
                $region95: #{tpu_custom_call.1} parent=90 // loop_body
                  %v549 = vld [vmem:[%s547] sm:$0xff]
                  %550 = vst [vmem:[%s548] sm:$0xff] %v549
                  %v551 = vld [vmem:[%s547 + $0x10] sm:$0xff]
                  %552 = vst [vmem:[%s548 + $0x8] sm:$0xff] %v551
                  %v553 = vld [vmem:[%s547 + $0x20] sm:$0xff]
                  %554 = vst [vmem:[%s548 + $0x10] sm:$0xff] %v553
                  %v555 = vld [vmem:[%s547 + $0x30] sm:$0xff]
                  %556 = vst [vmem:[%s548 + $0x18] sm:$0xff] %v555
                  %v557 = vld [vmem:[%s547 + $0x40] sm:$0xff]
                  %558 = vst [vmem:[%s548 + $0x20] sm:$0xff] %v557
                  %v559 = vld [vmem:[%s547 + $0x50] sm:$0xff]
                  %560 = vst [vmem:[%s548 + $0x28] sm:$0xff] %v559
                  %v561 = vld [vmem:[%s547 + $0x60] sm:$0xff]
                  %562 = vst [vmem:[%s548 + $0x30] sm:$0xff] %v561
                  %v563 = vld [vmem:[%s547 + $0x70] sm:$0xff]
                  %564 = vst [vmem:[%s548 + $0x38] sm:$0xff] %v563
                $region96: #{tpu_custom_call.1} parent=90 // loop_footer
                  %s546 = sadd.s32 1, %s542
                $region97: #{tpu_custom_call.1} parent=90 // loop_footer_branch
                  %541 = sbr.rel target = $region93
                $region98: #{tpu_custom_call.1} parent=90 // loop_exit
                  _
              $region91: #{tpu_custom_call.1} parent=75 // pred_fallthru
                _
              // Predicated region
              $region99: #{tpu_custom_call.1} parent=75 // pred_check
                _
              $region100: #{tpu_custom_call.1} parent=75 // pred_check_branch
                %566 = sbr.rel target = $region102
              $region101: #{tpu_custom_call.1} parent=75 // pred_region
                _
              $region102: #{tpu_custom_call.1} parent=75 // pred_fallthru
                _
            $region76: #{tpu_custom_call.1} parent=71 // pred_fallthru
              _
            // Predicated region
            $region77: #{tpu_custom_call.1} parent=71 // pred_check
              _
            $region78: #{tpu_custom_call.1} parent=71 // pred_check_branch
              %512 = sbr.rel target = $region80
            $region79: #{tpu_custom_call.1} parent=71 // pred_region
              %s514 = ssub.s32 256, 1
              loop: start=0, step=1, limit=1
              $region81: #{tpu_custom_call.1} parent=79 // loop_pre_header
                _
              $region82: #{tpu_custom_call.1} parent=79 // loop_header
                %s516 = sphi 0, %s520
                %p517 = scmp.ge.s32.totalorder %s516, 1
                %s521 = sphi %s506, %s506
                %s522 = sphi %s504, %s504
              $region83: #{tpu_custom_call.1} parent=79 // loop_header_branch
                %519 = sbr.rel (%p517) target = $region87
              $region84: #{tpu_custom_call.1} parent=79 // loop_body
                %v523 = vld [vmem:[%s521] sm:%s514]
                %524 = vst [vmem:[%s522] sm:%s514] %v523
                %v525 = vld [vmem:[%s521 + $0x10] sm:%s514]
                %526 = vst [vmem:[%s522 + $0x8] sm:%s514] %v525
                %v527 = vld [vmem:[%s521 + $0x20] sm:%s514]
                %528 = vst [vmem:[%s522 + $0x10] sm:%s514] %v527
                %v529 = vld [vmem:[%s521 + $0x30] sm:%s514]
                %530 = vst [vmem:[%s522 + $0x18] sm:%s514] %v529
                %v531 = vld [vmem:[%s521 + $0x40] sm:%s514]
                %532 = vst [vmem:[%s522 + $0x20] sm:%s514] %v531
                %v533 = vld [vmem:[%s521 + $0x50] sm:%s514]
                %534 = vst [vmem:[%s522 + $0x28] sm:%s514] %v533
                %v535 = vld [vmem:[%s521 + $0x60] sm:%s514]
                %536 = vst [vmem:[%s522 + $0x30] sm:%s514] %v535
                %v537 = vld [vmem:[%s521 + $0x70] sm:%s514]
                %538 = vst [vmem:[%s522 + $0x38] sm:%s514] %v537
              $region85: #{tpu_custom_call.1} parent=79 // loop_footer
                %s520 = sadd.s32 1, %s516
              $region86: #{tpu_custom_call.1} parent=79 // loop_footer_branch
                %515 = sbr.rel target = $region82
              $region87: #{tpu_custom_call.1} parent=79 // loop_exit
                _
            $region80: #{tpu_custom_call.1} parent=71 // pred_fallthru
              _
          $region72: #{tpu_custom_call.1} parent=67 // pred_fallthru
            _
          %567 = vnop
        $region68: #{tpu_custom_call.1} parent=59 // pred_fallthru
          _
        // Predicated region
        $region103: #{tpu_custom_call.1} parent=59 // pred_check
          %p568 = pneg %p302
        $region104: #{tpu_custom_call.1} parent=59 // pred_check_branch
          %570 = sbr.rel (%p568) target = $region106
        $region105: #{tpu_custom_call.1} parent=59 // pred_region
          %p571 = scmp.lt.s32.totalorder %s37, 1
          %s572 = scalar_select %p571, %s37, 1
          %s573 = scalar_lea.vmem %s11, %s572
        $region106: #{tpu_custom_call.1} parent=59 // pred_fallthru
          _
        // Predicated region
        $region107: #{tpu_custom_call.1} parent=59 // pred_check
          %p574 = pneg %p328
        $region108: #{tpu_custom_call.1} parent=59 // pred_check_branch
          %576 = sbr.rel (%p574) target = $region110
        $region109: #{tpu_custom_call.1} parent=59 // pred_region
          %s577 = smul.u32 16, %s37
          %p578 = scmp.lt.s32.totalorder %s577, 31
          %s579 = scalar_select %p578, %s577, 31
          %s580 = smul.addr %s579, 8
          %s581 = scalar_lea.vmem %s12, %s580
          %s582 = smul.u32 16, %s37
        $region110: #{tpu_custom_call.1} parent=59 // pred_fallthru
          _
      $region60: #{tpu_custom_call.1} parent=5 // pred_fallthru
        _
      %p583 = scmp.le.s32.totalorder 1, %s29
      %p584 = scmp.lt.s32.totalorder %s29, 5
      %p585 = pnand %p583, %p584
      %p586 = pneg %p585
      // Predicated region
      $region111: #{tpu_custom_call.1} parent=5 // pred_check
        _
      $region112: #{tpu_custom_call.1} parent=5 // pred_check_branch
        %588 = sbr.rel (%p585) target = $region114
      $region113: #{tpu_custom_call.1} parent=5 // pred_region
        %s589 = ssub.s32 %s29, 1
        %s590 = sand.u32 %s54, 1
        %s591 = scalar_lea.sflag [#allocation8], %s590
        %s592 = sand.u32 %s54, 1
        %s593 = smul.addr %s592, 8
        %s594 = scalar_lea.vmem [#allocation7], %s593
        // Predicated region
        $region115: #{tpu_custom_call.1} parent=113 // pred_check
          %p595 = pneg %p67
        $region116: #{tpu_custom_call.1} parent=113 // pred_check_branch
          %597 = sbr.rel (%p595) target = $region118
        $region117: #{tpu_custom_call.1} parent=113 // pred_region
          %598 = dma.done %s591, 128
        $region118: #{tpu_custom_call.1} parent=113 // pred_fallthru
          _
        // Predicated region
        $region119: #{tpu_custom_call.1} parent=113 // pred_check
          %p599 = pneg %p88
        $region120: #{tpu_custom_call.1} parent=113 // pred_check_branch
          %601 = sbr.rel (%p599) target = $region122
        $region121: #{tpu_custom_call.1} parent=113 // pred_region
          %602 = dma.done [#allocation11], 16
        $region122: #{tpu_custom_call.1} parent=113 // pred_fallthru
          _
        // Predicated region
        $region123: #{tpu_custom_call.1} parent=113 // pred_check
          %p603 = pneg %p109
        $region124: #{tpu_custom_call.1} parent=113 // pred_check_branch
          %605 = sbr.rel (%p603) target = $region126
        $region125: #{tpu_custom_call.1} parent=113 // pred_region
          %606 = dma.done [#allocation11], 16
        $region126: #{tpu_custom_call.1} parent=113 // pred_fallthru
          _
        %s607 = sand.u32 %s269, 1
        %s608 = sand.u32 %s269, 1
        %s609 = smul.addr %s608, 64
        %s610 = scalar_lea.vmem [#allocation13], %s609
        // Predicated region
        $region127: #{tpu_custom_call.1} parent=113 // pred_check
          %p611 = pneg %p282
        $region128: #{tpu_custom_call.1} parent=113 // pred_check_branch
          %613 = sbr.rel (%p611) target = $region130
        $region129: #{tpu_custom_call.1} parent=113 // pred_region
          _
        $region130: #{tpu_custom_call.1} parent=113 // pred_fallthru
          _
        // Predicated region
        $region131: #{tpu_custom_call.1} parent=113 // pred_check
          %p614 = pneg %p376
        $region132: #{tpu_custom_call.1} parent=113 // pred_check_branch
          %616 = sbr.rel (%p614) target = $region134
        $region133: #{tpu_custom_call.1} parent=113 // pred_region
          %617 = dma.done [#allocation15], 1024
        $region134: #{tpu_custom_call.1} parent=113 // pred_fallthru
          _
        %s618 = sand.u32 %s54, 1
        %s619 = scalar_lea.sflag [#allocation8], %s618
        %s620 = sand.u32 %s54, 1
        %s621 = smul.addr %s620, 8
        %s622 = scalar_lea.vmem [#allocation7], %s621
        %p623 = pneg %p67
        %p624 = pneg %p64
        %p625 = pneg %p88
        %p626 = pneg %p85
        %p627 = pneg %p109
        %p628 = pneg %p106
        %p629 = pneg %p130
        %p630 = pneg %p127
        %p631 = pneg %p151
        %p632 = pneg %p148
        %p633 = pneg %p172
        %p634 = pneg %p169
        %p635 = pneg %p193
        %p636 = pneg %p190
        %p637 = pneg %p214
        %p638 = pneg %p211
        %p639 = pneg %p235
        %p640 = pneg %p232
        %p641 = pneg %p256
        %p642 = pneg %p253
        %s643 = sand.u32 %s269, 1
        %s644 = sand.u32 %s269, 1
        %s645 = smul.addr %s644, 64
        %s646 = scalar_lea.vmem [#allocation13], %s645
        %p647 = pneg %p282
        %p648 = pneg %p279
        %p649 = scmp.lt.s32.totalorder %s39, 1
        %s650 = scalar_select %p649, %s39, 1
        %s651 = scalar_lea.vmem %s11, %s650
        %p652 = pneg %p308
        %p653 = pneg %p305
        %s654 = smul.u32 16, %s39
        %p655 = scmp.lt.s32.totalorder %s654, 31
        %s656 = scalar_select %p655, %s654, 31
        %s657 = smul.addr %s656, 8
        %s658 = scalar_lea.vmem %s12, %s657
        %p659 = pneg %p334
        %p660 = pneg %p331
        %p661 = pneg %p355
        %p662 = pneg %p352
        %p663 = pneg %p376
        %p664 = pneg %p373
        %p665 = pneg %p402
        %p666 = pneg %p399
        %s667 = sand.u32 %s389, 1
        %s668 = scalar_lea.sflag [#allocation9], %s667
        %s669 = sand.u32 %s389, 1
        %s670 = smul.addr %s669, 8
        %s671 = scalar_lea.vmem [#allocation16], %s670
        %p672 = scmp.lt.s32.totalorder %s39, 1
        %s673 = scalar_select %p672, %s39, 1
        %s674 = scalar_lea.vmem %s11, %s673
        %s675 = smul.u32 16, %s39
        %p676 = scmp.lt.s32.totalorder %s675, 31
        %s677 = scalar_select %p676, %s675, 31
        %s678 = smul.addr %s677, 8
        %s679 = scalar_lea.vmem %s12, %s678
        %s680 = smul.u32 16, %s39
        %p681 = scmp.eq.s32.totalorder %s39, 0
        // Predicated region
        $region135: #{tpu_custom_call.1} parent=113 // pred_check
          %p682 = pneg %p681
        $region136: #{tpu_custom_call.1} parent=113 // pred_check_branch
          %684 = sbr.rel (%p682) target = $region138
        $region137: #{tpu_custom_call.1} parent=113 // pred_region
          %v685 = vld [vmem:[%s594] sm:$0xff]
          %v686 = vld [vmem:[#allocation10] sm:$0x1]
          %v687 = vld [vmem:[#allocation12] sm:$0x1]
          %vm688 = vcmask 523264
          %v689 = vsel %vm688, %v685, 0.0
          %690 = vadd.xlane.f32.xlu0 %v689
          %v691 = vpop.xlane.xlu0 %690
          %v692 = vrcp.pop 64.0
          %v693 = vmul.f32 %v691, %v692
          %v694 = vsub.f32 %v685, %v693
          %v695 = vmul.f32 %v694, %v694
          %v696 = vsel %vm688, %v695, 0.0
          %697 = vadd.xlane.f32.xlu0 %v696
          %v698 = vpop.xlane.xlu0 %697
          %v699 = vmul.f32 %v698, %v692
          %v700 = vadd.f32 %v699, 1e-05
          %v701 = vrsqrt.pop %v700
          %v702 = vmul.f32 %v694, %v701
          %v704 = vlaneseq
          %v705 = vshrl.u32 %v704, 7
          %v706 = vsub.s32 0, %v705
          %v707 = vrot.slane %v686, %v706
          %v709 = vmul.f32 %v702, %v707
          %v711 = vlaneseq
          %v712 = vshrl.u32 %v711, 7
          %v713 = vsub.s32 0, %v712
          %v714 = vrot.slane %v687, %v713
          %v716 = vadd.f32 %v709, %v714
          %v717 = vld [vmem:[%s3] sm:$0xff]
          %v718 = vld [vmem:[%s3 + $0x8] sm:$0xff]
          %v719 = vld [vmem:[%s3 + $0x10] sm:$0xff]
          %v720 = vld [vmem:[%s3 + $0x18] sm:$0xff]
          %v721 = vld [vmem:[%s3 + $0x20] sm:$0xff]
          %v722 = vld [vmem:[%s3 + $0x28] sm:$0xff]
          %v723 = vld [vmem:[%s3 + $0x30] sm:$0xff]
          %v724 = vld [vmem:[%s3 + $0x38] sm:$0xff]
          %v726 = vsel %vm688, %v716, 0
          %728 = vmatprep.subr.mxu0 0.0
          %729 = vmatpush1.msra.mxu0 0.0
          %730 = vmatprep.subr.mxu0 0.0
          %731 = vmatpush1.msra.mxu0 0.0
          %732 = vmatprep.subr.mxu0 0.0
          %733 = vmatpush1.msra.mxu0 0.0
          %734 = vmatprep.subr.mxu0 0.0
          %735 = vmatpush1.msra.mxu0 0.0
          %736 = vmatprep.subr.mxu0 0.0
          %737 = vmatpush1.msra.mxu0 0.0
          %738 = vmatprep.subr.mxu0 0.0
          %739 = vmatpush1.msra.mxu0 0.0
          %740 = vmatprep.subr.mxu0 0.0
          %741 = vmatpush1.msra.mxu0 0.0
          %742 = vmatprep.subr.mxu0 0.0
          %743 = vmatpush1.msra.mxu0 0.0
          %744 = vmatprep.subr.mxu0 0.0
          %745 = vmatpush1.msra.mxu0 %v724
          %746 = vmatprep.subr.mxu0 0.0
          %747 = vmatpush1.msra.mxu0 %v723
          %748 = vmatprep.subr.mxu0 0.0
          %749 = vmatpush1.msra.mxu0 %v722
          %750 = vmatprep.subr.mxu0 0.0
          %751 = vmatpush1.msra.mxu0 %v721
          %752 = vmatprep.subr.mxu0 0.0
          %753 = vmatpush1.msra.mxu0 %v720
          %754 = vmatprep.subr.mxu0 0.0
          %755 = vmatpush1.msra.mxu0 %v719
          %756 = vmatprep.subr.mxu0 0.0
          %757 = vmatpush1.msra.mxu0 %v718
          %758 = vmatprep.subr.mxu0 0.0
          %759 = vmatpush1.msra.mxu0 %v717
          %760 = vmatprep.subr.mxu0 0.0
          %761 = vmatpush2.msra.mxu0 0.0
          %762 = vmatprep.subr.mxu0 0.0
          %763 = vmatpush2.msra.mxu0 0.0
          %764 = vmatprep.subr.mxu0 0.0
          %765 = vmatpush2.msra.mxu0 0.0
          %766 = vmatprep.subr.mxu0 0.0
          %767 = vmatpush2.msra.mxu0 0.0
          %768 = vmatprep.subr.mxu0 0.0
          %769 = vmatpush2.msra.mxu0 0.0
          %770 = vmatprep.subr.mxu0 0.0
          %771 = vmatpush2.msra.mxu0 0.0
          %772 = vmatprep.subr.mxu0 0.0
          %773 = vmatpush2.msra.mxu0 0.0
          %774 = vmatprep.subr.mxu0 0.0
          %775 = vmatpush2.msra.mxu0 0.0
          %776 = vmatprep.subr.mxu0 0.0
          %777 = vmatpush2.msra.mxu0 0.0
          %778 = vmatprep.subr.mxu0 0.0
          %779 = vmatpush2.msra.mxu0 0.0
          %780 = vmatprep.subr.mxu0 0.0
          %781 = vmatpush2.msra.mxu0 0.0
          %782 = vmatprep.subr.mxu0 0.0
          %783 = vmatpush2.msra.mxu0 0.0
          %784 = vmatprep.subr.mxu0 0.0
          %785 = vmatpush2.msra.mxu0 0.0
          %786 = vmatprep.subr.mxu0 0.0
          %787 = vmatpush2.msra.mxu0 0.0
          %788 = vmatprep.subr.mxu0 0.0
          %789 = vmatpush2.msra.mxu0 0.0
          %790 = vmatprep.subr.mxu0 0.0
          %791 = vmatpush2.msra.mxu0 0.0
          %792 = vmatprep.mubr.f32.mxu0 0.0
          %793 = vmatmul.mubr.f32.gmra.mxu0 %v726
          %v794 = vpop.f32.mrf.mxu0
          %v795 = vadd.f32 0.0, %v794
          %v796 = vpop.f32.mrf.mxu0
          %797 = vdwg.mxu0
          %v798 = vld [vmem:[%s4] sm:$0xff]
          %v799 = vld [vmem:[%s4 + $0x8] sm:$0xff]
          %v800 = vld [vmem:[%s4 + $0x10] sm:$0xff]
          %v801 = vld [vmem:[%s4 + $0x18] sm:$0xff]
          %v802 = vld [vmem:[%s4 + $0x20] sm:$0xff]
          %v803 = vld [vmem:[%s4 + $0x28] sm:$0xff]
          %v804 = vld [vmem:[%s4 + $0x30] sm:$0xff]
          %v805 = vld [vmem:[%s4 + $0x38] sm:$0xff]
          %806 = vmatprep.subr.mxu0 0.0
          %807 = vmatpush1.msra.mxu0 0.0
          %808 = vmatprep.subr.mxu0 0.0
          %809 = vmatpush1.msra.mxu0 0.0
          %810 = vmatprep.subr.mxu0 0.0
          %811 = vmatpush1.msra.mxu0 0.0
          %812 = vmatprep.subr.mxu0 0.0
          %813 = vmatpush1.msra.mxu0 0.0
          %814 = vmatprep.subr.mxu0 0.0
          %815 = vmatpush1.msra.mxu0 0.0
          %816 = vmatprep.subr.mxu0 0.0
          %817 = vmatpush1.msra.mxu0 0.0
          %818 = vmatprep.subr.mxu0 0.0
          %819 = vmatpush1.msra.mxu0 0.0
          %820 = vmatprep.subr.mxu0 0.0
          %821 = vmatpush1.msra.mxu0 0.0
          %822 = vmatprep.subr.mxu0 0.0
          %823 = vmatpush1.msra.mxu0 %v805
          %824 = vmatprep.subr.mxu0 0.0
          %825 = vmatpush1.msra.mxu0 %v804
          %826 = vmatprep.subr.mxu0 0.0
          %827 = vmatpush1.msra.mxu0 %v803
          %828 = vmatprep.subr.mxu0 0.0
          %829 = vmatpush1.msra.mxu0 %v802
          %830 = vmatprep.subr.mxu0 0.0
          %831 = vmatpush1.msra.mxu0 %v801
          %832 = vmatprep.subr.mxu0 0.0
          %833 = vmatpush1.msra.mxu0 %v800
          %834 = vmatprep.subr.mxu0 0.0
          %835 = vmatpush1.msra.mxu0 %v799
          %836 = vmatprep.subr.mxu0 0.0
          %837 = vmatpush1.msra.mxu0 %v798
          %838 = vmatprep.subr.mxu0 0.0
          %839 = vmatpush2.msra.mxu0 0.0
          %840 = vmatprep.subr.mxu0 0.0
          %841 = vmatpush2.msra.mxu0 0.0
          %842 = vmatprep.subr.mxu0 0.0
          %843 = vmatpush2.msra.mxu0 0.0
          %844 = vmatprep.subr.mxu0 0.0
          %845 = vmatpush2.msra.mxu0 0.0
          %846 = vmatprep.subr.mxu0 0.0
          %847 = vmatpush2.msra.mxu0 0.0
          %848 = vmatprep.subr.mxu0 0.0
          %849 = vmatpush2.msra.mxu0 0.0
          %850 = vmatprep.subr.mxu0 0.0
          %851 = vmatpush2.msra.mxu0 0.0
          %852 = vmatprep.subr.mxu0 0.0
          %853 = vmatpush2.msra.mxu0 0.0
          %854 = vmatprep.subr.mxu0 0.0
          %855 = vmatpush2.msra.mxu0 0.0
          %856 = vmatprep.subr.mxu0 0.0
          %857 = vmatpush2.msra.mxu0 0.0
          %858 = vmatprep.subr.mxu0 0.0
          %859 = vmatpush2.msra.mxu0 0.0
          %860 = vmatprep.subr.mxu0 0.0
          %861 = vmatpush2.msra.mxu0 0.0
          %862 = vmatprep.subr.mxu0 0.0
          %863 = vmatpush2.msra.mxu0 0.0
          %864 = vmatprep.subr.mxu0 0.0
          %865 = vmatpush2.msra.mxu0 0.0
          %866 = vmatprep.subr.mxu0 0.0
          %867 = vmatpush2.msra.mxu0 0.0
          %868 = vmatprep.subr.mxu0 0.0
          %869 = vmatpush2.msra.mxu0 0.0
          %870 = vmatprep.mubr.f32.mxu0 0.0
          %871 = vmatmul.mubr.f32.gmra.mxu0 %v726
          %v872 = vpop.f32.mrf.mxu0
          %v873 = vadd.f32 0.0, %v872
          %v874 = vpop.f32.mrf.mxu0
          %875 = vdwg.mxu0
          %v876 = vld [vmem:[%s5] sm:$0xff]
          %v877 = vld [vmem:[%s5 + $0x8] sm:$0xff]
          %v878 = vld [vmem:[%s5 + $0x10] sm:$0xff]
          %v879 = vld [vmem:[%s5 + $0x18] sm:$0xff]
          %v880 = vld [vmem:[%s5 + $0x20] sm:$0xff]
          %v881 = vld [vmem:[%s5 + $0x28] sm:$0xff]
          %v882 = vld [vmem:[%s5 + $0x30] sm:$0xff]
          %v883 = vld [vmem:[%s5 + $0x38] sm:$0xff]
          %884 = vmatprep.subr.mxu0 0.0
          %885 = vmatpush1.msra.mxu0 0.0
          %886 = vmatprep.subr.mxu0 0.0
          %887 = vmatpush1.msra.mxu0 0.0
          %888 = vmatprep.subr.mxu0 0.0
          %889 = vmatpush1.msra.mxu0 0.0
          %890 = vmatprep.subr.mxu0 0.0
          %891 = vmatpush1.msra.mxu0 0.0
          %892 = vmatprep.subr.mxu0 0.0
          %893 = vmatpush1.msra.mxu0 0.0
          %894 = vmatprep.subr.mxu0 0.0
          %895 = vmatpush1.msra.mxu0 0.0
          %896 = vmatprep.subr.mxu0 0.0
          %897 = vmatpush1.msra.mxu0 0.0
          %898 = vmatprep.subr.mxu0 0.0
          %899 = vmatpush1.msra.mxu0 0.0
          %900 = vmatprep.subr.mxu0 0.0
          %901 = vmatpush1.msra.mxu0 %v883
          %902 = vmatprep.subr.mxu0 0.0
          %903 = vmatpush1.msra.mxu0 %v882
          %904 = vmatprep.subr.mxu0 0.0
          %905 = vmatpush1.msra.mxu0 %v881
          %906 = vmatprep.subr.mxu0 0.0
          %907 = vmatpush1.msra.mxu0 %v880
          %908 = vmatprep.subr.mxu0 0.0
          %909 = vmatpush1.msra.mxu0 %v879
          %910 = vmatprep.subr.mxu0 0.0
          %911 = vmatpush1.msra.mxu0 %v878
          %912 = vmatprep.subr.mxu0 0.0
          %913 = vmatpush1.msra.mxu0 %v877
          %914 = vmatprep.subr.mxu0 0.0
          %915 = vmatpush1.msra.mxu0 %v876
          %916 = vmatprep.subr.mxu0 0.0
          %917 = vmatpush2.msra.mxu0 0.0
          %918 = vmatprep.subr.mxu0 0.0
          %919 = vmatpush2.msra.mxu0 0.0
          %920 = vmatprep.subr.mxu0 0.0
          %921 = vmatpush2.msra.mxu0 0.0
          %922 = vmatprep.subr.mxu0 0.0
          %923 = vmatpush2.msra.mxu0 0.0
          %924 = vmatprep.subr.mxu0 0.0
          %925 = vmatpush2.msra.mxu0 0.0
          %926 = vmatprep.subr.mxu0 0.0
          %927 = vmatpush2.msra.mxu0 0.0
          %928 = vmatprep.subr.mxu0 0.0
          %929 = vmatpush2.msra.mxu0 0.0
          %930 = vmatprep.subr.mxu0 0.0
          %931 = vmatpush2.msra.mxu0 0.0
          %932 = vmatprep.subr.mxu0 0.0
          %933 = vmatpush2.msra.mxu0 0.0
          %934 = vmatprep.subr.mxu0 0.0
          %935 = vmatpush2.msra.mxu0 0.0
          %936 = vmatprep.subr.mxu0 0.0
          %937 = vmatpush2.msra.mxu0 0.0
          %938 = vmatprep.subr.mxu0 0.0
          %939 = vmatpush2.msra.mxu0 0.0
          %940 = vmatprep.subr.mxu0 0.0
          %941 = vmatpush2.msra.mxu0 0.0
          %942 = vmatprep.subr.mxu0 0.0
          %943 = vmatpush2.msra.mxu0 0.0
          %944 = vmatprep.subr.mxu0 0.0
          %945 = vmatpush2.msra.mxu0 0.0
          %946 = vmatprep.subr.mxu0 0.0
          %947 = vmatpush2.msra.mxu0 0.0
          %948 = vmatprep.mubr.f32.mxu0 0.0
          %949 = vmatmul.mubr.f32.gmra.mxu0 %v726
          %v950 = vpop.f32.mrf.mxu0
          %v951 = vadd.f32 0.0, %v950
          %v952 = vpop.f32.mrf.mxu0
          %953 = vdwg.mxu0
          %v954 = vmul.f32 %v873, 0.25
          %v955 = vsel %vm688, %v954, -inf
          %v956 = vrot.slane %v955, 4
          %v957 = vmax.f32 %v955, %v956
          %v958 = vrot.slane %v957, 2
          %v959 = vmax.f32 %v957, %v958
          %v960 = vrot.slane %v959, 1
          %v961 = vmax.f32 %v959, %v960
          %v962 = vsub.f32 %v954, %v961
          %v963 = vmul.f32 %v962, 1.442695
          %v964 = vpow.pop %v963
          %v965 = vsel %vm688, %v964, 0.0
          %v966 = vrot.slane %v965, 4
          %v967 = vadd.f32 %v965, %v966
          %v968 = vrot.slane %v967, 2
          %v969 = vadd.f32 %v967, %v968
          %v970 = vrot.slane %v969, 1
          %v971 = vadd.f32 %v969, %v970
          %v972 = vrcp.pop %v971
          %v973 = vmul.f32 %v964, %v972
          %v974 = vld [vmem:[#allocation14] sm:$0xff]
          %v975 = vld [vmem:[#allocation14 + $0x8] sm:$0xff]
          %v976 = vld [vmem:[#allocation14 + $0x10] sm:$0xff]
          %v977 = vld [vmem:[#allocation14 + $0x18] sm:$0xff]
          %v978 = vld [vmem:[#allocation14 + $0x20] sm:$0xff]
          %v979 = vld [vmem:[#allocation14 + $0x28] sm:$0xff]
          %v980 = vld [vmem:[#allocation14 + $0x30] sm:$0xff]
          %v981 = vld [vmem:[#allocation14 + $0x38] sm:$0xff]
          %982 = vxpose.xlu0.b32.start [1/16] %v973, 128
          %983 = vxpose.xlu0.b32.cont [2/16] 0.0, 128
          %984 = vxpose.xlu0.b32.cont [3/16] 0.0, 128
          %985 = vxpose.xlu0.b32.cont [4/16] 0.0, 128
          %986 = vxpose.xlu0.b32.cont [5/16] 0.0, 128
          %987 = vxpose.xlu0.b32.cont [6/16] 0.0, 128
          %988 = vxpose.xlu0.b32.cont [7/16] 0.0, 128
          %989 = vxpose.xlu0.b32.cont [8/16] 0.0, 128
          %990 = vxpose.xlu0.b32.cont [9/16] 0.0, 128
          %991 = vxpose.xlu0.b32.cont [10/16] 0.0, 128
          %992 = vxpose.xlu0.b32.cont [11/16] 0.0, 128
          %993 = vxpose.xlu0.b32.cont [12/16] 0.0, 128
          %994 = vxpose.xlu0.b32.cont [13/16] 0.0, 128
          %995 = vxpose.xlu0.b32.cont [14/16] 0.0, 128
          %996 = vxpose.xlu0.b32.cont [15/16] 0.0, 128
          %997 = vxpose.xlu0.b32.end [16/16] 0.0, 128
          %v998 = vpop.trf.xlu0
          %v999 = vpop.trf.xlu0
          %v1000 = vpop.trf.xlu0
          %v1001 = vpop.trf.xlu0
          %v1002 = vpop.trf.xlu0
          %v1003 = vpop.trf.xlu0
          %v1004 = vpop.trf.xlu0
          %v1005 = vpop.trf.xlu0
          %v1006 = vpop.trf.xlu0
          %v1007 = vpop.trf.xlu0
          %v1008 = vpop.trf.xlu0
          %v1009 = vpop.trf.xlu0
          %v1010 = vpop.trf.xlu0
          %v1011 = vpop.trf.xlu0
          %v1012 = vpop.trf.xlu0
          %v1013 = vpop.trf.xlu0
          %vm1014 = vcmask 64512
          %v1016 = vsel %vm1014, %v998, 0
          %v1019 = vsel %vm1014, %v999, 0
          %v1022 = vsel %vm1014, %v1000, 0
          %v1025 = vsel %vm1014, %v1001, 0
          %v1028 = vsel %vm1014, %v1002, 0
          %v1031 = vsel %vm1014, %v1003, 0
          %v1034 = vsel %vm1014, %v1004, 0
          %v1037 = vsel %vm1014, %v1005, 0
          %1039 = vmatprep.subr.mxu0 0.0
          %1040 = vmatpush1.msra.mxu0 0.0
          %1041 = vmatprep.subr.mxu0 0.0
          %1042 = vmatpush1.msra.mxu0 0.0
          %1043 = vmatprep.subr.mxu0 0.0
          %1044 = vmatpush1.msra.mxu0 0.0
          %1045 = vmatprep.subr.mxu0 0.0
          %1046 = vmatpush1.msra.mxu0 0.0
          %1047 = vmatprep.subr.mxu0 0.0
          %1048 = vmatpush1.msra.mxu0 0.0
          %1049 = vmatprep.subr.mxu0 0.0
          %1050 = vmatpush1.msra.mxu0 0.0
          %1051 = vmatprep.subr.mxu0 0.0
          %1052 = vmatpush1.msra.mxu0 0.0
          %1053 = vmatprep.subr.mxu0 0.0
          %1054 = vmatpush1.msra.mxu0 0.0
          %1055 = vmatprep.subr.mxu0 0.0
          %1056 = vmatpush1.msra.mxu0 0.0
          %1057 = vmatprep.subr.mxu0 0.0
          %1058 = vmatpush1.msra.mxu0 0.0
          %1059 = vmatprep.subr.mxu0 0.0
          %1060 = vmatpush1.msra.mxu0 0.0
          %1061 = vmatprep.subr.mxu0 0.0
          %1062 = vmatpush1.msra.mxu0 0.0
          %1063 = vmatprep.subr.mxu0 0.0
          %1064 = vmatpush1.msra.mxu0 0.0
          %1065 = vmatprep.subr.mxu0 0.0
          %1066 = vmatpush1.msra.mxu0 0.0
          %1067 = vmatprep.subr.mxu0 0.0
          %1068 = vmatpush1.msra.mxu0 0.0
          %1069 = vmatprep.subr.mxu0 0.0
          %1070 = vmatpush1.msra.mxu0 %v951
          %1071 = vmatprep.subr.mxu0 0.0
          %1072 = vmatpush2.msra.mxu0 0.0
          %1073 = vmatprep.subr.mxu0 0.0
          %1074 = vmatpush2.msra.mxu0 0.0
          %1075 = vmatprep.subr.mxu0 0.0
          %1076 = vmatpush2.msra.mxu0 0.0
          %1077 = vmatprep.subr.mxu0 0.0
          %1078 = vmatpush2.msra.mxu0 0.0
          %1079 = vmatprep.subr.mxu0 0.0
          %1080 = vmatpush2.msra.mxu0 0.0
          %1081 = vmatprep.subr.mxu0 0.0
          %1082 = vmatpush2.msra.mxu0 0.0
          %1083 = vmatprep.subr.mxu0 0.0
          %1084 = vmatpush2.msra.mxu0 0.0
          %1085 = vmatprep.subr.mxu0 0.0
          %1086 = vmatpush2.msra.mxu0 0.0
          %1087 = vmatprep.subr.mxu0 0.0
          %1088 = vmatpush2.msra.mxu0 0.0
          %1089 = vmatprep.subr.mxu0 0.0
          %1090 = vmatpush2.msra.mxu0 0.0
          %1091 = vmatprep.subr.mxu0 0.0
          %1092 = vmatpush2.msra.mxu0 0.0
          %1093 = vmatprep.subr.mxu0 0.0
          %1094 = vmatpush2.msra.mxu0 0.0
          %1095 = vmatprep.subr.mxu0 0.0
          %1096 = vmatpush2.msra.mxu0 0.0
          %1097 = vmatprep.subr.mxu0 0.0
          %1098 = vmatpush2.msra.mxu0 0.0
          %1099 = vmatprep.subr.mxu0 0.0
          %1100 = vmatpush2.msra.mxu0 0.0
          %1101 = vmatprep.subr.mxu0 0.0
          %1102 = vmatpush2.msra.mxu0 0.0
          %1103 = vmatprep.mubr.f32.mxu0 0.0
          %1104 = vmatmul.mubr.f32.gmra.mxu0 %v1016
          %v1105 = vpop.f32.mrf.mxu0
          %v1106 = vadd.f32 0.0, %v1105
          %v1107 = vpop.f32.mrf.mxu0
          %1108 = vmatprep.mubr.f32.mxu0 0.0
          %1109 = vmatmul.mubr.f32.gmra.mxu0 %v1019
          %v1110 = vpop.f32.mrf.mxu0
          %v1111 = vadd.f32 0.0, %v1110
          %v1112 = vpop.f32.mrf.mxu0
          %1113 = vmatprep.mubr.f32.mxu0 0.0
          %1114 = vmatmul.mubr.f32.gmra.mxu0 %v1022
          %v1115 = vpop.f32.mrf.mxu0
          %v1116 = vadd.f32 0.0, %v1115
          %v1117 = vpop.f32.mrf.mxu0
          %1118 = vmatprep.mubr.f32.mxu0 0.0
          %1119 = vmatmul.mubr.f32.gmra.mxu0 %v1025
          %v1120 = vpop.f32.mrf.mxu0
          %v1121 = vadd.f32 0.0, %v1120
          %v1122 = vpop.f32.mrf.mxu0
          %1123 = vmatprep.mubr.f32.mxu0 0.0
          %1124 = vmatmul.mubr.f32.gmra.mxu0 %v1028
          %v1125 = vpop.f32.mrf.mxu0
          %v1126 = vadd.f32 0.0, %v1125
          %v1127 = vpop.f32.mrf.mxu0
          %1128 = vmatprep.mubr.f32.mxu0 0.0
          %1129 = vmatmul.mubr.f32.gmra.mxu0 %v1031
          %v1130 = vpop.f32.mrf.mxu0
          %v1131 = vadd.f32 0.0, %v1130
          %v1132 = vpop.f32.mrf.mxu0
          %1133 = vmatprep.mubr.f32.mxu0 0.0
          %1134 = vmatmul.mubr.f32.gmra.mxu0 %v1034
          %v1135 = vpop.f32.mrf.mxu0
          %v1136 = vadd.f32 0.0, %v1135
          %v1137 = vpop.f32.mrf.mxu0
          %1138 = vmatprep.mubr.f32.mxu0 0.0
          %1139 = vmatmul.mubr.f32.gmra.mxu0 %v1037
          %v1140 = vpop.f32.mrf.mxu0
          %v1141 = vadd.f32 0.0, %v1140
          %v1142 = vpop.f32.mrf.mxu0
          %1143 = vdwg.mxu0
          %v1144 = vmul.f32 %v1106, %v974
          %v1145 = vmul.f32 %v1111, %v975
          %v1146 = vmul.f32 %v1116, %v976
          %v1147 = vmul.f32 %v1121, %v977
          %v1148 = vmul.f32 %v1126, %v978
          %v1149 = vmul.f32 %v1131, %v979
          %v1150 = vmul.f32 %v1136, %v980
          %v1151 = vmul.f32 %v1141, %v981
          %v1152 = vsel %vm688, %v795, -inf
          %1153 = vmax.xlane.f32.xlu0 %v1152
          %v1154 = vpop.xlane.xlu0 %1153
          %v1155 = vsub.f32 %v795, %v1154
          %v1156 = vmul.f32 %v1155, 1.442695
          %v1157 = vpow.pop %v1156
          %v1159 = vsel %vm688, %v1157, 0
          %1161 = vmatprep.subr.mxu0 0.0
          %1162 = vmatpush1.msra.mxu0 0.0
          %1163 = vmatprep.subr.mxu0 0.0
          %1164 = vmatpush1.msra.mxu0 0.0
          %1165 = vmatprep.subr.mxu0 0.0
          %1166 = vmatpush1.msra.mxu0 0.0
          %1167 = vmatprep.subr.mxu0 0.0
          %1168 = vmatpush1.msra.mxu0 0.0
          %1169 = vmatprep.subr.mxu0 0.0
          %1170 = vmatpush1.msra.mxu0 0.0
          %1171 = vmatprep.subr.mxu0 0.0
          %1172 = vmatpush1.msra.mxu0 0.0
          %1173 = vmatprep.subr.mxu0 0.0
          %1174 = vmatpush1.msra.mxu0 0.0
          %1175 = vmatprep.subr.mxu0 0.0
          %1176 = vmatpush1.msra.mxu0 0.0
          %1177 = vmatprep.subr.mxu0 0.0
          %1178 = vmatpush1.msra.mxu0 %v981
          %1179 = vmatprep.subr.mxu0 0.0
          %1180 = vmatpush1.msra.mxu0 %v980
          %1181 = vmatprep.subr.mxu0 0.0
          %1182 = vmatpush1.msra.mxu0 %v979
          %1183 = vmatprep.subr.mxu0 0.0
          %1184 = vmatpush1.msra.mxu0 %v978
          %1185 = vmatprep.subr.mxu0 0.0
          %1186 = vmatpush1.msra.mxu0 %v977
          %1187 = vmatprep.subr.mxu0 0.0
          %1188 = vmatpush1.msra.mxu0 %v976
          %1189 = vmatprep.subr.mxu0 0.0
          %1190 = vmatpush1.msra.mxu0 %v975
          %1191 = vmatprep.subr.mxu0 0.0
          %1192 = vmatpush1.msra.mxu0 %v974
          %1193 = vmatprep.subr.mxu0 0.0
          %1194 = vmatpush2.msra.mxu0 0.0
          %1195 = vmatprep.subr.mxu0 0.0
          %1196 = vmatpush2.msra.mxu0 0.0
          %1197 = vmatprep.subr.mxu0 0.0
          %1198 = vmatpush2.msra.mxu0 0.0
          %1199 = vmatprep.subr.mxu0 0.0
          %1200 = vmatpush2.msra.mxu0 0.0
          %1201 = vmatprep.subr.mxu0 0.0
          %1202 = vmatpush2.msra.mxu0 0.0
          %1203 = vmatprep.subr.mxu0 0.0
          %1204 = vmatpush2.msra.mxu0 0.0
          %1205 = vmatprep.subr.mxu0 0.0
          %1206 = vmatpush2.msra.mxu0 0.0
          %1207 = vmatprep.subr.mxu0 0.0
          %1208 = vmatpush2.msra.mxu0 0.0
          %1209 = vmatprep.subr.mxu0 0.0
          %1210 = vmatpush2.msra.mxu0 0.0
          %1211 = vmatprep.subr.mxu0 0.0
          %1212 = vmatpush2.msra.mxu0 0.0
          %1213 = vmatprep.subr.mxu0 0.0
          %1214 = vmatpush2.msra.mxu0 0.0
          %1215 = vmatprep.subr.mxu0 0.0
          %1216 = vmatpush2.msra.mxu0 0.0
          %1217 = vmatprep.subr.mxu0 0.0
          %1218 = vmatpush2.msra.mxu0 0.0
          %1219 = vmatprep.subr.mxu0 0.0
          %1220 = vmatpush2.msra.mxu0 0.0
          %1221 = vmatprep.subr.mxu0 0.0
          %1222 = vmatpush2.msra.mxu0 0.0
          %1223 = vmatprep.subr.mxu0 0.0
          %1224 = vmatpush2.msra.mxu0 0.0
          %1225 = vmatprep.mubr.f32.mxu0 0.0
          %1226 = vmatmul.mubr.f32.gmra.mxu0 %v1159
          %v1227 = vpop.f32.mrf.mxu0
          %v1228 = vadd.f32 0.0, %v1227
          %v1229 = vpop.f32.mrf.mxu0
          %1230 = vdwg.mxu0
          %v1231 = vrcp.pop %v1228
          %v1232 = vmul.f32 %v1157, %v1231
          %v1234 = vsel %vm688, %v1232, 0
          %1236 = vmatprep.subr.mxu0 0.0
          %1237 = vmatpush1.msra.mxu0 0.0
          %1238 = vmatprep.subr.mxu0 0.0
          %1239 = vmatpush1.msra.mxu0 0.0
          %1240 = vmatprep.subr.mxu0 0.0
          %1241 = vmatpush1.msra.mxu0 0.0
          %1242 = vmatprep.subr.mxu0 0.0
          %1243 = vmatpush1.msra.mxu0 0.0
          %1244 = vmatprep.subr.mxu0 0.0
          %1245 = vmatpush1.msra.mxu0 0.0
          %1246 = vmatprep.subr.mxu0 0.0
          %1247 = vmatpush1.msra.mxu0 0.0
          %1248 = vmatprep.subr.mxu0 0.0
          %1249 = vmatpush1.msra.mxu0 0.0
          %1250 = vmatprep.subr.mxu0 0.0
          %1251 = vmatpush1.msra.mxu0 0.0
          %1252 = vmatprep.subr.mxu0 0.0
          %1253 = vmatpush1.msra.mxu0 %v1151
          %1254 = vmatprep.subr.mxu0 0.0
          %1255 = vmatpush1.msra.mxu0 %v1150
          %1256 = vmatprep.subr.mxu0 0.0
          %1257 = vmatpush1.msra.mxu0 %v1149
          %1258 = vmatprep.subr.mxu0 0.0
          %1259 = vmatpush1.msra.mxu0 %v1148
          %1260 = vmatprep.subr.mxu0 0.0
          %1261 = vmatpush1.msra.mxu0 %v1147
          %1262 = vmatprep.subr.mxu0 0.0
          %1263 = vmatpush1.msra.mxu0 %v1146
          %1264 = vmatprep.subr.mxu0 0.0
          %1265 = vmatpush1.msra.mxu0 %v1145
          %1266 = vmatprep.subr.mxu0 0.0
          %1267 = vmatpush1.msra.mxu0 %v1144
          %1268 = vmatprep.subr.mxu0 0.0
          %1269 = vmatpush2.msra.mxu0 0.0
          %1270 = vmatprep.subr.mxu0 0.0
          %1271 = vmatpush2.msra.mxu0 0.0
          %1272 = vmatprep.subr.mxu0 0.0
          %1273 = vmatpush2.msra.mxu0 0.0
          %1274 = vmatprep.subr.mxu0 0.0
          %1275 = vmatpush2.msra.mxu0 0.0
          %1276 = vmatprep.subr.mxu0 0.0
          %1277 = vmatpush2.msra.mxu0 0.0
          %1278 = vmatprep.subr.mxu0 0.0
          %1279 = vmatpush2.msra.mxu0 0.0
          %1280 = vmatprep.subr.mxu0 0.0
          %1281 = vmatpush2.msra.mxu0 0.0
          %1282 = vmatprep.subr.mxu0 0.0
          %1283 = vmatpush2.msra.mxu0 0.0
          %1284 = vmatprep.subr.mxu0 0.0
          %1285 = vmatpush2.msra.mxu0 0.0
          %1286 = vmatprep.subr.mxu0 0.0
          %1287 = vmatpush2.msra.mxu0 0.0
          %1288 = vmatprep.subr.mxu0 0.0
          %1289 = vmatpush2.msra.mxu0 0.0
          %1290 = vmatprep.subr.mxu0 0.0
          %1291 = vmatpush2.msra.mxu0 0.0
          %1292 = vmatprep.subr.mxu0 0.0
          %1293 = vmatpush2.msra.mxu0 0.0
          %1294 = vmatprep.subr.mxu0 0.0
          %1295 = vmatpush2.msra.mxu0 0.0
          %1296 = vmatprep.subr.mxu0 0.0
          %1297 = vmatpush2.msra.mxu0 0.0
          %1298 = vmatprep.subr.mxu0 0.0
          %1299 = vmatpush2.msra.mxu0 0.0
          %1300 = vmatprep.mubr.f32.mxu0 0.0
          %1301 = vmatmul.mubr.f32.gmra.mxu0 %v1234
          %v1302 = vpop.f32.mrf.mxu0
          %v1303 = vadd.f32 0.0, %v1302
          %v1304 = vpop.f32.mrf.mxu0
          %1305 = vdwg.mxu0
          %vm1306 = vcmask 130048
          %1307 = vst.msk [vmem:[#allocation5] sm:$0xff] %vm1306, %v1303
          %1309 = vrot.lane.b32.xlu0 %v1303, 112
          %v1310 = vpop.permute.xlu0 %1309
          %1312 = vst.msk [vmem:[#allocation5 + $0x8] sm:$0xff] %vm1306, %v1310
          %1313 = vrot.lane.b32.xlu0 %v1303, 96
          %v1314 = vpop.permute.xlu0 %1313
          %1316 = vst.msk [vmem:[#allocation5 + $0x10] sm:$0xff] %vm1306, %v1314
          %1317 = vrot.lane.b32.xlu0 %v1303, 80
          %v1318 = vpop.permute.xlu0 %1317
          %1320 = vst.msk [vmem:[#allocation5 + $0x18] sm:$0xff] %vm1306, %v1318
          %v1321 = vld [vmem:[#allocation5] ss:$4 sm:$0xff]
          %1322 = vst.msk [vmem:[#allocation6] sm:$0xff] %vm1306, %v1321
          %s1323 = scalar_lea.vmem [#allocation5], 1
          %v1324 = vld [vmem:[%s1323] ss:$4 sm:$0xff]
          %1326 = vrot.lane.b32.xlu0 %v1324, 16
          %v1327 = vpop.permute.xlu0 %1326
          %vm1329 = vcmask 261248
          %1330 = vst.msk [vmem:[#allocation6] sm:$0xff] %vm1329, %v1327
          %s1331 = scalar_lea.vmem [#allocation5], 2
          %v1332 = vld [vmem:[%s1331] ss:$4 sm:$0xff]
          %1334 = vrot.lane.b32.xlu0 %v1332, 32
          %v1335 = vpop.permute.xlu0 %1334
          %vm1337 = vcmask 392448
          %1338 = vst.msk [vmem:[#allocation6] sm:$0xff] %vm1337, %v1335
          %s1339 = scalar_lea.vmem [#allocation5], 3
          %v1340 = vld [vmem:[%s1339] ss:$4 sm:$0xff]
          %1342 = vrot.lane.b32.xlu0 %v1340, 48
          %v1343 = vpop.permute.xlu0 %1342
          %vm1345 = vcmask 523648
          %1346 = vst.msk [vmem:[#allocation6] sm:$0xff] %vm1345, %v1343
          %v1347 = vld [vmem:[#allocation6] sm:$0xff]
          %v1348 = vld [vmem:[%s6] sm:$0xff]
          %v1349 = vld [vmem:[%s6 + $0x8] sm:$0xff]
          %v1350 = vld [vmem:[%s6 + $0x10] sm:$0xff]
          %v1351 = vld [vmem:[%s6 + $0x18] sm:$0xff]
          %v1352 = vld [vmem:[%s6 + $0x20] sm:$0xff]
          %v1353 = vld [vmem:[%s6 + $0x28] sm:$0xff]
          %v1354 = vld [vmem:[%s6 + $0x30] sm:$0xff]
          %v1355 = vld [vmem:[%s6 + $0x38] sm:$0xff]
          %v1356 = vld [vmem:[%s7] sm:$0x1]
          %v1358 = vlaneseq
          %v1359 = vshrl.u32 %v1358, 7
          %v1360 = vsub.s32 0, %v1359
          %v1361 = vrot.slane %v1356, %v1360
          %v1364 = vsel %vm688, %v1347, 0
          %1366 = vmatprep.subr.mxu0 0.0
          %1367 = vmatpush1.msra.mxu0 0.0
          %1368 = vmatprep.subr.mxu0 0.0
          %1369 = vmatpush1.msra.mxu0 0.0
          %1370 = vmatprep.subr.mxu0 0.0
          %1371 = vmatpush1.msra.mxu0 0.0
          %1372 = vmatprep.subr.mxu0 0.0
          %1373 = vmatpush1.msra.mxu0 0.0
          %1374 = vmatprep.subr.mxu0 0.0
          %1375 = vmatpush1.msra.mxu0 0.0
          %1376 = vmatprep.subr.mxu0 0.0
          %1377 = vmatpush1.msra.mxu0 0.0
          %1378 = vmatprep.subr.mxu0 0.0
          %1379 = vmatpush1.msra.mxu0 0.0
          %1380 = vmatprep.subr.mxu0 0.0
          %1381 = vmatpush1.msra.mxu0 0.0
          %1382 = vmatprep.subr.mxu0 0.0
          %1383 = vmatpush1.msra.mxu0 %v1355
          %1384 = vmatprep.subr.mxu0 0.0
          %1385 = vmatpush1.msra.mxu0 %v1354
          %1386 = vmatprep.subr.mxu0 0.0
          %1387 = vmatpush1.msra.mxu0 %v1353
          %1388 = vmatprep.subr.mxu0 0.0
          %1389 = vmatpush1.msra.mxu0 %v1352
          %1390 = vmatprep.subr.mxu0 0.0
          %1391 = vmatpush1.msra.mxu0 %v1351
          %1392 = vmatprep.subr.mxu0 0.0
          %1393 = vmatpush1.msra.mxu0 %v1350
          %1394 = vmatprep.subr.mxu0 0.0
          %1395 = vmatpush1.msra.mxu0 %v1349
          %1396 = vmatprep.subr.mxu0 0.0
          %1397 = vmatpush1.msra.mxu0 %v1348
          %1398 = vmatprep.subr.mxu0 0.0
          %1399 = vmatpush2.msra.mxu0 0.0
          %1400 = vmatprep.subr.mxu0 0.0
          %1401 = vmatpush2.msra.mxu0 0.0
          %1402 = vmatprep.subr.mxu0 0.0
          %1403 = vmatpush2.msra.mxu0 0.0
          %1404 = vmatprep.subr.mxu0 0.0
          %1405 = vmatpush2.msra.mxu0 0.0
          %1406 = vmatprep.subr.mxu0 0.0
          %1407 = vmatpush2.msra.mxu0 0.0
          %1408 = vmatprep.subr.mxu0 0.0
          %1409 = vmatpush2.msra.mxu0 0.0
          %1410 = vmatprep.subr.mxu0 0.0
          %1411 = vmatpush2.msra.mxu0 0.0
          %1412 = vmatprep.subr.mxu0 0.0
          %1413 = vmatpush2.msra.mxu0 0.0
          %1414 = vmatprep.subr.mxu0 0.0
          %1415 = vmatpush2.msra.mxu0 0.0
          %1416 = vmatprep.subr.mxu0 0.0
          %1417 = vmatpush2.msra.mxu0 0.0
          %1418 = vmatprep.subr.mxu0 0.0
          %1419 = vmatpush2.msra.mxu0 0.0
          %1420 = vmatprep.subr.mxu0 0.0
          %1421 = vmatpush2.msra.mxu0 0.0
          %1422 = vmatprep.subr.mxu0 0.0
          %1423 = vmatpush2.msra.mxu0 0.0
          %1424 = vmatprep.subr.mxu0 0.0
          %1425 = vmatpush2.msra.mxu0 0.0
          %1426 = vmatprep.subr.mxu0 0.0
          %1427 = vmatpush2.msra.mxu0 0.0
          %1428 = vmatprep.subr.mxu0 0.0
          %1429 = vmatpush2.msra.mxu0 0.0
          %1430 = vmatprep.mubr.f32.mxu0 0.0
          %1431 = vmatmul.mubr.f32.gmra.mxu0 %v1364
          %v1432 = vpop.f32.mrf.mxu0
          %v1433 = vadd.f32 %v1361, %v1432
          %v1434 = vpop.f32.mrf.mxu0
          %1435 = vdwg.mxu0
          %v1436 = vadd.f32 %v685, %v1433
          %1437 = vst.msk [vmem:[#allocation2] sm:$0xff] %vm688, %v1436
          %v1438 = vld [vmem:[%s8] sm:$0x1]
          %v1439 = vld [vmem:[%s9] sm:$0x1]
          %v1440 = vsel %vm688, %v1436, 0.0
          %1441 = vadd.xlane.f32.xlu0 %v1440
          %v1442 = vpop.xlane.xlu0 %1441
          %v1443 = vmul.f32 %v1442, %v692
          %v1444 = vsub.f32 %v1436, %v1443
          %v1445 = vmul.f32 %v1444, %v1444
          %v1446 = vsel %vm688, %v1445, 0.0
          %1447 = vadd.xlane.f32.xlu0 %v1446
          %v1448 = vpop.xlane.xlu0 %1447
          %v1449 = vmul.f32 %v1448, %v692
          %v1450 = vadd.f32 %v1449, 1e-05
          %v1451 = vrsqrt.pop %v1450
          %v1452 = vmul.f32 %v1444, %v1451
          %v1454 = vlaneseq
          %v1455 = vshrl.u32 %v1454, 7
          %v1456 = vsub.s32 0, %v1455
          %v1457 = vrot.slane %v1438, %v1456
          %v1459 = vmul.f32 %v1452, %v1457
          %v1461 = vlaneseq
          %v1462 = vshrl.u32 %v1461, 7
          %v1463 = vsub.s32 0, %v1462
          %v1464 = vrot.slane %v1439, %v1463
          %v1466 = vadd.f32 %v1459, %v1464
          %1467 = vst.msk [vmem:[#allocation3] sm:$0xff] %vm688, %v1466
          %1468 = vst.msk [vmem:[#allocation4] sm:$0xff] %vm688, 0.0
        $region138: #{tpu_custom_call.1} parent=113 // pred_fallthru
          _
        %v1469 = vld [vmem:[#allocation3] sm:$0xff]
        %v1470 = vld [vmem:[%s610] sm:$0xff]
        %v1471 = vld [vmem:[%s610 + $0x8] sm:$0xff]
        %v1472 = vld [vmem:[%s610 + $0x10] sm:$0xff]
        %v1473 = vld [vmem:[%s610 + $0x18] sm:$0xff]
        %v1474 = vld [vmem:[%s610 + $0x20] sm:$0xff]
        %v1475 = vld [vmem:[%s610 + $0x28] sm:$0xff]
        %v1476 = vld [vmem:[%s610 + $0x30] sm:$0xff]
        %v1477 = vld [vmem:[%s610 + $0x38] sm:$0xff]
        %v1478 = vld [vmem:[%s674] sm:$0x1]
        %v1480 = vlaneseq
        %v1481 = vshrl.u32 %v1480, 7
        %v1482 = vsub.s32 0, %v1481
        %v1483 = vrot.slane %v1478, %v1482
        %vm1485 = vcmask 523264
        %v1487 = vsel %vm1485, %v1469, 0
        %1489 = vmatprep.subr.mxu0 0.0
        %1490 = vmatpush1.msra.mxu0 0.0
        %1491 = vmatprep.subr.mxu0 0.0
        %1492 = vmatpush1.msra.mxu0 0.0
        %1493 = vmatprep.subr.mxu0 0.0
        %1494 = vmatpush1.msra.mxu0 0.0
        %1495 = vmatprep.subr.mxu0 0.0
        %1496 = vmatpush1.msra.mxu0 0.0
        %1497 = vmatprep.subr.mxu0 0.0
        %1498 = vmatpush1.msra.mxu0 0.0
        %1499 = vmatprep.subr.mxu0 0.0
        %1500 = vmatpush1.msra.mxu0 0.0
        %1501 = vmatprep.subr.mxu0 0.0
        %1502 = vmatpush1.msra.mxu0 0.0
        %1503 = vmatprep.subr.mxu0 0.0
        %1504 = vmatpush1.msra.mxu0 0.0
        %1505 = vmatprep.subr.mxu0 0.0
        %1506 = vmatpush1.msra.mxu0 %v1477
        %1507 = vmatprep.subr.mxu0 0.0
        %1508 = vmatpush1.msra.mxu0 %v1476
        %1509 = vmatprep.subr.mxu0 0.0
        %1510 = vmatpush1.msra.mxu0 %v1475
        %1511 = vmatprep.subr.mxu0 0.0
        %1512 = vmatpush1.msra.mxu0 %v1474
        %1513 = vmatprep.subr.mxu0 0.0
        %1514 = vmatpush1.msra.mxu0 %v1473
        %1515 = vmatprep.subr.mxu0 0.0
        %1516 = vmatpush1.msra.mxu0 %v1472
        %1517 = vmatprep.subr.mxu0 0.0
        %1518 = vmatpush1.msra.mxu0 %v1471
        %1519 = vmatprep.subr.mxu0 0.0
        %1520 = vmatpush1.msra.mxu0 %v1470
        %1521 = vmatprep.subr.mxu0 0.0
        %1522 = vmatpush2.msra.mxu0 0.0
        %1523 = vmatprep.subr.mxu0 0.0
        %1524 = vmatpush2.msra.mxu0 0.0
        %1525 = vmatprep.subr.mxu0 0.0
        %1526 = vmatpush2.msra.mxu0 0.0
        %1527 = vmatprep.subr.mxu0 0.0
        %1528 = vmatpush2.msra.mxu0 0.0
        %1529 = vmatprep.subr.mxu0 0.0
        %1530 = vmatpush2.msra.mxu0 0.0
        %1531 = vmatprep.subr.mxu0 0.0
        %1532 = vmatpush2.msra.mxu0 0.0
        %1533 = vmatprep.subr.mxu0 0.0
        %1534 = vmatpush2.msra.mxu0 0.0
        %1535 = vmatprep.subr.mxu0 0.0
        %1536 = vmatpush2.msra.mxu0 0.0
        %1537 = vmatprep.subr.mxu0 0.0
        %1538 = vmatpush2.msra.mxu0 0.0
        %1539 = vmatprep.subr.mxu0 0.0
        %1540 = vmatpush2.msra.mxu0 0.0
        %1541 = vmatprep.subr.mxu0 0.0
        %1542 = vmatpush2.msra.mxu0 0.0
        %1543 = vmatprep.subr.mxu0 0.0
        %1544 = vmatpush2.msra.mxu0 0.0
        %1545 = vmatprep.subr.mxu0 0.0
        %1546 = vmatpush2.msra.mxu0 0.0
        %1547 = vmatprep.subr.mxu0 0.0
        %1548 = vmatpush2.msra.mxu0 0.0
        %1549 = vmatprep.subr.mxu0 0.0
        %1550 = vmatpush2.msra.mxu0 0.0
        %1551 = vmatprep.subr.mxu0 0.0
        %1552 = vmatpush2.msra.mxu0 0.0
        %1553 = vmatprep.mubr.f32.mxu0 0.0
        %1554 = vmatmul.mubr.f32.gmra.mxu0 %v1487
        %v1555 = vpop.f32.mrf.mxu0
        %v1556 = vadd.f32 %v1483, %v1555
        %v1557 = vpop.f32.mrf.mxu0
        %1558 = vdwg.mxu0
        %v1559 = vmul.f32 %v1556, 0.5
        %v1560 = vrcp.pop 1.4142135
        %v1561 = vmul.f32 %v1556, %v1560
        %v1562 = verf.f32.pop %v1561
        %v1563 = vadd.f32 %v1562, 1.0
        %v1564 = vmul.f32 %v1559, %v1563
        %v1565 = vld [vmem:[#allocation4] sm:$0xff]
        %v1566 = vld [vmem:[%s679] sm:$0xff]
        %v1567 = vld [vmem:[%s679 + $0x8] sm:$0xff]
        %v1568 = vld [vmem:[%s679 + $0x10] sm:$0xff]
        %v1569 = vld [vmem:[%s679 + $0x18] sm:$0xff]
        %v1570 = vld [vmem:[%s679 + $0x20] sm:$0xff]
        %v1571 = vld [vmem:[%s679 + $0x28] sm:$0xff]
        %v1572 = vld [vmem:[%s679 + $0x30] sm:$0xff]
        %v1573 = vld [vmem:[%s679 + $0x38] sm:$0xff]
        %v1574 = vld [vmem:[%s679 + $0x40] sm:$0xff]
        %v1575 = vld [vmem:[%s679 + $0x48] sm:$0xff]
        %v1576 = vld [vmem:[%s679 + $0x50] sm:$0xff]
        %v1577 = vld [vmem:[%s679 + $0x58] sm:$0xff]
        %v1578 = vld [vmem:[%s679 + $0x60] sm:$0xff]
        %v1579 = vld [vmem:[%s679 + $0x68] sm:$0xff]
        %v1580 = vld [vmem:[%s679 + $0x70] sm:$0xff]
        %v1581 = vld [vmem:[%s679 + $0x78] sm:$0xff]
        %1582 = vmatprep.subr.mxu0 0.0
        %1583 = vmatpush1.msra.mxu0 %v1581
        %1584 = vmatprep.subr.mxu0 0.0
        %1585 = vmatpush1.msra.mxu0 %v1580
        %1586 = vmatprep.subr.mxu0 0.0
        %1587 = vmatpush1.msra.mxu0 %v1579
        %1588 = vmatprep.subr.mxu0 0.0
        %1589 = vmatpush1.msra.mxu0 %v1578
        %1590 = vmatprep.subr.mxu0 0.0
        %1591 = vmatpush1.msra.mxu0 %v1577
        %1592 = vmatprep.subr.mxu0 0.0
        %1593 = vmatpush1.msra.mxu0 %v1576
        %1594 = vmatprep.subr.mxu0 0.0
        %1595 = vmatpush1.msra.mxu0 %v1575
        %1596 = vmatprep.subr.mxu0 0.0
        %1597 = vmatpush1.msra.mxu0 %v1574
        %1598 = vmatprep.subr.mxu0 0.0
        %1599 = vmatpush1.msra.mxu0 %v1573
        %1600 = vmatprep.subr.mxu0 0.0
        %1601 = vmatpush1.msra.mxu0 %v1572
        %1602 = vmatprep.subr.mxu0 0.0
        %1603 = vmatpush1.msra.mxu0 %v1571
        %1604 = vmatprep.subr.mxu0 0.0
        %1605 = vmatpush1.msra.mxu0 %v1570
        %1606 = vmatprep.subr.mxu0 0.0
        %1607 = vmatpush1.msra.mxu0 %v1569
        %1608 = vmatprep.subr.mxu0 0.0
        %1609 = vmatpush1.msra.mxu0 %v1568
        %1610 = vmatprep.subr.mxu0 0.0
        %1611 = vmatpush1.msra.mxu0 %v1567
        %1612 = vmatprep.subr.mxu0 0.0
        %1613 = vmatpush1.msra.mxu0 %v1566
        %1614 = vmatprep.subr.mxu0 0.0
        %1615 = vmatpush2.msra.mxu0 0.0
        %1616 = vmatprep.subr.mxu0 0.0
        %1617 = vmatpush2.msra.mxu0 0.0
        %1618 = vmatprep.subr.mxu0 0.0
        %1619 = vmatpush2.msra.mxu0 0.0
        %1620 = vmatprep.subr.mxu0 0.0
        %1621 = vmatpush2.msra.mxu0 0.0
        %1622 = vmatprep.subr.mxu0 0.0
        %1623 = vmatpush2.msra.mxu0 0.0
        %1624 = vmatprep.subr.mxu0 0.0
        %1625 = vmatpush2.msra.mxu0 0.0
        %1626 = vmatprep.subr.mxu0 0.0
        %1627 = vmatpush2.msra.mxu0 0.0
        %1628 = vmatprep.subr.mxu0 0.0
        %1629 = vmatpush2.msra.mxu0 0.0
        %1630 = vmatprep.subr.mxu0 0.0
        %1631 = vmatpush2.msra.mxu0 0.0
        %1632 = vmatprep.subr.mxu0 0.0
        %1633 = vmatpush2.msra.mxu0 0.0
        %1634 = vmatprep.subr.mxu0 0.0
        %1635 = vmatpush2.msra.mxu0 0.0
        %1636 = vmatprep.subr.mxu0 0.0
        %1637 = vmatpush2.msra.mxu0 0.0
        %1638 = vmatprep.subr.mxu0 0.0
        %1639 = vmatpush2.msra.mxu0 0.0
        %1640 = vmatprep.subr.mxu0 0.0
        %1641 = vmatpush2.msra.mxu0 0.0
        %1642 = vmatprep.subr.mxu0 0.0
        %1643 = vmatpush2.msra.mxu0 0.0
        %1644 = vmatprep.subr.mxu0 0.0
        %1645 = vmatpush2.msra.mxu0 0.0
        %1646 = vmatprep.mubr.f32.mxu0 0.0
        %1647 = vmatmul.mubr.f32.gmra.mxu0 %v1564
        %v1648 = vpop.f32.mrf.mxu0
        %v1649 = vadd.f32 0.0, %v1648
        %v1650 = vpop.f32.mrf.mxu0
        %1651 = vdwg.mxu0
        %v1652 = vadd.f32 %v1565, %v1649
        %1653 = vst.msk [vmem:[#allocation4] sm:$0xff] %vm1485, %v1652
        %p1654 = scmp.eq.s32.totalorder %s39, 1
        // Predicated region
        $region139: #{tpu_custom_call.1} parent=113 // pred_check
          %p1655 = pneg %p1654
        $region140: #{tpu_custom_call.1} parent=113 // pred_check_branch
          %1657 = sbr.rel (%p1655) target = $region142
        $region141: #{tpu_custom_call.1} parent=113 // pred_region
          %v1658 = vld [vmem:[#allocation2] sm:$0xff]
          %v1659 = vld [vmem:[#allocation4] sm:$0xff]
          %v1660 = vadd.f32 %v1658, %v1659
          %v1661 = vld [vmem:[%s13] sm:$0x1]
          %v1663 = vlaneseq
          %v1664 = vshrl.u32 %v1663, 7
          %v1665 = vsub.s32 0, %v1664
          %v1666 = vrot.slane %v1661, %v1665
          %v1668 = vadd.f32 %v1660, %v1666
          %1669 = vst.msk [vmem:[%s671] sm:$0xff] %vm1485, %v1668
        $region142: #{tpu_custom_call.1} parent=113 // pred_fallthru
          _
        %s1670 = sand.u32 %s389, 1
        %s1671 = scalar_lea.sflag [#allocation9], %s1670
        %s1672 = sand.u32 %s389, 1
        %s1673 = smul.addr %s1672, 8
        %s1674 = scalar_lea.vmem [#allocation16], %s1673
        // Predicated region
        $region143: #{tpu_custom_call.1} parent=113 // pred_check
          %p1675 = pneg %p399
        $region144: #{tpu_custom_call.1} parent=113 // pred_check_branch
          %1677 = sbr.rel (%p1675) target = $region146
        $region145: #{tpu_custom_call.1} parent=113 // pred_region
          %s1679 = ssub.s32 128, 128
          %1680 = vsyncadd %s1671, %s1679
          %s1681 = smul.addr %s38, 128
          %s1682 = scalar_lea.hbm %s15, %s1681
          %s1684 = sshll.u32 %s1674, 4
          %s1685 = int_to_ptr.vmem [resolvable:$true] %s1684
          %1687 = dma.vmem_to_hbm [thread:$0]  %s1685, 128, %s1682, %s1671
        $region146: #{tpu_custom_call.1} parent=113 // pred_fallthru
          _
      $region114: #{tpu_custom_call.1} parent=5 // pred_fallthru
        _
      %p1688 = scmp.le.s32.totalorder 2, %s29
      // Predicated region
      $region147: #{tpu_custom_call.1} parent=5 // pred_check
        %p1689 = pneg %p1688
      $region148: #{tpu_custom_call.1} parent=5 // pred_check_branch
        %1691 = sbr.rel (%p1689) target = $region150
      $region149: #{tpu_custom_call.1} parent=5 // pred_region
        %s1692 = ssub.s32 %s29, 2
        // Predicated region
        $region151: #{tpu_custom_call.1} parent=149 // pred_check
          %p1693 = pneg %p405
        $region152: #{tpu_custom_call.1} parent=149 // pred_check_branch
          %1695 = sbr.rel (%p1693) target = $region154
        $region153: #{tpu_custom_call.1} parent=149 // pred_region
          %s1696 = sand.u32 %s390, 1
          %s1697 = scalar_lea.sflag [#allocation9], %s1696
          %s1698 = sand.u32 %s390, 1
          %s1699 = smul.addr %s1698, 8
          %s1700 = scalar_lea.vmem [#allocation16], %s1699
          %1701 = dma.done %s1697, 128
        $region154: #{tpu_custom_call.1} parent=149 // pred_fallthru
          _
      $region150: #{tpu_custom_call.1} parent=5 // pred_fallthru
        _
    $region6: #{tpu_custom_call.1} parent=1 // loop_footer
      %s33 = sadd.s32 1, %s29
    $region7: #{tpu_custom_call.1} parent=1 // loop_footer_branch
      %28 = sbr.rel target = $region3
    $region8: #{tpu_custom_call.1} parent=1 // loop_exit
      _
    %1702 = vsyncpa [#allocation8], 1
    %s1703 = scalar_lea.sflag [#allocation8], 1
    %1704 = vsyncpa %s1703, 1
    %1705 = vsyncpa [#allocation11], 1
    %1706 = vsyncpa [#allocation15], 1
    %1707 = vsyncpa [#allocation9], 1
    %s1708 = scalar_lea.sflag [#allocation9], 1
    %1709 = vsyncpa %s1708, 1

// kernel: tpu_custom_call.1
$region0: #{tpu_custom_call.1}
  #allocation0 [shape = 'u32[]', space=smem, size = 0x4, offset = 0x4, fixed_abs, tag = 'smem constant byte address 0x4 - core index']
  #allocation1 [shape = 'u32[144,128]{1,0:T(1,128)}', space=vmem, size = 0x12000, scoped, tag = 'internal scratch']
  #allocation2 [shape = 'f32[8,64]{1,0:T(8,128)}', space=vmem, size = 0x1000, scoped, tag = 'scratch operand']
  #allocation3 [shape = 'f32[8,64]{1,0:T(8,128)}', space=vmem, size = 0x1000, scoped, tag = 'scratch operand']
  #allocation4 [shape = 'f32[8,64]{1,0:T(8,128)}', space=vmem, size = 0x1000, scoped, tag = 'scratch operand']
  #allocation5 [shape = 'f32[32,16]{1,0:T(8,128)}', space=vmem, size = 0x4000, scoped, tag = 'scratch operand']
  #allocation6 [shape = 'f32[8,64]{1,0:T(8,128)}', space=vmem, size = 0x1000, scoped, tag = 'scratch operand']
  %s0 = inlined_call_operand.hbm [shape: f32[2,8,64], index: 0, kind: input, shape index: {}]
  %s1 = inlined_call_operand.hbm [shape: f32[1,64], index: 1, kind: input, shape index: {}]
  %s2 = inlined_call_operand.hbm [shape: f32[1,64], index: 2, kind: input, shape index: {}]
  %s3 = inlined_call_operand.vmem [shape: f32[64,64], index: 3, kind: input, shape index: {}]
  %s4 = inlined_call_operand.vmem [shape: f32[64,64], index: 4, kind: input, shape index: {}]
  %s5 = inlined_call_operand.vmem [shape: f32[64,64], index: 5, kind: input, shape index: {}]
  %s6 = inlined_call_operand.vmem [shape: f32[64,64], index: 6, kind: input, shape index: {}]
  %s7 = inlined_call_operand.vmem [shape: f32[1,64], index: 7, kind: input, shape index: {}]
  %s8 = inlined_call_operand.vmem [shape: f32[1,64], index: 8, kind: input, shape index: {}]
  %s9 = inlined_call_operand.vmem [shape: f32[1,64], index: 9, kind: input, shape index: {}]
  %s10 = inlined_call_operand.vmem [shape: f32[64,256], index: 10, kind: input, shape index: {}]
  %s11 = inlined_call_operand.vmem [shape: f32[1,256], index: 11, kind: input, shape index: {}]
  %s12 = inlined_call_operand.vmem [shape: f32[256,64], index: 12, kind: input, shape index: {}]
  %s13 = inlined_call_operand.vmem [shape: f32[1,64], index: 13, kind: input, shape index: {}]
  %s14 = inlined_call_operand.hbm [shape: f32[64,64], index: 14, kind: input, shape index: {}]
  %s15 = inlined_call_operand.hbm [shape: f32[2,8,64], index: 15, kind: output, shape index: {}]
  %s16 = sld [smem:[#allocation0]]
  $region155: #{tpu_custom_call.1} parent=0
    _
  %s18 = ssub.s32 1, %s16
  %s19 = scalar_select 0, %s18, %s16
  $region1: #{tpu_custom_call.1} parent=0
    #allocation7 [shape = 'u8[8192]{0}', space=vmem, size = 0x2000, scoped, tag = 'input window, operand 0']
    #allocation8 [shape = 's32[2]{0}', space=sflag, size = 0x8, scoped, tag = 'scoped memory for tpu_custom_call.1']
    #allocation9 [shape = 's32[2]{0}', space=sflag, size = 0x8, scoped, tag = 'scoped memory for tpu_custom_call.1']
    #allocation10 [shape = 'u8[512]{0}', space=vmem, size = 0x400, scoped, tag = 'input window, operand 1, single buffered']
    #allocation11 [shape = 's32[1]{0}', space=sflag, size = 0x4, scoped, tag = 'scoped memory for tpu_custom_call.1']
    #allocation12 [shape = 'u8[512]{0}', space=vmem, size = 0x400, scoped, tag = 'input window, operand 2, single buffered']
    #allocation13 [shape = 'u8[65536]{0}', space=vmem, size = 0x10000, scoped, tag = 'input window, operand 10']
    #allocation14 [shape = 'u8[32768]{0}', space=vmem, size = 0x8000, scoped, tag = 'input window, operand 14, single buffered']
    #allocation15 [shape = 's32[1]{0}', space=sflag, size = 0x4, scoped, tag = 'scoped memory for tpu_custom_call.1']
    #allocation16 [shape = 'u8[8192]{0}', space=vmem, size = 0x2000, scoped, tag = 'output window, operand 0']
    %20 = vsyncpa [#allocation8], 0
    %s21 = scalar_lea.sflag [#allocation8], 1
    %22 = vsyncpa %s21, 0
    %23 = vsyncpa [#allocation11], 0
    %24 = vsyncpa [#allocation15], 0
    %25 = vsyncpa [#allocation9], 0
    %s26 = scalar_lea.sflag [#allocation9], 1
    %27 = vsyncpa %s26, 0
    loop: start=0, step=1, limit=6
    $region2: #{tpu_custom_call.1} parent=1 // loop_pre_header
      _
    $region3: #{tpu_custom_call.1} parent=1 // loop_header
      %s29 = sphi 0, %s33
      %p30 = scmp.ge.s32.totalorder %s29, 6
      %s36 = sphi 0, %s48
      %s37 = sphi 0, %s44
      %s38 = sphi 0, %s36
      %s39 = sphi 0, %s37
      %s40 = sphi 0, %s38
      %s41 = sphi 0, %s39
      %s51 = sphi 0, %s53
      %s54 = sphi 0, %s51
      %s55 = sphi 0, %s54
      %s71 = sphi 0, %s55
      %s75 = sphi 0, %s75
      %s77 = sphi 0, %s75
      %s78 = sphi 0, %s77
      %s92 = sphi 0, %s78
      %s96 = sphi 0, %s96
      %s98 = sphi 0, %s96
      %s99 = sphi 0, %s98
      %s113 = sphi 0, %s99
      %s117 = sphi 0, %s117
      %s119 = sphi 0, %s117
      %s120 = sphi 0, %s119
      %s134 = sphi 0, %s120
      %s138 = sphi 0, %s138
      %s140 = sphi 0, %s138
      %s141 = sphi 0, %s140
      %s155 = sphi 0, %s141
      %s159 = sphi 0, %s159
      %s161 = sphi 0, %s159
      %s162 = sphi 0, %s161
      %s176 = sphi 0, %s162
      %s180 = sphi 0, %s180
      %s182 = sphi 0, %s180
      %s183 = sphi 0, %s182
      %s197 = sphi 0, %s183
      %s201 = sphi 0, %s201
      %s203 = sphi 0, %s201
      %s204 = sphi 0, %s203
      %s218 = sphi 0, %s204
      %s222 = sphi 0, %s222
      %s224 = sphi 0, %s222
      %s225 = sphi 0, %s224
      %s239 = sphi 0, %s225
      %s243 = sphi 0, %s243
      %s245 = sphi 0, %s243
      %s246 = sphi 0, %s245
      %s260 = sphi 0, %s246
      %s266 = sphi 0, %s268
      %s269 = sphi 0, %s266
      %s270 = sphi 0, %s269
      %s286 = sphi 0, %s270
      %s292 = sphi 0, %s294
      %s295 = sphi 0, %s292
      %s296 = sphi 0, %s295
      %s312 = sphi 0, %s296
      %s318 = sphi 0, %s320
      %s321 = sphi 0, %s318
      %s322 = sphi 0, %s321
      %s338 = sphi 0, %s322
      %s342 = sphi 0, %s342
      %s344 = sphi 0, %s342
      %s345 = sphi 0, %s344
      %s359 = sphi 0, %s345
      %s363 = sphi 0, %s363
      %s365 = sphi 0, %s363
      %s366 = sphi 0, %s365
      %s380 = sphi 0, %s366
      %s386 = sphi 0, %s388
      %s389 = sphi 0, %s386
      %s390 = sphi 0, %s389
      %s406 = sphi 0, %s390
    $region4: #{tpu_custom_call.1} parent=1 // loop_header_branch
      %32 = sbr.rel (%p30) target = $region8
    $region5: #{tpu_custom_call.1} parent=1 // loop_body
      %s34 = ssub.s32 %s29, 1
      %s35 = ssub.s32 %s29, 2
      %s42 = sadd.s32 1, %s37
      %p43 = scmp.ge.s32.totalorder %s42, 2
      %s44 = scalar_select %p43, 0, %s42
      %s45 = sadd.s32 1, %s36
      %s46 = scalar_select %p43, %s45, %s36
      %p47 = scmp.ge.s32.totalorder %s46, 2
      %s48 = scalar_select %p47, 0, %s46
      %s49 = ssub.s32 %s36, %s48
      %p50 = scmp.eq.s32.totalorder %s49, 0
      %s52 = sadd.s32 %s51, 1
      %s53 = scalar_select %p50, %s51, %s52
      %p56 = pneg %p50
      %p57 = scmp.eq.s32.totalorder %s29, 3
      %p58 = por %p56, %p57
      %p59 = scmp.ne.s32.totalorder %s51, %s54
      %p60 = scmp.eq.s32.totalorder %s29, 0
      %p61 = por %p59, %p60
      %p62 = scmp.ne.s32.totalorder %s51, %s54
      %p63 = scmp.eq.s32.totalorder %s34, 3
      %p64 = por %p62, %p63
      %p65 = scmp.ne.s32.totalorder %s54, %s55
      %p66 = scmp.eq.s32.totalorder %s34, 0
      %p67 = por %p65, %p66
      %p68 = scmp.ne.s32.totalorder %s54, %s55
      %p69 = scmp.eq.s32.totalorder %s35, 3
      %p70 = por %p68, %p69
      %p72 = scmp.ne.s32.totalorder %s55, %s71
      %p73 = scmp.eq.s32.totalorder %s35, 0
      %p74 = por %p72, %p73
      %s76 = sadd.s32 %s75, 1
      %p79 = scmp.eq.s32.totalorder %s29, 3
      %p80 = scmp.ne.s32.totalorder %s75, %s77
      %p81 = scmp.eq.s32.totalorder %s29, 0
      %p82 = por %p80, %p81
      %p83 = scmp.ne.s32.totalorder %s75, %s77
      %p84 = scmp.eq.s32.totalorder %s34, 3
      %p85 = por %p83, %p84
      %p86 = scmp.ne.s32.totalorder %s77, %s78
      %p87 = scmp.eq.s32.totalorder %s34, 0
      %p88 = por %p86, %p87
      %p89 = scmp.ne.s32.totalorder %s77, %s78
      %p90 = scmp.eq.s32.totalorder %s35, 3
      %p91 = por %p89, %p90
      %p93 = scmp.ne.s32.totalorder %s78, %s92
      %p94 = scmp.eq.s32.totalorder %s35, 0
      %p95 = por %p93, %p94
      %s97 = sadd.s32 %s96, 1
      %p100 = scmp.eq.s32.totalorder %s29, 3
      %p101 = scmp.ne.s32.totalorder %s96, %s98
      %p102 = scmp.eq.s32.totalorder %s29, 0
      %p103 = por %p101, %p102
      %p104 = scmp.ne.s32.totalorder %s96, %s98
      %p105 = scmp.eq.s32.totalorder %s34, 3
      %p106 = por %p104, %p105
      %p107 = scmp.ne.s32.totalorder %s98, %s99
      %p108 = scmp.eq.s32.totalorder %s34, 0
      %p109 = por %p107, %p108
      %p110 = scmp.ne.s32.totalorder %s98, %s99
      %p111 = scmp.eq.s32.totalorder %s35, 3
      %p112 = por %p110, %p111
      %p114 = scmp.ne.s32.totalorder %s99, %s113
      %p115 = scmp.eq.s32.totalorder %s35, 0
      %p116 = por %p114, %p115
      %s118 = sadd.s32 %s117, 1
      %p121 = scmp.eq.s32.totalorder %s29, 3
      %p122 = scmp.ne.s32.totalorder %s117, %s119
      %p123 = scmp.eq.s32.totalorder %s29, 0
      %p124 = por %p122, %p123
      %p125 = scmp.ne.s32.totalorder %s117, %s119
      %p126 = scmp.eq.s32.totalorder %s34, 3
      %p127 = por %p125, %p126
      %p128 = scmp.ne.s32.totalorder %s119, %s120
      %p129 = scmp.eq.s32.totalorder %s34, 0
      %p130 = por %p128, %p129
      %p131 = scmp.ne.s32.totalorder %s119, %s120
      %p132 = scmp.eq.s32.totalorder %s35, 3
      %p133 = por %p131, %p132
      %p135 = scmp.ne.s32.totalorder %s120, %s134
      %p136 = scmp.eq.s32.totalorder %s35, 0
      %p137 = por %p135, %p136
      %s139 = sadd.s32 %s138, 1
      %p142 = scmp.eq.s32.totalorder %s29, 3
      %p143 = scmp.ne.s32.totalorder %s138, %s140
      %p144 = scmp.eq.s32.totalorder %s29, 0
      %p145 = por %p143, %p144
      %p146 = scmp.ne.s32.totalorder %s138, %s140
      %p147 = scmp.eq.s32.totalorder %s34, 3
      %p148 = por %p146, %p147
      %p149 = scmp.ne.s32.totalorder %s140, %s141
      %p150 = scmp.eq.s32.totalorder %s34, 0
      %p151 = por %p149, %p150
      %p152 = scmp.ne.s32.totalorder %s140, %s141
      %p153 = scmp.eq.s32.totalorder %s35, 3
      %p154 = por %p152, %p153
      %p156 = scmp.ne.s32.totalorder %s141, %s155
      %p157 = scmp.eq.s32.totalorder %s35, 0
      %p158 = por %p156, %p157
      %s160 = sadd.s32 %s159, 1
      %p163 = scmp.eq.s32.totalorder %s29, 3
      %p164 = scmp.ne.s32.totalorder %s159, %s161
      %p165 = scmp.eq.s32.totalorder %s29, 0
      %p166 = por %p164, %p165
      %p167 = scmp.ne.s32.totalorder %s159, %s161
      %p168 = scmp.eq.s32.totalorder %s34, 3
      %p169 = por %p167, %p168
      %p170 = scmp.ne.s32.totalorder %s161, %s162
      %p171 = scmp.eq.s32.totalorder %s34, 0
      %p172 = por %p170, %p171
      %p173 = scmp.ne.s32.totalorder %s161, %s162
      %p174 = scmp.eq.s32.totalorder %s35, 3
      %p175 = por %p173, %p174
      %p177 = scmp.ne.s32.totalorder %s162, %s176
      %p178 = scmp.eq.s32.totalorder %s35, 0
      %p179 = por %p177, %p178
      %s181 = sadd.s32 %s180, 1
      %p184 = scmp.eq.s32.totalorder %s29, 3
      %p185 = scmp.ne.s32.totalorder %s180, %s182
      %p186 = scmp.eq.s32.totalorder %s29, 0
      %p187 = por %p185, %p186
      %p188 = scmp.ne.s32.totalorder %s180, %s182
      %p189 = scmp.eq.s32.totalorder %s34, 3
      %p190 = por %p188, %p189
      %p191 = scmp.ne.s32.totalorder %s182, %s183
      %p192 = scmp.eq.s32.totalorder %s34, 0
      %p193 = por %p191, %p192
      %p194 = scmp.ne.s32.totalorder %s182, %s183
      %p195 = scmp.eq.s32.totalorder %s35, 3
      %p196 = por %p194, %p195
      %p198 = scmp.ne.s32.totalorder %s183, %s197
      %p199 = scmp.eq.s32.totalorder %s35, 0
      %p200 = por %p198, %p199
      %s202 = sadd.s32 %s201, 1
      %p205 = scmp.eq.s32.totalorder %s29, 3
      %p206 = scmp.ne.s32.totalorder %s201, %s203
      %p207 = scmp.eq.s32.totalorder %s29, 0
      %p208 = por %p206, %p207
      %p209 = scmp.ne.s32.totalorder %s201, %s203
      %p210 = scmp.eq.s32.totalorder %s34, 3
      %p211 = por %p209, %p210
      %p212 = scmp.ne.s32.totalorder %s203, %s204
      %p213 = scmp.eq.s32.totalorder %s34, 0
      %p214 = por %p212, %p213
      %p215 = scmp.ne.s32.totalorder %s203, %s204
      %p216 = scmp.eq.s32.totalorder %s35, 3
      %p217 = por %p215, %p216
      %p219 = scmp.ne.s32.totalorder %s204, %s218
      %p220 = scmp.eq.s32.totalorder %s35, 0
      %p221 = por %p219, %p220
      %s223 = sadd.s32 %s222, 1
      %p226 = scmp.eq.s32.totalorder %s29, 3
      %p227 = scmp.ne.s32.totalorder %s222, %s224
      %p228 = scmp.eq.s32.totalorder %s29, 0
      %p229 = por %p227, %p228
      %p230 = scmp.ne.s32.totalorder %s222, %s224
      %p231 = scmp.eq.s32.totalorder %s34, 3
      %p232 = por %p230, %p231
      %p233 = scmp.ne.s32.totalorder %s224, %s225
      %p234 = scmp.eq.s32.totalorder %s34, 0
      %p235 = por %p233, %p234
      %p236 = scmp.ne.s32.totalorder %s224, %s225
      %p237 = scmp.eq.s32.totalorder %s35, 3
      %p238 = por %p236, %p237
      %p240 = scmp.ne.s32.totalorder %s225, %s239
      %p241 = scmp.eq.s32.totalorder %s35, 0
      %p242 = por %p240, %p241
      %s244 = sadd.s32 %s243, 1
      %p247 = scmp.eq.s32.totalorder %s29, 3
      %p248 = scmp.ne.s32.totalorder %s243, %s245
      %p249 = scmp.eq.s32.totalorder %s29, 0
      %p250 = por %p248, %p249
      %p251 = scmp.ne.s32.totalorder %s243, %s245
      %p252 = scmp.eq.s32.totalorder %s34, 3
      %p253 = por %p251, %p252
      %p254 = scmp.ne.s32.totalorder %s245, %s246
      %p255 = scmp.eq.s32.totalorder %s34, 0
      %p256 = por %p254, %p255
      %p257 = scmp.ne.s32.totalorder %s245, %s246
      %p258 = scmp.eq.s32.totalorder %s35, 3
      %p259 = por %p257, %p258
      %p261 = scmp.ne.s32.totalorder %s246, %s260
      %p262 = scmp.eq.s32.totalorder %s35, 0
      %p263 = por %p261, %p262
      %s264 = ssub.s32 %s37, %s44
      %p265 = scmp.eq.s32.totalorder %s264, 0
      %s267 = sadd.s32 %s266, 1
      %s268 = scalar_select %p265, %s266, %s267
      %p271 = pneg %p265
      %p272 = scmp.eq.s32.totalorder %s29, 3
      %p273 = por %p271, %p272
      %p274 = scmp.ne.s32.totalorder %s266, %s269
      %p275 = scmp.eq.s32.totalorder %s29, 0
      %p276 = por %p274, %p275
      %p277 = scmp.ne.s32.totalorder %s266, %s269
      %p278 = scmp.eq.s32.totalorder %s34, 3
      %p279 = por %p277, %p278
      %p280 = scmp.ne.s32.totalorder %s269, %s270
      %p281 = scmp.eq.s32.totalorder %s34, 0
      %p282 = por %p280, %p281
      %p283 = scmp.ne.s32.totalorder %s269, %s270
      %p284 = scmp.eq.s32.totalorder %s35, 3
      %p285 = por %p283, %p284
      %p287 = scmp.ne.s32.totalorder %s270, %s286
      %p288 = scmp.eq.s32.totalorder %s35, 0
      %p289 = por %p287, %p288
      %s290 = ssub.s32 %s37, %s44
      %p291 = scmp.eq.s32.totalorder %s290, 0
      %s293 = sadd.s32 %s292, 1
      %s294 = scalar_select %p291, %s292, %s293
      %p297 = pneg %p291
      %p298 = scmp.eq.s32.totalorder %s29, 3
      %p299 = por %p297, %p298
      %p300 = scmp.ne.s32.totalorder %s292, %s295
      %p301 = scmp.eq.s32.totalorder %s29, 0
      %p302 = por %p300, %p301
      %p303 = scmp.ne.s32.totalorder %s292, %s295
      %p304 = scmp.eq.s32.totalorder %s34, 3
      %p305 = por %p303, %p304
      %p306 = scmp.ne.s32.totalorder %s295, %s296
      %p307 = scmp.eq.s32.totalorder %s34, 0
      %p308 = por %p306, %p307
      %p309 = scmp.ne.s32.totalorder %s295, %s296
      %p310 = scmp.eq.s32.totalorder %s35, 3
      %p311 = por %p309, %p310
      %p313 = scmp.ne.s32.totalorder %s296, %s312
      %p314 = scmp.eq.s32.totalorder %s35, 0
      %p315 = por %p313, %p314
      %s316 = ssub.s32 %s37, %s44
      %p317 = scmp.eq.s32.totalorder %s316, 0
      %s319 = sadd.s32 %s318, 1
      %s320 = scalar_select %p317, %s318, %s319
      %p323 = pneg %p317
      %p324 = scmp.eq.s32.totalorder %s29, 3
      %p325 = por %p323, %p324
      %p326 = scmp.ne.s32.totalorder %s318, %s321
      %p327 = scmp.eq.s32.totalorder %s29, 0
      %p328 = por %p326, %p327
      %p329 = scmp.ne.s32.totalorder %s318, %s321
      %p330 = scmp.eq.s32.totalorder %s34, 3
      %p331 = por %p329, %p330
      %p332 = scmp.ne.s32.totalorder %s321, %s322
      %p333 = scmp.eq.s32.totalorder %s34, 0
      %p334 = por %p332, %p333
      %p335 = scmp.ne.s32.totalorder %s321, %s322
      %p336 = scmp.eq.s32.totalorder %s35, 3
      %p337 = por %p335, %p336
      %p339 = scmp.ne.s32.totalorder %s322, %s338
      %p340 = scmp.eq.s32.totalorder %s35, 0
      %p341 = por %p339, %p340
      %s343 = sadd.s32 %s342, 1
      %p346 = scmp.eq.s32.totalorder %s29, 3
      %p347 = scmp.ne.s32.totalorder %s342, %s344
      %p348 = scmp.eq.s32.totalorder %s29, 0
      %p349 = por %p347, %p348
      %p350 = scmp.ne.s32.totalorder %s342, %s344
      %p351 = scmp.eq.s32.totalorder %s34, 3
      %p352 = por %p350, %p351
      %p353 = scmp.ne.s32.totalorder %s344, %s345
      %p354 = scmp.eq.s32.totalorder %s34, 0
      %p355 = por %p353, %p354
      %p356 = scmp.ne.s32.totalorder %s344, %s345
      %p357 = scmp.eq.s32.totalorder %s35, 3
      %p358 = por %p356, %p357
      %p360 = scmp.ne.s32.totalorder %s345, %s359
      %p361 = scmp.eq.s32.totalorder %s35, 0
      %p362 = por %p360, %p361
      %s364 = sadd.s32 %s363, 1
      %p367 = scmp.eq.s32.totalorder %s29, 3
      %p368 = scmp.ne.s32.totalorder %s363, %s365
      %p369 = scmp.eq.s32.totalorder %s29, 0
      %p370 = por %p368, %p369
      %p371 = scmp.ne.s32.totalorder %s363, %s365
      %p372 = scmp.eq.s32.totalorder %s34, 3
      %p373 = por %p371, %p372
      %p374 = scmp.ne.s32.totalorder %s365, %s366
      %p375 = scmp.eq.s32.totalorder %s34, 0
      %p376 = por %p374, %p375
      %p377 = scmp.ne.s32.totalorder %s365, %s366
      %p378 = scmp.eq.s32.totalorder %s35, 3
      %p379 = por %p377, %p378
      %p381 = scmp.ne.s32.totalorder %s366, %s380
      %p382 = scmp.eq.s32.totalorder %s35, 0
      %p383 = por %p381, %p382
      %s384 = ssub.s32 %s36, %s48
      %p385 = scmp.eq.s32.totalorder %s384, 0
      %s387 = sadd.s32 %s386, 1
      %s388 = scalar_select %p385, %s386, %s387
      %p391 = pneg %p385
      %p392 = scmp.eq.s32.totalorder %s29, 3
      %p393 = por %p391, %p392
      %p394 = scmp.ne.s32.totalorder %s386, %s389
      %p395 = scmp.eq.s32.totalorder %s29, 0
      %p396 = por %p394, %p395
      %p397 = scmp.ne.s32.totalorder %s386, %s389
      %p398 = scmp.eq.s32.totalorder %s34, 3
      %p399 = por %p397, %p398
      %p400 = scmp.ne.s32.totalorder %s389, %s390
      %p401 = scmp.eq.s32.totalorder %s34, 0
      %p402 = por %p400, %p401
      %p403 = scmp.ne.s32.totalorder %s389, %s390
      %p404 = scmp.eq.s32.totalorder %s35, 3
      %p405 = por %p403, %p404
      %p407 = scmp.ne.s32.totalorder %s390, %s406
      %p408 = scmp.eq.s32.totalorder %s35, 0
      %p409 = por %p407, %p408
      %p410 = scmp.le.s32.totalorder 1, %s29
      %p411 = scmp.lt.s32.totalorder %s29, 5
      %p412 = pnand %p410, %p411
      %p413 = pneg %p412
      // Predicated region
      $region9: #{tpu_custom_call.1} parent=5 // pred_check
        _
      $region10: #{tpu_custom_call.1} parent=5 // pred_check_branch
        %415 = sbr.rel (%p412) target = $region12
      $region11: #{tpu_custom_call.1} parent=5 // pred_region
        %s416 = ssub.s32 %s29, 1
        // Predicated region
        $region13: #{tpu_custom_call.1} parent=11 // pred_check
          %p417 = pneg %p88
        $region14: #{tpu_custom_call.1} parent=11 // pred_check_branch
          %419 = sbr.rel (%p417) target = $region16
        $region15: #{tpu_custom_call.1} parent=11 // pred_region
          %s421 = ssub.s32 16, 16
          %422 = vsyncadd [#allocation11], %s421
          %s424 = sshll.u32 [#allocation10], 4
          %s425 = int_to_ptr.vmem [resolvable:$true] %s424
          %427 = dma.hbm_to_vmem [thread:$0]  %s1, 16, %s425, [#allocation11]
        $region16: #{tpu_custom_call.1} parent=11 // pred_fallthru
          _
        // Predicated region
        $region17: #{tpu_custom_call.1} parent=11 // pred_check
          %p428 = pneg %p109
        $region18: #{tpu_custom_call.1} parent=11 // pred_check_branch
          %430 = sbr.rel (%p428) target = $region20
        $region19: #{tpu_custom_call.1} parent=11 // pred_region
          %s432 = ssub.s32 16, 16
          %433 = vsyncadd [#allocation11], %s432
          %s435 = sshll.u32 [#allocation12], 4
          %s436 = int_to_ptr.vmem [resolvable:$true] %s435
          %438 = dma.hbm_to_vmem [thread:$0]  %s2, 16, %s436, [#allocation11]
        $region20: #{tpu_custom_call.1} parent=11 // pred_fallthru
          _
        // Predicated region
        $region21: #{tpu_custom_call.1} parent=11 // pred_check
          %p439 = pneg %p130
        $region22: #{tpu_custom_call.1} parent=11 // pred_check_branch
          %441 = sbr.rel (%p439) target = $region24
        $region23: #{tpu_custom_call.1} parent=11 // pred_region
          _
        $region24: #{tpu_custom_call.1} parent=11 // pred_fallthru
          _
        // Predicated region
        $region25: #{tpu_custom_call.1} parent=11 // pred_check
          %p442 = pneg %p151
        $region26: #{tpu_custom_call.1} parent=11 // pred_check_branch
          %444 = sbr.rel (%p442) target = $region28
        $region27: #{tpu_custom_call.1} parent=11 // pred_region
          _
        $region28: #{tpu_custom_call.1} parent=11 // pred_fallthru
          _
        // Predicated region
        $region29: #{tpu_custom_call.1} parent=11 // pred_check
          %p445 = pneg %p172
        $region30: #{tpu_custom_call.1} parent=11 // pred_check_branch
          %447 = sbr.rel (%p445) target = $region32
        $region31: #{tpu_custom_call.1} parent=11 // pred_region
          _
        $region32: #{tpu_custom_call.1} parent=11 // pred_fallthru
          _
        // Predicated region
        $region33: #{tpu_custom_call.1} parent=11 // pred_check
          %p448 = pneg %p193
        $region34: #{tpu_custom_call.1} parent=11 // pred_check_branch
          %450 = sbr.rel (%p448) target = $region36
        $region35: #{tpu_custom_call.1} parent=11 // pred_region
          _
        $region36: #{tpu_custom_call.1} parent=11 // pred_fallthru
          _
        // Predicated region
        $region37: #{tpu_custom_call.1} parent=11 // pred_check
          %p451 = pneg %p214
        $region38: #{tpu_custom_call.1} parent=11 // pred_check_branch
          %453 = sbr.rel (%p451) target = $region40
        $region39: #{tpu_custom_call.1} parent=11 // pred_region
          _
        $region40: #{tpu_custom_call.1} parent=11 // pred_fallthru
          _
        // Predicated region
        $region41: #{tpu_custom_call.1} parent=11 // pred_check
          %p454 = pneg %p235
        $region42: #{tpu_custom_call.1} parent=11 // pred_check_branch
          %456 = sbr.rel (%p454) target = $region44
        $region43: #{tpu_custom_call.1} parent=11 // pred_region
          _
        $region44: #{tpu_custom_call.1} parent=11 // pred_fallthru
          _
        // Predicated region
        $region45: #{tpu_custom_call.1} parent=11 // pred_check
          %p457 = pneg %p256
        $region46: #{tpu_custom_call.1} parent=11 // pred_check_branch
          %459 = sbr.rel (%p457) target = $region48
        $region47: #{tpu_custom_call.1} parent=11 // pred_region
          _
        $region48: #{tpu_custom_call.1} parent=11 // pred_fallthru
          _
        // Predicated region
        $region49: #{tpu_custom_call.1} parent=11 // pred_check
          %p460 = pneg %p355
        $region50: #{tpu_custom_call.1} parent=11 // pred_check_branch
          %462 = sbr.rel (%p460) target = $region52
        $region51: #{tpu_custom_call.1} parent=11 // pred_region
          _
        $region52: #{tpu_custom_call.1} parent=11 // pred_fallthru
          _
        // Predicated region
        $region53: #{tpu_custom_call.1} parent=11 // pred_check
          %p463 = pneg %p376
        $region54: #{tpu_custom_call.1} parent=11 // pred_check_branch
          %465 = sbr.rel (%p463) target = $region56
        $region55: #{tpu_custom_call.1} parent=11 // pred_region
          %s467 = ssub.s32 1024, 1024
          %468 = vsyncadd [#allocation15], %s467
          %s469 = sshll.u32 [#allocation14], 4
          %s470 = int_to_ptr.vmem [resolvable:$true] %s469
          %475 = dma.hbm_to_vmem [thread:$0]  %s14, 1024, %s470, [#allocation15], 128, 128, 8
        $region56: #{tpu_custom_call.1} parent=11 // pred_fallthru
          _
      $region12: #{tpu_custom_call.1} parent=5 // pred_fallthru
        _
      %p476 = scmp.lt.s32.totalorder %s29, 4
      // Predicated region
      $region57: #{tpu_custom_call.1} parent=5 // pred_check
        %p477 = pneg %p476
      $region58: #{tpu_custom_call.1} parent=5 // pred_check_branch
        %479 = sbr.rel (%p477) target = $region60
      $region59: #{tpu_custom_call.1} parent=5 // pred_region
        // Predicated region
        $region61: #{tpu_custom_call.1} parent=59 // pred_check
          %p480 = pneg %p61
        $region62: #{tpu_custom_call.1} parent=59 // pred_check_branch
          %482 = sbr.rel (%p480) target = $region64
        $region63: #{tpu_custom_call.1} parent=59 // pred_region
          %s483 = sand.u32 %s51, 1
          %s484 = scalar_lea.sflag [#allocation8], %s483
          %s485 = sand.u32 %s51, 1
          %s486 = smul.addr %s485, 8
          %s487 = scalar_lea.vmem [#allocation7], %s486
          %s489 = ssub.s32 128, 128
          %490 = vsyncadd %s484, %s489
          %s491 = smul.addr %s36, 128
          %s492 = scalar_lea.hbm %s0, %s491
          %s494 = sshll.u32 %s487, 4
          %s495 = int_to_ptr.vmem [resolvable:$true] %s494
          %497 = dma.hbm_to_vmem [thread:$0]  %s492, 128, %s495, %s484
        $region64: #{tpu_custom_call.1} parent=59 // pred_fallthru
          _
        // Predicated region
        $region65: #{tpu_custom_call.1} parent=59 // pred_check
          %p498 = pneg %p276
        $region66: #{tpu_custom_call.1} parent=59 // pred_check_branch
          %500 = sbr.rel (%p498) target = $region68
        $region67: #{tpu_custom_call.1} parent=59 // pred_region
          %s501 = sand.u32 %s266, 1
          %s502 = sand.u32 %s266, 1
          %s503 = smul.addr %s502, 64
          %s504 = scalar_lea.vmem [#allocation13], %s503
          %s505 = smul.addr %s37, 8
          %s506 = scalar_lea.vmem %s10, %s505
          // Predicated region
          $region69: #{tpu_custom_call.1} parent=67 // pred_check
            _
          $region70: #{tpu_custom_call.1} parent=67 // pred_check_branch
            %508 = sbr.rel (0) target = $region72
          $region71: #{tpu_custom_call.1} parent=67 // pred_region
            // Predicated region
            $region73: #{tpu_custom_call.1} parent=71 // pred_check
              _
            $region74: #{tpu_custom_call.1} parent=71 // pred_check_branch
              %510 = sbr.rel (0) target = $region76
            $region75: #{tpu_custom_call.1} parent=71 // pred_region
              // Predicated region
              $region88: #{tpu_custom_call.1} parent=75 // pred_check
                _
              $region89: #{tpu_custom_call.1} parent=75 // pred_check_branch
                %540 = sbr.rel (0) target = $region91
              $region90: #{tpu_custom_call.1} parent=75 // pred_region
                loop: start=0, step=1, limit=1
                $region92: #{tpu_custom_call.1} parent=90 // loop_pre_header
                  _
                $region93: #{tpu_custom_call.1} parent=90 // loop_header
                  %s542 = sphi 0, %s546
                  %p543 = scmp.ge.s32.totalorder %s542, 1
                  %s547 = sphi %s506, %s506
                  %s548 = sphi %s504, %s504
                $region94: #{tpu_custom_call.1} parent=90 // loop_header_branch
                  %545 = sbr.rel (%p543) target = $region98
                $region95: #{tpu_custom_call.1} parent=90 // loop_body
                  %v549 = vld [vmem:[%s547] sm:$0xff]
                  %550 = vst [vmem:[%s548] sm:$0xff] %v549
                  %v551 = vld [vmem:[%s547 + $0x10] sm:$0xff]
                  %552 = vst [vmem:[%s548 + $0x8] sm:$0xff] %v551
                  %v553 = vld [vmem:[%s547 + $0x20] sm:$0xff]
                  %554 = vst [vmem:[%s548 + $0x10] sm:$0xff] %v553
                  %v555 = vld [vmem:[%s547 + $0x30] sm:$0xff]
                  %556 = vst [vmem:[%s548 + $0x18] sm:$0xff] %v555
                  %v557 = vld [vmem:[%s547 + $0x40] sm:$0xff]
                  %558 = vst [vmem:[%s548 + $0x20] sm:$0xff] %v557
                  %v559 = vld [vmem:[%s547 + $0x50] sm:$0xff]
                  %560 = vst [vmem:[%s548 + $0x28] sm:$0xff] %v559
                  %v561 = vld [vmem:[%s547 + $0x60] sm:$0xff]
                  %562 = vst [vmem:[%s548 + $0x30] sm:$0xff] %v561
                  %v563 = vld [vmem:[%s547 + $0x70] sm:$0xff]
                  %564 = vst [vmem:[%s548 + $0x38] sm:$0xff] %v563
                $region96: #{tpu_custom_call.1} parent=90 // loop_footer
                  %s546 = sadd.s32 1, %s542
                $region97: #{tpu_custom_call.1} parent=90 // loop_footer_branch
                  %541 = sbr.rel target = $region93
                $region98: #{tpu_custom_call.1} parent=90 // loop_exit
                  _
              $region91: #{tpu_custom_call.1} parent=75 // pred_fallthru
                _
              // Predicated region
              $region99: #{tpu_custom_call.1} parent=75 // pred_check
                _
              $region100: #{tpu_custom_call.1} parent=75 // pred_check_branch
                %566 = sbr.rel target = $region102
              $region101: #{tpu_custom_call.1} parent=75 // pred_region
                _
              $region102: #{tpu_custom_call.1} parent=75 // pred_fallthru
                _
            $region76: #{tpu_custom_call.1} parent=71 // pred_fallthru
              _
            // Predicated region
            $region77: #{tpu_custom_call.1} parent=71 // pred_check
              _
            $region78: #{tpu_custom_call.1} parent=71 // pred_check_branch
              %512 = sbr.rel target = $region80
            $region79: #{tpu_custom_call.1} parent=71 // pred_region
              %s514 = ssub.s32 256, 1
              loop: start=0, step=1, limit=1
              $region81: #{tpu_custom_call.1} parent=79 // loop_pre_header
                _
              $region82: #{tpu_custom_call.1} parent=79 // loop_header
                %s516 = sphi 0, %s520
                %p517 = scmp.ge.s32.totalorder %s516, 1
                %s521 = sphi %s506, %s506
                %s522 = sphi %s504, %s504
              $region83: #{tpu_custom_call.1} parent=79 // loop_header_branch
                %519 = sbr.rel (%p517) target = $region87
              $region84: #{tpu_custom_call.1} parent=79 // loop_body
                %v523 = vld [vmem:[%s521] sm:%s514]
                %524 = vst [vmem:[%s522] sm:%s514] %v523
                %v525 = vld [vmem:[%s521 + $0x10] sm:%s514]
                %526 = vst [vmem:[%s522 + $0x8] sm:%s514] %v525
                %v527 = vld [vmem:[%s521 + $0x20] sm:%s514]
                %528 = vst [vmem:[%s522 + $0x10] sm:%s514] %v527
                %v529 = vld [vmem:[%s521 + $0x30] sm:%s514]
                %530 = vst [vmem:[%s522 + $0x18] sm:%s514] %v529
                %v531 = vld [vmem:[%s521 + $0x40] sm:%s514]
                %532 = vst [vmem:[%s522 + $0x20] sm:%s514] %v531
                %v533 = vld [vmem:[%s521 + $0x50] sm:%s514]
                %534 = vst [vmem:[%s522 + $0x28] sm:%s514] %v533
                %v535 = vld [vmem:[%s521 + $0x60] sm:%s514]
                %536 = vst [vmem:[%s522 + $0x30] sm:%s514] %v535
                %v537 = vld [vmem:[%s521 + $0x70] sm:%s514]
                %538 = vst [vmem:[%s522 + $0x38] sm:%s514] %v537
              $region85: #{tpu_custom_call.1} parent=79 // loop_footer
                %s520 = sadd.s32 1, %s516
              $region86: #{tpu_custom_call.1} parent=79 // loop_footer_branch
                %515 = sbr.rel target = $region82
              $region87: #{tpu_custom_call.1} parent=79 // loop_exit
                _
            $region80: #{tpu_custom_call.1} parent=71 // pred_fallthru
              _
          $region72: #{tpu_custom_call.1} parent=67 // pred_fallthru
            _
          %567 = vnop
        $region68: #{tpu_custom_call.1} parent=59 // pred_fallthru
          _
        // Predicated region
        $region103: #{tpu_custom_call.1} parent=59 // pred_check
          %p568 = pneg %p302
        $region104: #{tpu_custom_call.1} parent=59 // pred_check_branch
          %570 = sbr.rel (%p568) target = $region106
        $region105: #{tpu_custom_call.1} parent=59 // pred_region
          %p571 = scmp.lt.s32.totalorder %s37, 1
          %s572 = scalar_select %p571, %s37, 1
          %s573 = scalar_lea.vmem %s11, %s572
        $region106: #{tpu_custom_call.1} parent=59 // pred_fallthru
          _
        // Predicated region
        $region107: #{tpu_custom_call.1} parent=59 // pred_check
          %p574 = pneg %p328
        $region108: #{tpu_custom_call.1} parent=59 // pred_check_branch
          %576 = sbr.rel (%p574) target = $region110
        $region109: #{tpu_custom_call.1} parent=59 // pred_region
          %s577 = smul.u32 16, %s37
          %p578 = scmp.lt.s32.totalorder %s577, 31
          %s579 = scalar_select %p578, %s577, 31
          %s580 = smul.addr %s579, 8
          %s581 = scalar_lea.vmem %s12, %s580
          %s582 = smul.u32 16, %s37
        $region110: #{tpu_custom_call.1} parent=59 // pred_fallthru
          _
      $region60: #{tpu_custom_call.1} parent=5 // pred_fallthru
        _
      %p583 = scmp.le.s32.totalorder 1, %s29
      %p584 = scmp.lt.s32.totalorder %s29, 5
      %p585 = pnand %p583, %p584
      %p586 = pneg %p585
      // Predicated region
      $region111: #{tpu_custom_call.1} parent=5 // pred_check
        _
      $region112: #{tpu_custom_call.1} parent=5 // pred_check_branch
        %588 = sbr.rel (%p585) target = $region114
      $region113: #{tpu_custom_call.1} parent=5 // pred_region
        %s589 = ssub.s32 %s29, 1
        %s590 = sand.u32 %s54, 1
        %s591 = scalar_lea.sflag [#allocation8], %s590
        %s592 = sand.u32 %s54, 1
        %s593 = smul.addr %s592, 8
        %s594 = scalar_lea.vmem [#allocation7], %s593
        // Predicated region
        $region115: #{tpu_custom_call.1} parent=113 // pred_check
          %p595 = pneg %p67
        $region116: #{tpu_custom_call.1} parent=113 // pred_check_branch
          %597 = sbr.rel (%p595) target = $region118
        $region117: #{tpu_custom_call.1} parent=113 // pred_region
          %598 = dma.done %s591, 128
        $region118: #{tpu_custom_call.1} parent=113 // pred_fallthru
          _
        // Predicated region
        $region119: #{tpu_custom_call.1} parent=113 // pred_check
          %p599 = pneg %p88
        $region120: #{tpu_custom_call.1} parent=113 // pred_check_branch
          %601 = sbr.rel (%p599) target = $region122
        $region121: #{tpu_custom_call.1} parent=113 // pred_region
          %602 = dma.done [#allocation11], 16
        $region122: #{tpu_custom_call.1} parent=113 // pred_fallthru
          _
        // Predicated region
        $region123: #{tpu_custom_call.1} parent=113 // pred_check
          %p603 = pneg %p109
        $region124: #{tpu_custom_call.1} parent=113 // pred_check_branch
          %605 = sbr.rel (%p603) target = $region126
        $region125: #{tpu_custom_call.1} parent=113 // pred_region
          %606 = dma.done [#allocation11], 16
        $region126: #{tpu_custom_call.1} parent=113 // pred_fallthru
          _
        %s607 = sand.u32 %s269, 1
        %s608 = sand.u32 %s269, 1
        %s609 = smul.addr %s608, 64
        %s610 = scalar_lea.vmem [#allocation13], %s609
        // Predicated region
        $region127: #{tpu_custom_call.1} parent=113 // pred_check
          %p611 = pneg %p282
        $region128: #{tpu_custom_call.1} parent=113 // pred_check_branch
          %613 = sbr.rel (%p611) target = $region130
        $region129: #{tpu_custom_call.1} parent=113 // pred_region
          _
        $region130: #{tpu_custom_call.1} parent=113 // pred_fallthru
          _
        // Predicated region
        $region131: #{tpu_custom_call.1} parent=113 // pred_check
          %p614 = pneg %p376
        $region132: #{tpu_custom_call.1} parent=113 // pred_check_branch
          %616 = sbr.rel (%p614) target = $region134
        $region133: #{tpu_custom_call.1} parent=113 // pred_region
          %617 = dma.done [#allocation15], 1024
        $region134: #{tpu_custom_call.1} parent=113 // pred_fallthru
          _
        %s618 = sand.u32 %s54, 1
        %s619 = scalar_lea.sflag [#allocation8], %s618
        %s620 = sand.u32 %s54, 1
        %s621 = smul.addr %s620, 8
        %s622 = scalar_lea.vmem [#allocation7], %s621
        %p623 = pneg %p67
        %p624 = pneg %p64
        %p625 = pneg %p88
        %p626 = pneg %p85
        %p627 = pneg %p109
        %p628 = pneg %p106
        %p629 = pneg %p130
        %p630 = pneg %p127
        %p631 = pneg %p151
        %p632 = pneg %p148
        %p633 = pneg %p172
        %p634 = pneg %p169
        %p635 = pneg %p193
        %p636 = pneg %p190
        %p637 = pneg %p214
        %p638 = pneg %p211
        %p639 = pneg %p235
        %p640 = pneg %p232
        %p641 = pneg %p256
        %p642 = pneg %p253
        %s643 = sand.u32 %s269, 1
        %s644 = sand.u32 %s269, 1
        %s645 = smul.addr %s644, 64
        %s646 = scalar_lea.vmem [#allocation13], %s645
        %p647 = pneg %p282
        %p648 = pneg %p279
        %p649 = scmp.lt.s32.totalorder %s39, 1
        %s650 = scalar_select %p649, %s39, 1
        %s651 = scalar_lea.vmem %s11, %s650
        %p652 = pneg %p308
        %p653 = pneg %p305
        %s654 = smul.u32 16, %s39
        %p655 = scmp.lt.s32.totalorder %s654, 31
        %s656 = scalar_select %p655, %s654, 31
        %s657 = smul.addr %s656, 8
        %s658 = scalar_lea.vmem %s12, %s657
        %p659 = pneg %p334
        %p660 = pneg %p331
        %p661 = pneg %p355
        %p662 = pneg %p352
        %p663 = pneg %p376
        %p664 = pneg %p373
        %p665 = pneg %p402
        %p666 = pneg %p399
        %s667 = sand.u32 %s389, 1
        %s668 = scalar_lea.sflag [#allocation9], %s667
        %s669 = sand.u32 %s389, 1
        %s670 = smul.addr %s669, 8
        %s671 = scalar_lea.vmem [#allocation16], %s670
        %p672 = scmp.lt.s32.totalorder %s39, 1
        %s673 = scalar_select %p672, %s39, 1
        %s674 = scalar_lea.vmem %s11, %s673
        %s675 = smul.u32 16, %s39
        %p676 = scmp.lt.s32.totalorder %s675, 31
        %s677 = scalar_select %p676, %s675, 31
        %s678 = smul.addr %s677, 8
        %s679 = scalar_lea.vmem %s12, %s678
        %s680 = smul.u32 16, %s39
        %p681 = scmp.eq.s32.totalorder %s39, 0
        // Predicated region
        $region135: #{tpu_custom_call.1} parent=113 // pred_check
          %p682 = pneg %p681
        $region136: #{tpu_custom_call.1} parent=113 // pred_check_branch
          %684 = sbr.rel (%p682) target = $region138
        $region137: #{tpu_custom_call.1} parent=113 // pred_region
          %v685 = vld [vmem:[%s594] sm:$0xff]
          %v686 = vld [vmem:[#allocation10] sm:$0x1]
          %v687 = vld [vmem:[#allocation12] sm:$0x1]
          %vm688 = vcmask 523264
          %v689 = vsel %vm688, %v685, 0.0
          %690 = vadd.xlane.f32.xlu0 %v689
          %v691 = vpop.xlane.xlu0 %690
          %v692 = vrcp.pop 64.0
          %v693 = vmul.f32 %v691, %v692
          %v694 = vsub.f32 %v685, %v693
          %v695 = vmul.f32 %v694, %v694
          %v696 = vsel %vm688, %v695, 0.0
          %697 = vadd.xlane.f32.xlu0 %v696
          %v698 = vpop.xlane.xlu0 %697
          %v699 = vmul.f32 %v698, %v692
          %v700 = vadd.f32 %v699, 1e-05
          %v701 = vrsqrt.pop %v700
          %v702 = vmul.f32 %v694, %v701
          %v704 = vlaneseq
          %v705 = vshrl.u32 %v704, 7
          %v706 = vsub.s32 0, %v705
          %v707 = vrot.slane %v686, %v706
          %v709 = vmul.f32 %v702, %v707
          %v711 = vlaneseq
          %v712 = vshrl.u32 %v711, 7
          %v713 = vsub.s32 0, %v712
          %v714 = vrot.slane %v687, %v713
          %v716 = vadd.f32 %v709, %v714
          %v717 = vld [vmem:[%s3] sm:$0xff]
          %v718 = vld [vmem:[%s3 + $0x8] sm:$0xff]
          %v719 = vld [vmem:[%s3 + $0x10] sm:$0xff]
          %v720 = vld [vmem:[%s3 + $0x18] sm:$0xff]
          %v721 = vld [vmem:[%s3 + $0x20] sm:$0xff]
          %v722 = vld [vmem:[%s3 + $0x28] sm:$0xff]
          %v723 = vld [vmem:[%s3 + $0x30] sm:$0xff]
          %v724 = vld [vmem:[%s3 + $0x38] sm:$0xff]
          %v726 = vsel %vm688, %v716, 0
          %728 = vmatprep.subr.mxu0 0.0
          %729 = vmatpush1.msra.mxu0 0.0
          %730 = vmatprep.subr.mxu0 0.0
          %731 = vmatpush1.msra.mxu0 0.0
          %732 = vmatprep.subr.mxu0 0.0
          %733 = vmatpush1.msra.mxu0 0.0
          %734 = vmatprep.subr.mxu0 0.0
          %735 = vmatpush1.msra.mxu0 0.0
          %736 = vmatprep.subr.mxu0 0.0
          %737 = vmatpush1.msra.mxu0 0.0
          %738 = vmatprep.subr.mxu0 0.0
          %739 = vmatpush1.msra.mxu0 0.0
          %740 = vmatprep.subr.mxu0 0.0
          %741 = vmatpush1.msra.mxu0 0.0
          %742 = vmatprep.subr.mxu0 0.0
          %743 = vmatpush1.msra.mxu0 0.0
          %744 = vmatprep.subr.mxu0 0.0
          %745 = vmatpush1.msra.mxu0 %v724
          %746 = vmatprep.subr.mxu0 0.0
          %747 = vmatpush1.msra.mxu0 %v723
          %748 = vmatprep.subr.mxu0 0.0
          %749 = vmatpush1.msra.mxu0 %v722
          %750 = vmatprep.subr.mxu0 0.0
          %751 = vmatpush1.msra.mxu0 %v721
          %752 = vmatprep.subr.mxu0 0.0
          %753 = vmatpush1.msra.mxu0 %v720
          %754 = vmatprep.subr.mxu0 0.0
          %755 = vmatpush1.msra.mxu0 %v719
          %756 = vmatprep.subr.mxu0 0.0
          %757 = vmatpush1.msra.mxu0 %v718
          %758 = vmatprep.subr.mxu0 0.0
          %759 = vmatpush1.msra.mxu0 %v717
          %760 = vmatprep.subr.mxu0 0.0
          %761 = vmatpush2.msra.mxu0 0.0
          %762 = vmatprep.subr.mxu0 0.0
          %763 = vmatpush2.msra.mxu0 0.0
          %764 = vmatprep.subr.mxu0 0.0
          %765 = vmatpush2.msra.mxu0 0.0
          %766 = vmatprep.subr.mxu0 0.0
          %767 = vmatpush2.msra.mxu0 0.0
          %768 = vmatprep.subr.mxu0 0.0
          %769 = vmatpush2.msra.mxu0 0.0
          %770 = vmatprep.subr.mxu0 0.0
          %771 = vmatpush2.msra.mxu0 0.0
          %772 = vmatprep.subr.mxu0 0.0
          %773 = vmatpush2.msra.mxu0 0.0
          %774 = vmatprep.subr.mxu0 0.0
          %775 = vmatpush2.msra.mxu0 0.0
          %776 = vmatprep.subr.mxu0 0.0
          %777 = vmatpush2.msra.mxu0 0.0
          %778 = vmatprep.subr.mxu0 0.0
          %779 = vmatpush2.msra.mxu0 0.0
          %780 = vmatprep.subr.mxu0 0.0
          %781 = vmatpush2.msra.mxu0 0.0
          %782 = vmatprep.subr.mxu0 0.0
          %783 = vmatpush2.msra.mxu0 0.0
          %784 = vmatprep.subr.mxu0 0.0
          %785 = vmatpush2.msra.mxu0 0.0
          %786 = vmatprep.subr.mxu0 0.0
          %787 = vmatpush2.msra.mxu0 0.0
          %788 = vmatprep.subr.mxu0 0.0
          %789 = vmatpush2.msra.mxu0 0.0
          %790 = vmatprep.subr.mxu0 0.0
          %791 = vmatpush2.msra.mxu0 0.0
          %792 = vmatprep.mubr.f32.mxu0 0.0
          %793 = vmatmul.mubr.f32.gmra.mxu0 %v726
          %v794 = vpop.f32.mrf.mxu0
          %v795 = vadd.f32 0.0, %v794
          %v796 = vpop.f32.mrf.mxu0
          %797 = vdwg.mxu0
          %v798 = vld [vmem:[%s4] sm:$0xff]
          %v799 = vld [vmem:[%s4 + $0x8] sm:$0xff]
          %v800 = vld [vmem:[%s4 + $0x10] sm:$0xff]
          %v801 = vld [vmem:[%s4 + $0x18] sm:$0xff]
          %v802 = vld [vmem:[%s4 + $0x20] sm:$0xff]
          %v803 = vld [vmem:[%s4 + $0x28] sm:$0xff]
          %v804 = vld [vmem:[%s4 + $0x30] sm:$0xff]
          %v805 = vld [vmem:[%s4 + $0x38] sm:$0xff]
          %806 = vmatprep.subr.mxu0 0.0
          %807 = vmatpush1.msra.mxu0 0.0
          %808 = vmatprep.subr.mxu0 0.0
          %809 = vmatpush1.msra.mxu0 0.0
          %810 = vmatprep.subr.mxu0 0.0
          %811 = vmatpush1.msra.mxu0 0.0
          %812 = vmatprep.subr.mxu0 0.0
          %813 = vmatpush1.msra.mxu0 0.0
          %814 = vmatprep.subr.mxu0 0.0
          %815 = vmatpush1.msra.mxu0 0.0
          %816 = vmatprep.subr.mxu0 0.0
          %817 = vmatpush1.msra.mxu0 0.0
          %818 = vmatprep.subr.mxu0 0.0
          %819 = vmatpush1.msra.mxu0 0.0
          %820 = vmatprep.subr.mxu0 0.0
          %821 = vmatpush1.msra.mxu0 0.0
          %822 = vmatprep.subr.mxu0 0.0
          %823 = vmatpush1.msra.mxu0 %v805
          %824 = vmatprep.subr.mxu0 0.0
          %825 = vmatpush1.msra.mxu0 %v804
          %826 = vmatprep.subr.mxu0 0.0
          %827 = vmatpush1.msra.mxu0 %v803
          %828 = vmatprep.subr.mxu0 0.0
          %829 = vmatpush1.msra.mxu0 %v802
          %830 = vmatprep.subr.mxu0 0.0
          %831 = vmatpush1.msra.mxu0 %v801
          %832 = vmatprep.subr.mxu0 0.0
          %833 = vmatpush1.msra.mxu0 %v800
          %834 = vmatprep.subr.mxu0 0.0
          %835 = vmatpush1.msra.mxu0 %v799
          %836 = vmatprep.subr.mxu0 0.0
          %837 = vmatpush1.msra.mxu0 %v798
          %838 = vmatprep.subr.mxu0 0.0
          %839 = vmatpush2.msra.mxu0 0.0
          %840 = vmatprep.subr.mxu0 0.0
          %841 = vmatpush2.msra.mxu0 0.0
          %842 = vmatprep.subr.mxu0 0.0
          %843 = vmatpush2.msra.mxu0 0.0
          %844 = vmatprep.subr.mxu0 0.0
          %845 = vmatpush2.msra.mxu0 0.0
          %846 = vmatprep.subr.mxu0 0.0
          %847 = vmatpush2.msra.mxu0 0.0
          %848 = vmatprep.subr.mxu0 0.0
          %849 = vmatpush2.msra.mxu0 0.0
          %850 = vmatprep.subr.mxu0 0.0
          %851 = vmatpush2.msra.mxu0 0.0
          %852 = vmatprep.subr.mxu0 0.0
          %853 = vmatpush2.msra.mxu0 0.0
          %854 = vmatprep.subr.mxu0 0.0
          %855 = vmatpush2.msra.mxu0 0.0
          %856 = vmatprep.subr.mxu0 0.0
          %857 = vmatpush2.msra.mxu0 0.0
          %858 = vmatprep.subr.mxu0 0.0
          %859 = vmatpush2.msra.mxu0 0.0
          %860 = vmatprep.subr.mxu0 0.0
          %861 = vmatpush2.msra.mxu0 0.0
          %862 = vmatprep.subr.mxu0 0.0
          %863 = vmatpush2.msra.mxu0 0.0
          %864 = vmatprep.subr.mxu0 0.0
          %865 = vmatpush2.msra.mxu0 0.0
          %866 = vmatprep.subr.mxu0 0.0
          %867 = vmatpush2.msra.mxu0 0.0
          %868 = vmatprep.subr.mxu0 0.0
          %869 = vmatpush2.msra.mxu0 0.0
          %870 = vmatprep.mubr.f32.mxu0 0.0
          %871 = vmatmul.mubr.f32.gmra.mxu0 %v726
          %v872 = vpop.f32.mrf.mxu0
          %v873 = vadd.f32 0.0, %v872
          %v874 = vpop.f32.mrf.mxu0
          %875 = vdwg.mxu0
          %v876 = vld [vmem:[%s5] sm:$0xff]
          %v877 = vld [vmem:[%s5 + $0x8] sm:$0xff]
          %v878 = vld [vmem:[%s5 + $0x10] sm:$0xff]
          %v879 = vld [vmem:[%s5 + $0x18] sm:$0xff]
          %v880 = vld [vmem:[%s5 + $0x20] sm:$0xff]
          %v881 = vld [vmem:[%s5 + $0x28] sm:$0xff]
          %v882 = vld [vmem:[%s5 + $0x30] sm:$0xff]
          %v883 = vld [vmem:[%s5 + $0x38] sm:$0xff]
          %884 = vmatprep.subr.mxu0 0.0
          %885 = vmatpush1.msra.mxu0 0.0
          %886 = vmatprep.subr.mxu0 0.0
          %887 = vmatpush1.msra.mxu0 0.0
          %888 = vmatprep.subr.mxu0 0.0
          %889 = vmatpush1.msra.mxu0 0.0
          %890 = vmatprep.subr.mxu0 0.0
          %891 = vmatpush1.msra.mxu0 0.0
          %892 = vmatprep.subr.mxu0 0.0
          %893 = vmatpush1.msra.mxu0 0.0
          %894 = vmatprep.subr.mxu0 0.0
          %895 = vmatpush1.msra.mxu0 0.0
          %896 = vmatprep.subr.mxu0 0.0
          %897 = vmatpush1.msra.mxu0 0.0
          %898 = vmatprep.subr.mxu0 0.0
          %899 = vmatpush1.msra.mxu0 0.0
          %900 = vmatprep.subr.mxu0 0.0
          %901 = vmatpush1.msra.mxu0 %v883
          %902 = vmatprep.subr.mxu0 0.0
          %903 = vmatpush1.msra.mxu0 %v882
          %904 = vmatprep.subr.mxu0 0.0
          %905 = vmatpush1.msra.mxu0 %v881
          %906 = vmatprep.subr.mxu0 0.0
          %907 = vmatpush1.msra.mxu0 %v880
          %908 = vmatprep.subr.mxu0 0.0
          %909 = vmatpush1.msra.mxu0 %v879
          %910 = vmatprep.subr.mxu0 0.0
          %911 = vmatpush1.msra.mxu0 %v878
          %912 = vmatprep.subr.mxu0 0.0
          %913 = vmatpush1.msra.mxu0 %v877
          %914 = vmatprep.subr.mxu0 0.0
          %915 = vmatpush1.msra.mxu0 %v876
          %916 = vmatprep.subr.mxu0 0.0
          %917 = vmatpush2.msra.mxu0 0.0
          %918 = vmatprep.subr.mxu0 0.0
          %919 = vmatpush2.msra.mxu0 0.0
          %920 = vmatprep.subr.mxu0 0.0
          %921 = vmatpush2.msra.mxu0 0.0
          %922 = vmatprep.subr.mxu0 0.0
          %923 = vmatpush2.msra.mxu0 0.0
          %924 = vmatprep.subr.mxu0 0.0
          %925 = vmatpush2.msra.mxu0 0.0
          %926 = vmatprep.subr.mxu0 0.0
          %927 = vmatpush2.msra.mxu0 0.0
          %928 = vmatprep.subr.mxu0 0.0
          %929 = vmatpush2.msra.mxu0 0.0
          %930 = vmatprep.subr.mxu0 0.0
          %931 = vmatpush2.msra.mxu0 0.0
          %932 = vmatprep.subr.mxu0 0.0
          %933 = vmatpush2.msra.mxu0 0.0
          %934 = vmatprep.subr.mxu0 0.0
          %935 = vmatpush2.msra.mxu0 0.0
          %936 = vmatprep.subr.mxu0 0.0
          %937 = vmatpush2.msra.mxu0 0.0
          %938 = vmatprep.subr.mxu0 0.0
          %939 = vmatpush2.msra.mxu0 0.0
          %940 = vmatprep.subr.mxu0 0.0
          %941 = vmatpush2.msra.mxu0 0.0
          %942 = vmatprep.subr.mxu0 0.0
          %943 = vmatpush2.msra.mxu0 0.0
          %944 = vmatprep.subr.mxu0 0.0
          %945 = vmatpush2.msra.mxu0 0.0
          %946 = vmatprep.subr.mxu0 0.0
          %947 = vmatpush2.msra.mxu0 0.0
          %948 = vmatprep.mubr.f32.mxu0 0.0
          %949 = vmatmul.mubr.f32.gmra.mxu0 %v726
          %v950 = vpop.f32.mrf.mxu0
          %v951 = vadd.f32 0.0, %v950
          %v952 = vpop.f32.mrf.mxu0
          %953 = vdwg.mxu0
          %v954 = vmul.f32 %v873, 0.25
          %v955 = vsel %vm688, %v954, -inf
          %v956 = vrot.slane %v955, 4
          %v957 = vmax.f32 %v955, %v956
          %v958 = vrot.slane %v957, 2
          %v959 = vmax.f32 %v957, %v958
          %v960 = vrot.slane %v959, 1
          %v961 = vmax.f32 %v959, %v960
          %v962 = vsub.f32 %v954, %v961
          %v963 = vmul.f32 %v962, 1.442695
          %v964 = vpow.pop %v963
          %v965 = vsel %vm688, %v964, 0.0
          %v966 = vrot.slane %v965, 4
          %v967 = vadd.f32 %v965, %v966
          %v968 = vrot.slane %v967, 2
          %v969 = vadd.f32 %v967, %v968
          %v970 = vrot.slane %v969, 1
          %v971 = vadd.f32 %v969, %v970
          %v972 = vrcp.pop %v971
          %v973 = vmul.f32 %v964, %v972
          %v974 = vld [vmem:[#allocation14] sm:$0xff]
          %v975 = vld [vmem:[#allocation14 + $0x8] sm:$0xff]
          %v976 = vld [vmem:[#allocation14 + $0x10] sm:$0xff]
          %v977 = vld [vmem:[#allocation14 + $0x18] sm:$0xff]
          %v978 = vld [vmem:[#allocation14 + $0x20] sm:$0xff]
          %v979 = vld [vmem:[#allocation14 + $0x28] sm:$0xff]
          %v980 = vld [vmem:[#allocation14 + $0x30] sm:$0xff]
          %v981 = vld [vmem:[#allocation14 + $0x38] sm:$0xff]
          %982 = vxpose.xlu0.b32.start [1/16] %v973, 128
          %983 = vxpose.xlu0.b32.cont [2/16] 0.0, 128
          %984 = vxpose.xlu0.b32.cont [3/16] 0.0, 128
          %985 = vxpose.xlu0.b32.cont [4/16] 0.0, 128
          %986 = vxpose.xlu0.b32.cont [5/16] 0.0, 128
          %987 = vxpose.xlu0.b32.cont [6/16] 0.0, 128
          %988 = vxpose.xlu0.b32.cont [7/16] 0.0, 128
          %989 = vxpose.xlu0.b32.cont [8/16] 0.0, 128
          %990 = vxpose.xlu0.b32.cont [9/16] 0.0, 128
          %991 = vxpose.xlu0.b32.cont [10/16] 0.0, 128
          %992 = vxpose.xlu0.b32.cont [11/16] 0.0, 128
          %993 = vxpose.xlu0.b32.cont [12/16] 0.0, 128
          %994 = vxpose.xlu0.b32.cont [13/16] 0.0, 128
          %995 = vxpose.xlu0.b32.cont [14/16] 0.0, 128
          %996 = vxpose.xlu0.b32.cont [15/16] 0.0, 128
          %997 = vxpose.xlu0.b32.end [16/16] 0.0, 128
          %v998 = vpop.trf.xlu0
          %v999 = vpop.trf.xlu0
          %v1000 = vpop.trf.xlu0
          %v1001 = vpop.trf.xlu0
          %v1002 = vpop.trf.xlu0
          %v1003 = vpop.trf.xlu0
          %v1004 = vpop.trf.xlu0
          %v1005 = vpop.trf.xlu0
          %v1006 = vpop.trf.xlu0
          %v1007 = vpop.trf.xlu0
          %v1008 = vpop.trf.xlu0
          %v1009 = vpop.trf.xlu0
          %v1010 = vpop.trf.xlu0
          %v1011 = vpop.trf.xlu0
          %v1012 = vpop.trf.xlu0
          %v1013 = vpop.trf.xlu0
          %vm1014 = vcmask 64512
          %v1016 = vsel %vm1014, %v998, 0
          %v1019 = vsel %vm1014, %v999, 0
          %v1022 = vsel %vm1014, %v1000, 0
          %v1025 = vsel %vm1014, %v1001, 0
          %v1028 = vsel %vm1014, %v1002, 0
          %v1031 = vsel %vm1014, %v1003, 0
          %v1034 = vsel %vm1014, %v1004, 0
          %v1037 = vsel %vm1014, %v1005, 0
          %1039 = vmatprep.subr.mxu0 0.0
          %1040 = vmatpush1.msra.mxu0 0.0
          %1041 = vmatprep.subr.mxu0 0.0
          %1042 = vmatpush1.msra.mxu0 0.0
          %1043 = vmatprep.subr.mxu0 0.0
          %1044 = vmatpush1.msra.mxu0 0.0
          %1045 = vmatprep.subr.mxu0 0.0
          %1046 = vmatpush1.msra.mxu0 0.0
          %1047 = vmatprep.subr.mxu0 0.0
          %1048 = vmatpush1.msra.mxu0 0.0
          %1049 = vmatprep.subr.mxu0 0.0
          %1050 = vmatpush1.msra.mxu0 0.0
          %1051 = vmatprep.subr.mxu0 0.0
          %1052 = vmatpush1.msra.mxu0 0.0
          %1053 = vmatprep.subr.mxu0 0.0
          %1054 = vmatpush1.msra.mxu0 0.0
          %1055 = vmatprep.subr.mxu0 0.0
          %1056 = vmatpush1.msra.mxu0 0.0
          %1057 = vmatprep.subr.mxu0 0.0
          %1058 = vmatpush1.msra.mxu0 0.0
          %1059 = vmatprep.subr.mxu0 0.0
          %1060 = vmatpush1.msra.mxu0 0.0
          %1061 = vmatprep.subr.mxu0 0.0
          %1062 = vmatpush1.msra.mxu0 0.0
          %1063 = vmatprep.subr.mxu0 0.0
          %1064 = vmatpush1.msra.mxu0 0.0
          %1065 = vmatprep.subr.mxu0 0.0
          %1066 = vmatpush1.msra.mxu0 0.0
          %1067 = vmatprep.subr.mxu0 0.0
          %1068 = vmatpush1.msra.mxu0 0.0
          %1069 = vmatprep.subr.mxu0 0.0
          %1070 = vmatpush1.msra.mxu0 %v951
          %1071 = vmatprep.subr.mxu0 0.0
          %1072 = vmatpush2.msra.mxu0 0.0
          %1073 = vmatprep.subr.mxu0 0.0
          %1074 = vmatpush2.msra.mxu0 0.0
          %1075 = vmatprep.subr.mxu0 0.0
          %1076 = vmatpush2.msra.mxu0 0.0
          %1077 = vmatprep.subr.mxu0 0.0
          %1078 = vmatpush2.msra.mxu0 0.0
          %1079 = vmatprep.subr.mxu0 0.0
          %1080 = vmatpush2.msra.mxu0 0.0
          %1081 = vmatprep.subr.mxu0 0.0
          %1082 = vmatpush2.msra.mxu0 0.0
          %1083 = vmatprep.subr.mxu0 0.0
          %1084 = vmatpush2.msra.mxu0 0.0
          %1085 = vmatprep.subr.mxu0 0.0
          %1086 = vmatpush2.msra.mxu0 0.0
          %1087 = vmatprep.subr.mxu0 0.0
          %1088 = vmatpush2.msra.mxu0 0.0
          %1089 = vmatprep.subr.mxu0 0.0
          %1090 = vmatpush2.msra.mxu0 0.0
          %1091 = vmatprep.subr.mxu0 0.0
          %1092 = vmatpush2.msra.mxu0 0.0
          %1093 = vmatprep.subr.mxu0 0.0
          %1094 = vmatpush2.msra.mxu0 0.0
          %1095 = vmatprep.subr.mxu0 0.0
          %1096 = vmatpush2.msra.mxu0 0.0
          %1097 = vmatprep.subr.mxu0 0.0
          %1098 = vmatpush2.msra.mxu0 0.0
          %1099 = vmatprep.subr.mxu0 0.0
          %1100 = vmatpush2.msra.mxu0 0.0
          %1101 = vmatprep.subr.mxu0 0.0
          %1102 = vmatpush2.msra.mxu0 0.0
          %1103 = vmatprep.mubr.f32.mxu0 0.0
          %1104 = vmatmul.mubr.f32.gmra.mxu0 %v1016
          %v1105 = vpop.f32.mrf.mxu0
          %v1106 = vadd.f32 0.0, %v1105
          %v1107 = vpop.f32.mrf.mxu0
          %1108 = vmatprep.mubr.f32.mxu0 0.0
          %1109 = vmatmul.mubr.f32.gmra.mxu0 %v1019
          %v1110 = vpop.f32.mrf.mxu0
          %v1111 = vadd.f32 0.0, %v1110
          %v1112 = vpop.f32.mrf.mxu0
          %1113 = vmatprep.mubr.f32.mxu0 0.0
          %1114 = vmatmul.mubr.f32.gmra.mxu0 %v1022
          %v1115 = vpop.f32.mrf.mxu0
          %v1116 = vadd.f32 0.0, %v1115
          %v1117 = vpop.f32.mrf.mxu0
          %1118 = vmatprep.mubr.f32.mxu0 0.0
          %1119 = vmatmul.mubr.f32.gmra.mxu0 %v1025
          %v1120 = vpop.f32.mrf.mxu0
          %v1121 = vadd.f32 0.0, %v1120
          %v1122 = vpop.f32.mrf.mxu0
          %1123 = vmatprep.mubr.f32.mxu0 0.0
          %1124 = vmatmul.mubr.f32.gmra.mxu0 %v1028
          %v1125 = vpop.f32.mrf.mxu0
          %v1126 = vadd.f32 0.0, %v1125
          %v1127 = vpop.f32.mrf.mxu0
          %1128 = vmatprep.mubr.f32.mxu0 0.0
          %1129 = vmatmul.mubr.f32.gmra.mxu0 %v1031
          %v1130 = vpop.f32.mrf.mxu0
          %v1131 = vadd.f32 0.0, %v1130
          %v1132 = vpop.f32.mrf.mxu0
          %1133 = vmatprep.mubr.f32.mxu0 0.0
          %1134 = vmatmul.mubr.f32.gmra.mxu0 %v1034
          %v1135 = vpop.f32.mrf.mxu0
          %v1136 = vadd.f32 0.0, %v1135
          %v1137 = vpop.f32.mrf.mxu0
          %1138 = vmatprep.mubr.f32.mxu0 0.0
          %1139 = vmatmul.mubr.f32.gmra.mxu0 %v1037
          %v1140 = vpop.f32.mrf.mxu0
          %v1141 = vadd.f32 0.0, %v1140
          %v1142 = vpop.f32.mrf.mxu0
          %1143 = vdwg.mxu0
          %v1144 = vmul.f32 %v1106, %v974
          %v1145 = vmul.f32 %v1111, %v975
          %v1146 = vmul.f32 %v1116, %v976
          %v1147 = vmul.f32 %v1121, %v977
          %v1148 = vmul.f32 %v1126, %v978
          %v1149 = vmul.f32 %v1131, %v979
          %v1150 = vmul.f32 %v1136, %v980
          %v1151 = vmul.f32 %v1141, %v981
          %v1152 = vsel %vm688, %v795, -inf
          %1153 = vmax.xlane.f32.xlu0 %v1152
          %v1154 = vpop.xlane.xlu0 %1153
          %v1155 = vsub.f32 %v795, %v1154
          %v1156 = vmul.f32 %v1155, 1.442695
          %v1157 = vpow.pop %v1156
          %v1159 = vsel %vm688, %v1157, 0
          %1161 = vmatprep.subr.mxu0 0.0
          %1162 = vmatpush1.msra.mxu0 0.0
          %1163 = vmatprep.subr.mxu0 0.0
          %1164 = vmatpush1.msra.mxu0 0.0
          %1165 = vmatprep.subr.mxu0 0.0
          %1166 = vmatpush1.msra.mxu0 0.0
          %1167 = vmatprep.subr.mxu0 0.0
          %1168 = vmatpush1.msra.mxu0 0.0
          %1169 = vmatprep.subr.mxu0 0.0
          %1170 = vmatpush1.msra.mxu0 0.0
          %1171 = vmatprep.subr.mxu0 0.0
          %1172 = vmatpush1.msra.mxu0 0.0
          %1173 = vmatprep.subr.mxu0 0.0
          %1174 = vmatpush1.msra.mxu0 0.0
          %1175 = vmatprep.subr.mxu0 0.0
          %1176 = vmatpush1.msra.mxu0 0.0
          %1177 = vmatprep.subr.mxu0 0.0
          %1178 = vmatpush1.msra.mxu0 %v981
          %1179 = vmatprep.subr.mxu0 0.0
          %1180 = vmatpush1.msra.mxu0 %v980
          %1181 = vmatprep.subr.mxu0 0.0
          %1182 = vmatpush1.msra.mxu0 %v979
          %1183 = vmatprep.subr.mxu0 0.0
          %1184 = vmatpush1.msra.mxu0 %v978
          %1185 = vmatprep.subr.mxu0 0.0
          %1186 = vmatpush1.msra.mxu0 %v977
          %1187 = vmatprep.subr.mxu0 0.0
          %1188 = vmatpush1.msra.mxu0 %v976
          %1189 = vmatprep.subr.mxu0 0.0
          %1190 = vmatpush1.msra.mxu0 %v975
          %1191 = vmatprep.subr.mxu0 0.0
          %1192 = vmatpush1.msra.mxu0 %v974
          %1193 = vmatprep.subr.mxu0 0.0
          %1194 = vmatpush2.msra.mxu0 0.0
          %1195 = vmatprep.subr.mxu0 0.0
          %1196 = vmatpush2.msra.mxu0 0.0
          %1197 = vmatprep.subr.mxu0 0.0
          %1198 = vmatpush2.msra.mxu0 0.0
          %1199 = vmatprep.subr.mxu0 0.0
          %1200 = vmatpush2.msra.mxu0 0.0
          %1201 = vmatprep.subr.mxu0 0.0
          %1202 = vmatpush2.msra.mxu0 0.0
          %1203 = vmatprep.subr.mxu0 0.0
          %1204 = vmatpush2.msra.mxu0 0.0
          %1205 = vmatprep.subr.mxu0 0.0
          %1206 = vmatpush2.msra.mxu0 0.0
          %1207 = vmatprep.subr.mxu0 0.0
          %1208 = vmatpush2.msra.mxu0 0.0
          %1209 = vmatprep.subr.mxu0 0.0
          %1210 = vmatpush2.msra.mxu0 0.0
          %1211 = vmatprep.subr.mxu0 0.0
          %1212 = vmatpush2.msra.mxu0 0.0
          %1213 = vmatprep.subr.mxu0 0.0
          %1214 = vmatpush2.msra.mxu0 0.0
          %1215 = vmatprep.subr.mxu0 0.0
          %1216 = vmatpush2.msra.mxu0 0.0
          %1217 = vmatprep.subr.mxu0 0.0
          %1218 = vmatpush2.msra.mxu0 0.0
          %1219 = vmatprep.subr.mxu0 0.0
          %1220 = vmatpush2.msra.mxu0 0.0
          %1221 = vmatprep.subr.mxu0 0.0
          %1222 = vmatpush2.msra.mxu0 0.0
          %1223 = vmatprep.subr.mxu0 0.0
          %1224 = vmatpush2.msra.mxu0 0.0
          %1225 = vmatprep.mubr.f32.mxu0 0.0
          %1226 = vmatmul.mubr.f32.gmra.mxu0 %v1159
          %v1227 = vpop.f32.mrf.mxu0
          %v1228 = vadd.f32 0.0, %v1227
          %v1229 = vpop.f32.mrf.mxu0
          %1230 = vdwg.mxu0
          %v1231 = vrcp.pop %v1228
          %v1232 = vmul.f32 %v1157, %v1231
          %v1234 = vsel %vm688, %v1232, 0
          %1236 = vmatprep.subr.mxu0 0.0
          %1237 = vmatpush1.msra.mxu0 0.0
          %1238 = vmatprep.subr.mxu0 0.0
          %1239 = vmatpush1.msra.mxu0 0.0
          %1240 = vmatprep.subr.mxu0 0.0
          %1241 = vmatpush1.msra.mxu0 0.0
          %1242 = vmatprep.subr.mxu0 0.0
          %1243 = vmatpush1.msra.mxu0 0.0
          %1244 = vmatprep.subr.mxu0 0.0
          %1245 = vmatpush1.msra.mxu0 0.0
          %1246 = vmatprep.subr.mxu0 0.0
          %1247 = vmatpush1.msra.mxu0 0.0
          %1248 = vmatprep.subr.mxu0 0.0
          %1249 = vmatpush1.msra.mxu0 0.0
          %1250 = vmatprep.subr.mxu0 0.0
          %1251 = vmatpush1.msra.mxu0 0.0
          %1252 = vmatprep.subr.mxu0 0.0
          %1253 = vmatpush1.msra.mxu0 %v1151
          %1254 = vmatprep.subr.mxu0 0.0
          %1255 = vmatpush1.msra.mxu0 %v1150
          %1256 = vmatprep.subr.mxu0 0.0
          %1257 = vmatpush1.msra.mxu0 %v1149
          %1258 = vmatprep.subr.mxu0 0.0
          %1259 = vmatpush1.msra.mxu0 %v1148
          %1260 = vmatprep.subr.mxu0 0.0
          %1261 = vmatpush1.msra.mxu0 %v1147
          %1262 = vmatprep.subr.mxu0 0.0
          %1263 = vmatpush1.msra.mxu0 %v1146
          %1264 = vmatprep.subr.mxu0 0.0
          %1265 = vmatpush1.msra.mxu0 %v1145
          %1266 = vmatprep.subr.mxu0 0.0
          %1267 = vmatpush1.msra.mxu0 %v1144
          %1268 = vmatprep.subr.mxu0 0.0
          %1269 = vmatpush2.msra.mxu0 0.0
          %1270 = vmatprep.subr.mxu0 0.0
          %1271 = vmatpush2.msra.mxu0 0.0
          %1272 = vmatprep.subr.mxu0 0.0
          %1273 = vmatpush2.msra.mxu0 0.0
          %1274 = vmatprep.subr.mxu0 0.0
          %1275 = vmatpush2.msra.mxu0 0.0
          %1276 = vmatprep.subr.mxu0 0.0
          %1277 = vmatpush2.msra.mxu0 0.0
          %1278 = vmatprep.subr.mxu0 0.0
          %1279 = vmatpush2.msra.mxu0 0.0
          %1280 = vmatprep.subr.mxu0 0.0
          %1281 = vmatpush2.msra.mxu0 0.0
          %1282 = vmatprep.subr.mxu0 0.0
          %1283 = vmatpush2.msra.mxu0 0.0
          %1284 = vmatprep.subr.mxu0 0.0
          %1285 = vmatpush2.msra.mxu0 0.0
          %1286 = vmatprep.subr.mxu0 0.0
          %1287 = vmatpush2.msra.mxu0 0.0
          %1288 = vmatprep.subr.mxu0 0.0
          %1289 = vmatpush2.msra.mxu0 0.0
          %1290 = vmatprep.subr.mxu0 0.0
          %1291 = vmatpush2.msra.mxu0 0.0
          %1292 = vmatprep.subr.mxu0 0.0
          %1293 = vmatpush2.msra.mxu0 0.0
          %1294 = vmatprep.subr.mxu0 0.0
          %1295 = vmatpush2.msra.mxu0 0.0
          %1296 = vmatprep.subr.mxu0 0.0
          %1297 = vmatpush2.msra.mxu0 0.0
          %1298 = vmatprep.subr.mxu0 0.0
          %1299 = vmatpush2.msra.mxu0 0.0
          %1300 = vmatprep.mubr.f32.mxu0 0.0
          %1301 = vmatmul.mubr.f32.gmra.mxu0 %v1234
          %v1302 = vpop.f32.mrf.mxu0
          %v1303 = vadd.f32 0.0, %v1302
          %v1304 = vpop.f32.mrf.mxu0
          %1305 = vdwg.mxu0
          %vm1306 = vcmask 130048
          %1307 = vst.msk [vmem:[#allocation5] sm:$0xff] %vm1306, %v1303
          %1309 = vrot.lane.b32.xlu0 %v1303, 112
          %v1310 = vpop.permute.xlu0 %1309
          %1312 = vst.msk [vmem:[#allocation5 + $0x8] sm:$0xff] %vm1306, %v1310
          %1313 = vrot.lane.b32.xlu0 %v1303, 96
          %v1314 = vpop.permute.xlu0 %1313
          %1316 = vst.msk [vmem:[#allocation5 + $0x10] sm:$0xff] %vm1306, %v1314
          %1317 = vrot.lane.b32.xlu0 %v1303, 80
          %v1318 = vpop.permute.xlu0 %1317
          %1320 = vst.msk [vmem:[#allocation5 + $0x18] sm:$0xff] %vm1306, %v1318
          %v1321 = vld [vmem:[#allocation5] ss:$4 sm:$0xff]
          %1322 = vst.msk [vmem:[#allocation6] sm:$0xff] %vm1306, %v1321
          %s1323 = scalar_lea.vmem [#allocation5], 1
          %v1324 = vld [vmem:[%s1323] ss:$4 sm:$0xff]
          %1326 = vrot.lane.b32.xlu0 %v1324, 16
          %v1327 = vpop.permute.xlu0 %1326
          %vm1329 = vcmask 261248
          %1330 = vst.msk [vmem:[#allocation6] sm:$0xff] %vm1329, %v1327
          %s1331 = scalar_lea.vmem [#allocation5], 2
          %v1332 = vld [vmem:[%s1331] ss:$4 sm:$0xff]
          %1334 = vrot.lane.b32.xlu0 %v1332, 32
          %v1335 = vpop.permute.xlu0 %1334
          %vm1337 = vcmask 392448
          %1338 = vst.msk [vmem:[#allocation6] sm:$0xff] %vm1337, %v1335
          %s1339 = scalar_lea.vmem [#allocation5], 3
          %v1340 = vld [vmem:[%s1339] ss:$4 sm:$0xff]
          %1342 = vrot.lane.b32.xlu0 %v1340, 48
          %v1343 = vpop.permute.xlu0 %1342
          %vm1345 = vcmask 523648
          %1346 = vst.msk [vmem:[#allocation6] sm:$0xff] %vm1345, %v1343
          %v1347 = vld [vmem:[#allocation6] sm:$0xff]
          %v1348 = vld [vmem:[%s6] sm:$0xff]
          %v1349 = vld [vmem:[%s6 + $0x8] sm:$0xff]
          %v1350 = vld [vmem:[%s6 + $0x10] sm:$0xff]
          %v1351 = vld [vmem:[%s6 + $0x18] sm:$0xff]
          %v1352 = vld [vmem:[%s6 + $0x20] sm:$0xff]
          %v1353 = vld [vmem:[%s6 + $0x28] sm:$0xff]
          %v1354 = vld [vmem:[%s6 + $0x30] sm:$0xff]
          %v1355 = vld [vmem:[%s6 + $0x38] sm:$0xff]
          %v1356 = vld [vmem:[%s7] sm:$0x1]
          %v1358 = vlaneseq
          %v1359 = vshrl.u32 %v1358, 7
          %v1360 = vsub.s32 0, %v1359
          %v1361 = vrot.slane %v1356, %v1360
          %v1364 = vsel %vm688, %v1347, 0
          %1366 = vmatprep.subr.mxu0 0.0
          %1367 = vmatpush1.msra.mxu0 0.0
          %1368 = vmatprep.subr.mxu0 0.0
          %1369 = vmatpush1.msra.mxu0 0.0
          %1370 = vmatprep.subr.mxu0 0.0
          %1371 = vmatpush1.msra.mxu0 0.0
          %1372 = vmatprep.subr.mxu0 0.0
          %1373 = vmatpush1.msra.mxu0 0.0
          %1374 = vmatprep.subr.mxu0 0.0
          %1375 = vmatpush1.msra.mxu0 0.0
          %1376 = vmatprep.subr.mxu0 0.0
          %1377 = vmatpush1.msra.mxu0 0.0
          %1378 = vmatprep.subr.mxu0 0.0
          %1379 = vmatpush1.msra.mxu0 0.0
          %1380 = vmatprep.subr.mxu0 0.0
          %1381 = vmatpush1.msra.mxu0 0.0
          %1382 = vmatprep.subr.mxu0 0.0
          %1383 = vmatpush1.msra.mxu0 %v1355
          %1384 = vmatprep.subr.mxu0 0.0
          %1385 = vmatpush1.msra.mxu0 %v1354
          %1386 = vmatprep.subr.mxu0 0.0
          %1387 = vmatpush1.msra.mxu0 %v1353
          %1388 = vmatprep.subr.mxu0 0.0
          %1389 = vmatpush1.msra.mxu0 %v1352
          %1390 = vmatprep.subr.mxu0 0.0
          %1391 = vmatpush1.msra.mxu0 %v1351
          %1392 = vmatprep.subr.mxu0 0.0
          %1393 = vmatpush1.msra.mxu0 %v1350
          %1394 = vmatprep.subr.mxu0 0.0
          %1395 = vmatpush1.msra.mxu0 %v1349
          %1396 = vmatprep.subr.mxu0 0.0
          %1397 = vmatpush1.msra.mxu0 %v1348
          %1398 = vmatprep.subr.mxu0 0.0
          %1399 = vmatpush2.msra.mxu0 0.0
          %1400 = vmatprep.subr.mxu0 0.0
          %1401 = vmatpush2.msra.mxu0 0.0
          %1402 = vmatprep.subr.mxu0 0.0
          %1403 = vmatpush2.msra.mxu0 0.0
          %1404 = vmatprep.subr.mxu0 0.0
          %1405 = vmatpush2.msra.mxu0 0.0
          %1406 = vmatprep.subr.mxu0 0.0
          %1407 = vmatpush2.msra.mxu0 0.0
          %1408 = vmatprep.subr.mxu0 0.0
          %1409 = vmatpush2.msra.mxu0 0.0
          %1410 = vmatprep.subr.mxu0 0.0
          %1411 = vmatpush2.msra.mxu0 0.0
          %1412 = vmatprep.subr.mxu0 0.0
          %1413 = vmatpush2.msra.mxu0 0.0
          %1414 = vmatprep.subr.mxu0 0.0
          %1415 = vmatpush2.msra.mxu0 0.0
          %1416 = vmatprep.subr.mxu0 0.0
          %1417 = vmatpush2.msra.mxu0 0.0
          %1418 = vmatprep.subr.mxu0 0.0
          %1419 = vmatpush2.msra.mxu0 0.0
          %1420 = vmatprep.subr.mxu0 0.0
          %1421 = vmatpush2.msra.mxu0 0.0
          %1422 = vmatprep.subr.mxu0 0.0
          %1423 = vmatpush2.msra.mxu0 0.0
          %1424 = vmatprep.subr.mxu0 0.0
          %1425 = vmatpush2.msra.mxu0 0.0
          %1426 = vmatprep.subr.mxu0 0.0
          %1427 = vmatpush2.msra.mxu0 0.0
          %1428 = vmatprep.subr.mxu0 0.0
          %1429 = vmatpush2.msra.mxu0 0.0
          %1430 = vmatprep.mubr.f32.mxu0 0.0
          %1431 = vmatmul.mubr.f32.gmra.mxu0 %v1364
          %v1432 = vpop.f32.mrf.mxu0
          %v1433 = vadd.f32 %v1361, %v1432
          %v1434 = vpop.f32.mrf.mxu0
          %1435 = vdwg.mxu0
          %v1436 = vadd.f32 %v685, %v1433
          %1437 = vst.msk [vmem:[#allocation2] sm:$0xff] %vm688, %v1436
          %v1438 = vld [vmem:[%s8] sm:$0x1]
          %v1439 = vld [vmem:[%s9] sm:$0x1]
          %v1440 = vsel %vm688, %v1436, 0.0
          %1441 = vadd.xlane.f32.xlu0 %v1440
          %v1442 = vpop.xlane.xlu0 %1441
          %v1443 = vmul.f32 %v1442, %v692
          %v1444 = vsub.f32 %v1436, %v1443
          %v1445 = vmul.f32 %v1444, %v1444
          %v1446 = vsel %vm688, %v1445, 0.0
          %1447 = vadd.xlane.f32.xlu0 %v1446
          %v1448 = vpop.xlane.xlu0 %1447
          %v1449 = vmul.f32 %v1448, %v692
          %v1450 = vadd.f32 %v1449, 1e-05
          %v1451 = vrsqrt.pop %v1450
          %v1452 = vmul.f32 %v1444, %v1451
          %v1454 = vlaneseq
          %v1455 = vshrl.u32 %v1454, 7
          %v1456 = vsub.s32 0, %v1455
          %v1457 = vrot.slane %v1438, %v1456
          %v1459 = vmul.f32 %v1452, %v1457
          %v1461 = vlaneseq
          %v1462 = vshrl.u32 %v1461, 7
          %v1463 = vsub.s32 0, %v1462
          %v1464 = vrot.slane %v1439, %v1463
          %v1466 = vadd.f32 %v1459, %v1464
          %1467 = vst.msk [vmem:[#allocation3] sm:$0xff] %vm688, %v1466
          %1468 = vst.msk [vmem:[#allocation4] sm:$0xff] %vm688, 0.0
        $region138: #{tpu_custom_call.1} parent=113 // pred_fallthru
          _
        %v1469 = vld [vmem:[#allocation3] sm:$0xff]
        %v1470 = vld [vmem:[%s610] sm:$0xff]
        %v1471 = vld [vmem:[%s610 + $0x8] sm:$0xff]
        %v1472 = vld [vmem:[%s610 + $0x10] sm:$0xff]
        %v1473 = vld [vmem:[%s610 + $0x18] sm:$0xff]
        %v1474 = vld [vmem:[%s610 + $0x20] sm:$0xff]
        %v1475 = vld [vmem:[%s610 + $0x28] sm:$0xff]
        %v1476 = vld [vmem:[%s610 + $0x30] sm:$0xff]
        %v1477 = vld [vmem:[%s610 + $0x38] sm:$0xff]
        %v1478 = vld [vmem:[%s674] sm:$0x1]
        %v1480 = vlaneseq
        %v1481 = vshrl.u32 %v1480, 7
        %v1482 = vsub.s32 0, %v1481
        %v1483 = vrot.slane %v1478, %v1482
        %vm1485 = vcmask 523264
        %v1487 = vsel %vm1485, %v1469, 0
        %1489 = vmatprep.subr.mxu0 0.0
        %1490 = vmatpush1.msra.mxu0 0.0
        %1491 = vmatprep.subr.mxu0 0.0
        %1492 = vmatpush1.msra.mxu0 0.0
        %1493 = vmatprep.subr.mxu0 0.0
        %1494 = vmatpush1.msra.mxu0 0.0
        %1495 = vmatprep.subr.mxu0 0.0
        %1496 = vmatpush1.msra.mxu0 0.0
        %1497 = vmatprep.subr.mxu0 0.0
        %1498 = vmatpush1.msra.mxu0 0.0
        %1499 = vmatprep.subr.mxu0 0.0
        %1500 = vmatpush1.msra.mxu0 0.0
        %1501 = vmatprep.subr.mxu0 0.0
        %1502 = vmatpush1.msra.mxu0 0.0
        %1503 = vmatprep.subr.mxu0 0.0
        %1504 = vmatpush1.msra.mxu0 0.0
        %1505 = vmatprep.subr.mxu0 0.0
        %1506 = vmatpush1.msra.mxu0 %v1477
        %1507 = vmatprep.subr.mxu0 0.0
        %1508 = vmatpush1.msra.mxu0 %v1476
        %1509 = vmatprep.subr.mxu0 0.0
        %1510 = vmatpush1.msra.mxu0 %v1475
        %1511 = vmatprep.subr.mxu0 0.0
        %1512 = vmatpush1.msra.mxu0 %v1474
        %1513 = vmatprep.subr.mxu0 0.0
        %1514 = vmatpush1.msra.mxu0 %v1473
        %1515 = vmatprep.subr.mxu0 0.0
        %1516 = vmatpush1.msra.mxu0 %v1472
        %1517 = vmatprep.subr.mxu0 0.0
        %1518 = vmatpush1.msra.mxu0 %v1471
        %1519 = vmatprep.subr.mxu0 0.0
        %1520 = vmatpush1.msra.mxu0 %v1470
        %1521 = vmatprep.subr.mxu0 0.0
        %1522 = vmatpush2.msra.mxu0 0.0
        %1523 = vmatprep.subr.mxu0 0.0
        %1524 = vmatpush2.msra.mxu0 0.0
        %1525 = vmatprep.subr.mxu0 0.0
        %1526 = vmatpush2.msra.mxu0 0.0
        %1527 = vmatprep.subr.mxu0 0.0
        %1528 = vmatpush2.msra.mxu0 0.0
        %1529 = vmatprep.subr.mxu0 0.0
        %1530 = vmatpush2.msra.mxu0 0.0
        %1531 = vmatprep.subr.mxu0 0.0
        %1532 = vmatpush2.msra.mxu0 0.0
        %1533 = vmatprep.subr.mxu0 0.0
        %1534 = vmatpush2.msra.mxu0 0.0
        %1535 = vmatprep.subr.mxu0 0.0
        %1536 = vmatpush2.msra.mxu0 0.0
        %1537 = vmatprep.subr.mxu0 0.0
        %1538 = vmatpush2.msra.mxu0 0.0
        %1539 = vmatprep.subr.mxu0 0.0
        %1540 = vmatpush2.msra.mxu0 0.0
        %1541 = vmatprep.subr.mxu0 0.0
        %1542 = vmatpush2.msra.mxu0 0.0
        %1543 = vmatprep.subr.mxu0 0.0
        %1544 = vmatpush2.msra.mxu0 0.0
        %1545 = vmatprep.subr.mxu0 0.0
        %1546 = vmatpush2.msra.mxu0 0.0
        %1547 = vmatprep.subr.mxu0 0.0
        %1548 = vmatpush2.msra.mxu0 0.0
        %1549 = vmatprep.subr.mxu0 0.0
        %1550 = vmatpush2.msra.mxu0 0.0
        %1551 = vmatprep.subr.mxu0 0.0
        %1552 = vmatpush2.msra.mxu0 0.0
        %1553 = vmatprep.mubr.f32.mxu0 0.0
        %1554 = vmatmul.mubr.f32.gmra.mxu0 %v1487
        %v1555 = vpop.f32.mrf.mxu0
        %v1556 = vadd.f32 %v1483, %v1555
        %v1557 = vpop.f32.mrf.mxu0
        %1558 = vdwg.mxu0
        %v1559 = vmul.f32 %v1556, 0.5
        %v1560 = vrcp.pop 1.4142135
        %v1561 = vmul.f32 %v1556, %v1560
        %v1562 = verf.f32.pop %v1561
        %v1563 = vadd.f32 %v1562, 1.0
        %v1564 = vmul.f32 %v1559, %v1563
        %v1565 = vld [vmem:[#allocation4] sm:$0xff]
        %v1566 = vld [vmem:[%s679] sm:$0xff]
        %v1567 = vld [vmem:[%s679 + $0x8] sm:$0xff]
        %v1568 = vld [vmem:[%s679 + $0x10] sm:$0xff]
        %v1569 = vld [vmem:[%s679 + $0x18] sm:$0xff]
        %v1570 = vld [vmem:[%s679 + $0x20] sm:$0xff]
        %v1571 = vld [vmem:[%s679 + $0x28] sm:$0xff]
        %v1572 = vld [vmem:[%s679 + $0x30] sm:$0xff]
        %v1573 = vld [vmem:[%s679 + $0x38] sm:$0xff]
        %v1574 = vld [vmem:[%s679 + $0x40] sm:$0xff]
        %v1575 = vld [vmem:[%s679 + $0x48] sm:$0xff]
        %v1576 = vld [vmem:[%s679 + $0x50] sm:$0xff]
        %v1577 = vld [vmem:[%s679 + $0x58] sm:$0xff]
        %v1578 = vld [vmem:[%s679 + $0x60] sm:$0xff]
        %v1579 = vld [vmem:[%s679 + $0x68] sm:$0xff]
        %v1580 = vld [vmem:[%s679 + $0x70] sm:$0xff]
        %v1581 = vld [vmem:[%s679 + $0x78] sm:$0xff]
        %1582 = vmatprep.subr.mxu0 0.0
        %1583 = vmatpush1.msra.mxu0 %v1581
        %1584 = vmatprep.subr.mxu0 0.0
        %1585 = vmatpush1.msra.mxu0 %v1580
        %1586 = vmatprep.subr.mxu0 0.0
        %1587 = vmatpush1.msra.mxu0 %v1579
        %1588 = vmatprep.subr.mxu0 0.0
        %1589 = vmatpush1.msra.mxu0 %v1578
        %1590 = vmatprep.subr.mxu0 0.0
        %1591 = vmatpush1.msra.mxu0 %v1577
        %1592 = vmatprep.subr.mxu0 0.0
        %1593 = vmatpush1.msra.mxu0 %v1576
        %1594 = vmatprep.subr.mxu0 0.0
        %1595 = vmatpush1.msra.mxu0 %v1575
        %1596 = vmatprep.subr.mxu0 0.0
        %1597 = vmatpush1.msra.mxu0 %v1574
        %1598 = vmatprep.subr.mxu0 0.0
        %1599 = vmatpush1.msra.mxu0 %v1573
        %1600 = vmatprep.subr.mxu0 0.0
        %1601 = vmatpush1.msra.mxu0 %v1572
        %1602 = vmatprep.subr.mxu0 0.0
        %1603 = vmatpush1.msra.mxu0 %v1571
        %1604 = vmatprep.subr.mxu0 0.0
        %1605 = vmatpush1.msra.mxu0 %v1570
        %1606 = vmatprep.subr.mxu0 0.0
        %1607 = vmatpush1.msra.mxu0 %v1569
        %1608 = vmatprep.subr.mxu0 0.0
        %1609 = vmatpush1.msra.mxu0 %v1568
        %1610 = vmatprep.subr.mxu0 0.0
        %1611 = vmatpush1.msra.mxu0 %v1567
        %1612 = vmatprep.subr.mxu0 0.0
        %1613 = vmatpush1.msra.mxu0 %v1566
        %1614 = vmatprep.subr.mxu0 0.0
        %1615 = vmatpush2.msra.mxu0 0.0
        %1616 = vmatprep.subr.mxu0 0.0
        %1617 = vmatpush2.msra.mxu0 0.0
        %1618 = vmatprep.subr.mxu0 0.0
        %1619 = vmatpush2.msra.mxu0 0.0
        %1620 = vmatprep.subr.mxu0 0.0
        %1621 = vmatpush2.msra.mxu0 0.0
        %1622 = vmatprep.subr.mxu0 0.0
        %1623 = vmatpush2.msra.mxu0 0.0
        %1624 = vmatprep.subr.mxu0 0.0
        %1625 = vmatpush2.msra.mxu0 0.0
        %1626 = vmatprep.subr.mxu0 0.0
        %1627 = vmatpush2.msra.mxu0 0.0
        %1628 = vmatprep.subr.mxu0 0.0
        %1629 = vmatpush2.msra.mxu0 0.0
        %1630 = vmatprep.subr.mxu0 0.0
        %1631 = vmatpush2.msra.mxu0 0.0
        %1632 = vmatprep.subr.mxu0 0.0
        %1633 = vmatpush2.msra.mxu0 0.0
        %1634 = vmatprep.subr.mxu0 0.0
        %1635 = vmatpush2.msra.mxu0 0.0
        %1636 = vmatprep.subr.mxu0 0.0
        %1637 = vmatpush2.msra.mxu0 0.0
        %1638 = vmatprep.subr.mxu0 0.0
        %1639 = vmatpush2.msra.mxu0 0.0
        %1640 = vmatprep.subr.mxu0 0.0
        %1641 = vmatpush2.msra.mxu0 0.0
        %1642 = vmatprep.subr.mxu0 0.0
        %1643 = vmatpush2.msra.mxu0 0.0
        %1644 = vmatprep.subr.mxu0 0.0
        %1645 = vmatpush2.msra.mxu0 0.0
        %1646 = vmatprep.mubr.f32.mxu0 0.0
        %1647 = vmatmul.mubr.f32.gmra.mxu0 %v1564
        %v1648 = vpop.f32.mrf.mxu0
        %v1649 = vadd.f32 0.0, %v1648
        %v1650 = vpop.f32.mrf.mxu0
        %1651 = vdwg.mxu0
        %v1652 = vadd.f32 %v1565, %v1649
        %1653 = vst.msk [vmem:[#allocation4] sm:$0xff] %vm1485, %v1652
        %p1654 = scmp.eq.s32.totalorder %s39, 1
        // Predicated region
        $region139: #{tpu_custom_call.1} parent=113 // pred_check
          %p1655 = pneg %p1654
        $region140: #{tpu_custom_call.1} parent=113 // pred_check_branch
          %1657 = sbr.rel (%p1655) target = $region142
        $region141: #{tpu_custom_call.1} parent=113 // pred_region
          %v1658 = vld [vmem:[#allocation2] sm:$0xff]
          %v1659 = vld [vmem:[#allocation4] sm:$0xff]
          %v1660 = vadd.f32 %v1658, %v1659
          %v1661 = vld [vmem:[%s13] sm:$0x1]
          %v1663 = vlaneseq
          %v1664 = vshrl.u32 %v1663, 7
          %v1665 = vsub.s32 0, %v1664
          %v1666 = vrot.slane %v1661, %v1665
          %v1668 = vadd.f32 %v1660, %v1666
          %1669 = vst.msk [vmem:[%s671] sm:$0xff] %vm1485, %v1668
        $region142: #{tpu_custom_call.1} parent=113 // pred_fallthru
          _
        %s1670 = sand.u32 %s389, 1
        %s1671 = scalar_lea.sflag [#allocation9], %s1670
        %s1672 = sand.u32 %s389, 1
        %s1673 = smul.addr %s1672, 8
        %s1674 = scalar_lea.vmem [#allocation16], %s1673
        // Predicated region
        $region143: #{tpu_custom_call.1} parent=113 // pred_check
          %p1675 = pneg %p399
        $region144: #{tpu_custom_call.1} parent=113 // pred_check_branch
          %1677 = sbr.rel (%p1675) target = $region146
        $region145: #{tpu_custom_call.1} parent=113 // pred_region
          %s1679 = ssub.s32 128, 128
          %1680 = vsyncadd %s1671, %s1679
          %s1681 = smul.addr %s38, 128
          %s1682 = scalar_lea.hbm %s15, %s1681
          %s1684 = sshll.u32 %s1674, 4
          %s1685 = int_to_ptr.vmem [resolvable:$true] %s1684
          %1687 = dma.vmem_to_hbm [thread:$0]  %s1685, 128, %s1682, %s1671
        $region146: #{tpu_custom_call.1} parent=113 // pred_fallthru
          _
      $region114: #{tpu_custom_call.1} parent=5 // pred_fallthru
        _
      %p1688 = scmp.le.s32.totalorder 2, %s29
      // Predicated region
      $region147: #{tpu_custom_call.1} parent=5 // pred_check
        %p1689 = pneg %p1688
      $region148: #{tpu_custom_call.1} parent=5 // pred_check_branch
        %1691 = sbr.rel (%p1689) target = $region150
      $region149: #{tpu_custom_call.1} parent=5 // pred_region
        %s1692 = ssub.s32 %s29, 2
        // Predicated region
        $region151: #{tpu_custom_call.1} parent=149 // pred_check
          %p1693 = pneg %p405
        $region152: #{tpu_custom_call.1} parent=149 // pred_check_branch
          %1695 = sbr.rel (%p1693) target = $region154
        $region153: #{tpu_custom_call.1} parent=149 // pred_region
          %s1696 = sand.u32 %s390, 1
          %s1697 = scalar_lea.sflag [#allocation9], %s1696
          %s1698 = sand.u32 %s390, 1
          %s1699 = smul.addr %s1698, 8
          %s1700 = scalar_lea.vmem [#allocation16], %s1699
          %1701 = dma.done %s1697, 128
        $region154: #{tpu_custom_call.1} parent=149 // pred_fallthru
          _
      $region150: #{tpu_custom_call.1} parent=5 // pred_fallthru
        _
    $region6: #{tpu_custom_call.1} parent=1 // loop_footer
      %s33 = sadd.s32 1, %s29
    $region7: #{tpu_custom_call.1} parent=1 // loop_footer_branch
      %28 = sbr.rel target = $region3
    $region8: #{tpu_custom_call.1} parent=1 // loop_exit
      _
    %1702 = vsyncpa [#allocation8], 1
    %s1703 = scalar_lea.sflag [#allocation8], 1
    %1704 = vsyncpa %s1703, 1
    %1705 = vsyncpa [#allocation11], 1
    %1706 = vsyncpa [#allocation15], 1
    %1707 = vsyncpa [#allocation9], 1
    %s1708 = scalar_lea.sflag [#allocation9], 1
    %1709 = vsyncpa %s1708, 1

</llo_original>
